<compile_context>
chip_gen: v7x
topology: tpu7x:2x2x1
jax: 0.10.0
libtpu: 0.0.40
codegen_flags: <defaults>
</compile_context>

<pallas_src>
import math

import jax
import jax.numpy as jnp
from jax.experimental import pallas as pl
from jax.experimental.pallas import tpu as pltpu

# ----------------------------------------------------------------------------
# Problem sizes (small, consistent with the module: input_channel, width)
# ----------------------------------------------------------------------------
N_VOX = 128          # number of active voxels (lane axis)
C_IN = 4             # cfg.input_channel
WIDTH = 16           # cfg.width

F32 = jnp.float32
BF16 = jnp.bfloat16
SLAB_COLS = 256      # >= max folded K+1 (=193); lane-aligned row stride
ROW_ALIGN = 16       # bf16 sublane packing


# ----------------------------------------------------------------------------
# Parameter construction + packing into one bf16 slab
# ----------------------------------------------------------------------------
def build_packed_params(key):
    """Build every layer's folded weight [C_out, K+1] (bias = last column) and
    pack them into one bf16 slab [R_total, 256].  Returns (slab, offsets) with
    offsets[name] = (row_offset, rows, cols) — static Python ints for the kernel."""
    keys = iter(jax.random.split(key, 256))

    def nk():
        return next(keys)

    def w_cm(cin, cout):
        # channel-major weight [C_out, C_in]
        return jax.random.normal(nk(), (cout, cin), F32) / math.sqrt(cin)

    def conv_bn(cin, cout):
        # center-tap sparse conv, inference BN folded: scale into W, shift as bias col
        w = w_cm(cin, cout)
        scale = 1.0 + 0.01 * jax.random.normal(nk(), (cout,), F32)
        shift = 0.01 * jax.random.normal(nk(), (cout,), F32)
        return jnp.concatenate([w * scale[:, None], shift[:, None]], axis=1)

    def linear(cin, cout, bias=True, scale=1.0):
        w = w_cm(cin, cout) * scale
        b = (0.01 * jax.random.normal(nk(), (cout,), F32) * scale
             if bias else jnp.zeros((cout,), F32))
        return jnp.concatenate([w, b[:, None]], axis=1)

    def attn(c):
        # nn.MultiheadAttention(num_heads=1): softmax scale folded into Wq/bq;
        # Q/K/V stacked into one [3c, c+1] weight; trailing 1x1 SubMConv has no bias.
        sm = 1.0 / math.sqrt(float(c))
        qkv_w = jnp.concatenate(
            [linear(c, c, scale=sm), linear(c, c), linear(c, c)], axis=0)
        return qkv_w, linear(c, c), linear(c, c, bias=False)

    def inv_stack(cin, cout):
        # inverse conv applied to (x_m + channel_reduction([x_bottom, x_trans]));
        # the 0/1 reduction matrices are folded in:  [W | W@R_top | W@R_bot | b]
        wb = conv_bn(cin, cout)
        w, b = wb[:, :cin], wb[:, cin:]
        r = jnp.repeat(jnp.eye(cin, dtype=F32), 2, axis=1)   # [cin, 2*cin]
        return jnp.concatenate([w, w @ r[:, :cin], w @ r[:, cin:], b], axis=1)

    W = WIDTH
    weights = []

    def add(name, w):
        weights.append((name, w))

    add("conv_input", conv_bn(C_IN, W))
    add("conv1", conv_bn(W, W))                       # GDBlock ~ pointwise path
    add("conv2a", conv_bn(W, 2 * W))
    add("conv2b", conv_bn(2 * W, 2 * W))
    qkv_w, out_w, conv_w = attn(2 * W)
    add("pa2_qkv", qkv_w); add("pa2_out", out_w); add("pa2_conv", conv_w)
    add("conv3a", conv_bn(2 * W, 4 * W))
    add("conv3b", conv_bn(4 * W, 4 * W))
    qkv_w, out_w, conv_w = attn(4 * W)
    add("pa3_qkv", qkv_w); add("pa3_out", out_w); add("pa3_conv", conv_w)
    add("conv4a", conv_bn(4 * W, 4 * W))
    add("conv4b", conv_bn(4 * W, 4 * W))
    qkv_w, out_w, conv_w = attn(4 * W)
    add("pa4_qkv", qkv_w); add("pa4_out", out_w); add("pa4_conv", conv_w)

    # decoder: (tag, lateral/bottom channels, inverse-conv out channels, inv name)
    for tag, c, cout, inv_name in (("4", 4 * W, 4 * W, "inv4"),
                                   ("3", 4 * W, 2 * W, "inv3"),
                                   ("2", 2 * W, W, "inv2"),
                                   ("1", W, W, "conv5")):
        add(f"up_t{tag}_w1", conv_bn(c, c))
        add(f"up_t{tag}_w2", conv_bn(c, c))
        add(f"up_m{tag}", conv_bn(2 * c, c))          # conv_up_m over [bottom; trans]
        add(inv_name, inv_stack(c, cout))

    sem = linear(W, 1)                                # semantic_linear (Linear+Sigmoid)
    sem = jnp.concatenate([sem, jnp.zeros((7, W + 1), F32)], axis=0)  # pad M=1 -> 8
    add("sem", sem)

    # ---- pack into one contiguous bf16 slab (single DMA, static offsets) ----
    offsets, row = {}, 0
    for name, w in weights:
        row = -(-row // ROW_ALIGN) * ROW_ALIGN
        offsets[name] = (row, int(w.shape[0]), int(w.shape[1]))
        row += int(w.shape[0])
    total = -(-row // ROW_ALIGN) * ROW_ALIGN
    slab = jnp.zeros((total, SLAB_COLS), BF16)
    for name, w in weights:
        r0, rows, cols = offsets[name]
        slab = slab.at[r0:r0 + rows, :cols].set(w.astype(BF16))
    return slab, offsets


# ----------------------------------------------------------------------------
# Single fused Pallas kernel for the whole forward pass
# ----------------------------------------------------------------------------
def build_fused_forward(slab, offsets):
    W = WIDTH

    def kernel(slab_ref, x_ref, out_ref, x1_ref, x2_ref, x3_ref):
        ones = jnp.ones((1, N_VOX), F32)              # bias row for the augment

        def wgt(name):
            r0, rows, cols = offsets[name]            # static Python ints
            return slab_ref[r0:r0 + rows, 0:cols]     # bf16 [rows, cols]

        def mm(name, *parts):
            # [C_out, K+1] @ [parts...; ones]  — bias folded as the last column;
            # operands bf16 (MXU-native), f32 accumulation.
            x = jnp.concatenate(list(parts) + [ones], axis=0).astype(BF16)
            return jnp.dot(wgt(name), x, preferred_element_type=F32)

        def conv(name, x):
            # center-tap sparse conv + folded BN + ReLU
            return jnp.maximum(mm(name, x), 0.0)

        def basic_block(tag, x):
            h = jnp.maximum(mm(tag + "_w1", x), 0.0)
            return jnp.maximum(mm(tag + "_w2", h) + x, 0.0)

        def attention(tag, x, c):
            # single-head self-attention (q=k=v=x), channel-major [c, N]
            qkv = mm(tag + "_qkv", x)                          # [3c, N] f32 (1 matmul)
            qt = jnp.transpose(qkv[0:c]).astype(BF16)          # [N, c], scale prefolded
            k = qkv[c:2 * c].astype(BF16)                      # [c, N]
            v = qkv[2 * c:3 * c].astype(BF16)                  # [c, N]
            s = jax.lax.dot_general(qt, k, (((1,), (0,)), ((), ())),
                                    preferred_element_type=F32)    # [N, N]
            e = jnp.exp(s - jnp.max(s, axis=-1, keepdims=True))
            pw = (e / jnp.sum(e, axis=-1, keepdims=True)).astype(BF16)
            a = jax.lax.dot_general(v, pw, (((1,), (1,)), ((), ())),
                                    preferred_element_type=F32)    # [c, N]
            y = mm(tag + "_out", a) + x                         # out_proj + identity
            return mm(tag + "_conv", y)                         # 1x1 SubMConv, no BN/act

        def ur_block(x_lateral, x_bottom, tag, inv_name):
            x_trans = basic_block("up_t" + tag, x_lateral)
            # conv_up_m over concat([x_bottom, x_trans]) — one K=2c+1 matmul
            x_m = jnp.maximum(mm("up_m" + tag, x_bottom, x_trans), 0.0)
            # inverse conv on (x_m + channel_reduction(cat)); fold -> one K=3c+1 matmul
            return jnp.maximum(mm(inv_name, x_m, x_bottom, x_trans), 0.0)

        # ---------------- encoder ----------------
        x = conv("conv_input", x_ref[...])            # [W, N]
        x1 = conv("conv1", x)
        x1_ref[...] = x1                              # stash skip in VMEM scratch

        x2 = attention("pa2", conv("conv2b", conv("conv2a", x1)), 2 * W)
        x2_ref[...] = x2
        x3 = attention("pa3", conv("conv3b", conv("conv3a", x2)), 4 * W)
        x3_ref[...] = x3
        x4 = attention("pa4", conv("conv4b", conv("conv4a", x3)), 4 * W)

        # ---------------- decoder ----------------
        up4 = ur_block(x4, x4, "4", "inv4")
        up3 = ur_block(x3_ref[...], up4, "3", "inv3")
        up2 = ur_block(x2_ref[...], up3, "2", "inv2")
        up1 = ur_block(x1_ref[...], up2, "1", "conv5")

        logits = mm("sem", up1)                       # [8, N]; rows 1..7 are padding
        out_ref[...] = jax.nn.sigmoid(logits[0:1, :])

    vmem = pl.BlockSpec(memory_space=pltpu.MemorySpace.VMEM)
    fused = pl.pallas_call(
        kernel,
        out_shape=jax.ShapeDtypeStruct((1, N_VOX), F32),
        in_specs=[vmem, vmem],                        # (param slab, activations)
        out_specs=vmem,
        scratch_shapes=[
            pltpu.VMEM((W, N_VOX), F32),              # x_conv1 skip
            pltpu.VMEM((2 * W, N_VOX), F32),          # x_conv2 skip
            pltpu.VMEM((4 * W, N_VOX), F32),          # x_conv3 skip
        ],
    )

    @jax.jit
    def _run(slab_in, feats_nc):
        out_cm = fused(slab_in, feats_nc.T)           # channel-major in, [1, N] out
        output = out_cm.T                             # [N, 1] — module semantics
        voxel_features = output                       # SparseConvTensor.replace_feature
        return output, voxel_features

    def forward(feats_nc):
        return _run(slab, feats_nc)

    return forward


# ----------------------------------------------------------------------------
if __name__ == "__main__":
    key = jax.random.PRNGKey(0)
    k_in, k_par = jax.random.split(key)

    # synthetic active-voxel features [N_vox, input_channels]
    feats = jax.random.normal(k_in, (N_VOX, C_IN), F32)
    slab, offsets = build_packed_params(k_par)

    forward = build_fused_forward(slab, offsets)
    output, voxel_features = forward(feats)
    jax.block_until_ready((output, voxel_features))

    assert output.shape == (N_VOX, 1)
    assert voxel_features.shape == (N_VOX, 1)
    assert bool(jnp.all(jnp.isfinite(output)))
    assert bool(jnp.all((output >= 0.0) & (output <= 1.0)))  # sigmoid range
    print("KERNEL_OK")
</pallas_src>

<mosaic_0001>
module attributes {stable_mosaic.version = 11 : i64} {
  func.func @kernel(%arg0: memref<1824x256xbf16, #tpu.memory_space<vmem>>, %arg1: memref<4x128xf32, #tpu.memory_space<vmem>>, %arg2: memref<1x128xf32, #tpu.memory_space<vmem>>, %arg3: memref<16x128xf32, #tpu.memory_space<vmem>>, %arg4: memref<32x128xf32, #tpu.memory_space<vmem>>, %arg5: memref<64x128xf32, #tpu.memory_space<vmem>>) attributes {dimension_semantics = [], scalar_prefetch = 0 : i64, scratch_operands = 3 : i64, tpu.core_type = #tpu.core_type<tc>} {
    %cst = arith.constant 1.000000e+00 : f32
    %0 = vector.broadcast %cst : f32 to vector<1x128xf32>
    %c0 = arith.constant 0 : index
    %c0_0 = arith.constant 0 : index
    %1 = vector.load %arg1[%c0, %c0_0] : memref<4x128xf32, #tpu.memory_space<vmem>>, vector<4x128xf32>
    %2 = tpu.concatenate %1, %0 in 0 : vector<4x128xf32>, vector<1x128xf32> -> vector<5x128xf32>
    %3 = arith.truncf %2 : vector<5x128xf32> to vector<5x128xbf16>
    %c0_1 = arith.constant 0 : index
    %c0_2 = arith.constant 0 : index
    %4 = vector.load %arg0[%c0_1, %c0_2] : memref<1824x256xbf16, #tpu.memory_space<vmem>>, vector<16x5xbf16>
    %cst_3 = arith.constant dense<0.000000e+00> : vector<16x128xf32>
    %5 = tpu.matmul %4, %3, %cst_3 {dimension_numbers = #tpu.dot_dimension_numbers<[1], [0], [0], [1], [0, 0, 1, 1], [], []>} : vector<16x5xbf16>, vector<5x128xbf16>, vector<16x128xf32> -> vector<16x128xf32>
    %cst_4 = arith.constant 0.000000e+00 : f32
    %6 = vector.broadcast %cst_4 : f32 to vector<16x128xf32>
    %7 = arith.maximumf %5, %6 : vector<16x128xf32>
    %8 = tpu.concatenate %7, %0 in 0 : vector<16x128xf32>, vector<1x128xf32> -> vector<17x128xf32>
    %9 = arith.truncf %8 : vector<17x128xf32> to vector<17x128xbf16>
    %c16 = arith.constant 16 : index
    %c0_5 = arith.constant 0 : index
    %10 = vector.load %arg0[%c16, %c0_5] : memref<1824x256xbf16, #tpu.memory_space<vmem>>, vector<16x17xbf16>
    %cst_6 = arith.constant dense<0.000000e+00> : vector<16x128xf32>
    %11 = tpu.matmul %10, %9, %cst_6 {dimension_numbers = #tpu.dot_dimension_numbers<[1], [0], [0], [1], [0, 0, 1, 1], [], []>} : vector<16x17xbf16>, vector<17x128xbf16>, vector<16x128xf32> -> vector<16x128xf32>
    %cst_7 = arith.constant 0.000000e+00 : f32
    %12 = vector.broadcast %cst_7 : f32 to vector<16x128xf32>
    %13 = arith.maximumf %11, %12 : vector<16x128xf32>
    %c0_8 = arith.constant 0 : index
    %c0_9 = arith.constant 0 : index
    %14 = vector.load %arg3[%c0_8, %c0_9] : memref<16x128xf32, #tpu.memory_space<vmem>>, vector<16x128xf32>
    tpu.vector_store %arg3[%c0_8, %c0_9], %13 {strides = array<i32>} : memref<16x128xf32, #tpu.memory_space<vmem>>, vector<16x128xf32>,
    %15 = tpu.concatenate %13, %0 in 0 : vector<16x128xf32>, vector<1x128xf32> -> vector<17x128xf32>
    %16 = arith.truncf %15 : vector<17x128xf32> to vector<17x128xbf16>
    %c32 = arith.constant 32 : index
    %c0_10 = arith.constant 0 : index
    %17 = vector.load %arg0[%c32, %c0_10] : memref<1824x256xbf16, #tpu.memory_space<vmem>>, vector<32x17xbf16>
    %cst_11 = arith.constant dense<0.000000e+00> : vector<32x128xf32>
    %18 = tpu.matmul %17, %16, %cst_11 {dimension_numbers = #tpu.dot_dimension_numbers<[1], [0], [0], [1], [0, 0, 1, 1], [], []>} : vector<32x17xbf16>, vector<17x128xbf16>, vector<32x128xf32> -> vector<32x128xf32>
    %cst_12 = arith.constant 0.000000e+00 : f32
    %19 = vector.broadcast %cst_12 : f32 to vector<32x128xf32>
    %20 = arith.maximumf %18, %19 : vector<32x128xf32>
    %21 = tpu.concatenate %20, %0 in 0 : vector<32x128xf32>, vector<1x128xf32> -> vector<33x128xf32>
    %22 = arith.truncf %21 : vector<33x128xf32> to vector<33x128xbf16>
    %c64 = arith.constant 64 : index
    %c0_13 = arith.constant 0 : index
    %23 = vector.load %arg0[%c64, %c0_13] : memref<1824x256xbf16, #tpu.memory_space<vmem>>, vector<32x33xbf16>
    %cst_14 = arith.constant dense<0.000000e+00> : vector<32x128xf32>
    %24 = tpu.matmul %23, %22, %cst_14 {dimension_numbers = #tpu.dot_dimension_numbers<[1], [0], [0], [1], [0, 0, 1, 1], [], []>} : vector<32x33xbf16>, vector<33x128xbf16>, vector<32x128xf32> -> vector<32x128xf32>
    %cst_15 = arith.constant 0.000000e+00 : f32
    %25 = vector.broadcast %cst_15 : f32 to vector<32x128xf32>
    %26 = arith.maximumf %24, %25 : vector<32x128xf32>
    %27 = tpu.concatenate %26, %0 in 0 : vector<32x128xf32>, vector<1x128xf32> -> vector<33x128xf32>
    %28 = arith.truncf %27 : vector<33x128xf32> to vector<33x128xbf16>
    %c96 = arith.constant 96 : index
    %c0_16 = arith.constant 0 : index
    %29 = vector.load %arg0[%c96, %c0_16] : memref<1824x256xbf16, #tpu.memory_space<vmem>>, vector<96x33xbf16>
    %cst_17 = arith.constant dense<0.000000e+00> : vector<96x128xf32>
    %30 = tpu.matmul %29, %28, %cst_17 {dimension_numbers = #tpu.dot_dimension_numbers<[1], [0], [0], [1], [0, 0, 1, 1], [], []>} : vector<96x33xbf16>, vector<33x128xbf16>, vector<96x128xf32> -> vector<96x128xf32>
    %31 = vector.extract_strided_slice %30 {offsets = [0, 0], sizes = [32, 128], strides = [1, 1]} : vector<96x128xf32> to vector<32x128xf32>
    %32 = tpu.transpose %31, [1, 0] : vector<32x128xf32> -> vector<128x32xf32>
    %33 = arith.truncf %32 : vector<128x32xf32> to vector<128x32xbf16>
    %34 = vector.extract_strided_slice %30 {offsets = [32, 0], sizes = [32, 128], strides = [1, 1]} : vector<96x128xf32> to vector<32x128xf32>
    %35 = arith.truncf %34 : vector<32x128xf32> to vector<32x128xbf16>
    %36 = vector.extract_strided_slice %30 {offsets = [64, 0], sizes = [32, 128], strides = [1, 1]} : vector<96x128xf32> to vector<32x128xf32>
    %37 = arith.truncf %36 : vector<32x128xf32> to vector<32x128xbf16>
    %cst_18 = arith.constant dense<0.000000e+00> : vector<128x128xf32>
    %38 = tpu.matmul %33, %35, %cst_18 {dimension_numbers = #tpu.dot_dimension_numbers<[1], [0], [0], [1], [0, 0, 1, 1], [], []>} : vector<128x32xbf16>, vector<32x128xbf16>, vector<128x128xf32> -> vector<128x128xf32>
    %cst_19 = arith.constant dense<0xFF800000> : vector<128xf32>
    %39 = vector.multi_reduction <maximumf>, %38, %cst_19 [1] : vector<128x128xf32> to vector<128xf32>
    %40 = vector.shape_cast %39 : vector<128xf32> to vector<128x1xf32>
    %41 = vector.broadcast %40 : vector<128x1xf32> to vector<128x128xf32>
    %42 = arith.subf %38, %41 : vector<128x128xf32>
    %43 = math.exp %42 : vector<128x128xf32>
    %cst_20 = arith.constant dense<0.000000e+00> : vector<128xf32>
    %44 = vector.multi_reduction <add>, %43, %cst_20 [1] : vector<128x128xf32> to vector<128xf32>
    %45 = vector.shape_cast %44 : vector<128xf32> to vector<128x1xf32>
    %46 = vector.broadcast %45 : vector<128x1xf32> to vector<128x128xf32>
    %47 = arith.divf %43, %46 : vector<128x128xf32>
    %48 = arith.truncf %47 : vector<128x128xf32> to vector<128x128xbf16>
    %cst_21 = arith.constant dense<0.000000e+00> : vector<32x128xf32>
    %49 = tpu.matmul %37, %48, %cst_21 {dimension_numbers = #tpu.dot_dimension_numbers<[1], [1], [0], [0], [0, 0, 1, 0], [], []>} : vector<32x128xbf16>, vector<128x128xbf16>, vector<32x128xf32> -> vector<32x128xf32>
    %50 = tpu.concatenate %49, %0 in 0 : vector<32x128xf32>, vector<1x128xf32> -> vector<33x128xf32>
    %51 = arith.truncf %50 : vector<33x128xf32> to vector<33x128xbf16>
    %c192 = arith.constant 192 : index
    %c0_22 = arith.constant 0 : index
    %52 = vector.load %arg0[%c192, %c0_22] : memref<1824x256xbf16, #tpu.memory_space<vmem>>, vector<32x33xbf16>
    %cst_23 = arith.constant dense<0.000000e+00> : vector<32x128xf32>
    %53 = tpu.matmul %52, %51, %cst_23 {dimension_numbers = #tpu.dot_dimension_numbers<[1], [0], [0], [1], [0, 0, 1, 1], [], []>} : vector<32x33xbf16>, vector<33x128xbf16>, vector<32x128xf32> -> vector<32x128xf32>
    %54 = arith.addf %53, %26 : vector<32x128xf32>
    %55 = tpu.concatenate %54, %0 in 0 : vector<32x128xf32>, vector<1x128xf32> -> vector<33x128xf32>
    %56 = arith.truncf %55 : vector<33x128xf32> to vector<33x128xbf16>
    %c224 = arith.constant 224 : index
    %c0_24 = arith.constant 0 : index
    %57 = vector.load %arg0[%c224, %c0_24] : memref<1824x256xbf16, #tpu.memory_space<vmem>>, vector<32x33xbf16>
    %cst_25 = arith.constant dense<0.000000e+00> : vector<32x128xf32>
    %58 = tpu.matmul %57, %56, %cst_25 {dimension_numbers = #tpu.dot_dimension_numbers<[1], [0], [0], [1], [0, 0, 1, 1], [], []>} : vector<32x33xbf16>, vector<33x128xbf16>, vector<32x128xf32> -> vector<32x128xf32>
    %c0_26 = arith.constant 0 : index
    %c0_27 = arith.constant 0 : index
    %59 = vector.load %arg4[%c0_26, %c0_27] : memref<32x128xf32, #tpu.memory_space<vmem>>, vector<32x128xf32>
    tpu.vector_store %arg4[%c0_26, %c0_27], %58 {strides = array<i32>} : memref<32x128xf32, #tpu.memory_space<vmem>>, vector<32x128xf32>,
    %60 = tpu.concatenate %58, %0 in 0 : vector<32x128xf32>, vector<1x128xf32> -> vector<33x128xf32>
    %61 = arith.truncf %60 : vector<33x128xf32> to vector<33x128xbf16>
    %c256 = arith.constant 256 : index
    %c0_28 = arith.constant 0 : index
    %62 = vector.load %arg0[%c256, %c0_28] : memref<1824x256xbf16, #tpu.memory_space<vmem>>, vector<64x33xbf16>
    %cst_29 = arith.constant dense<0.000000e+00> : vector<64x128xf32>
    %63 = tpu.matmul %62, %61, %cst_29 {dimension_numbers = #tpu.dot_dimension_numbers<[1], [0], [0], [1], [0, 0, 1, 1], [], []>} : vector<64x33xbf16>, vector<33x128xbf16>, vector<64x128xf32> -> vector<64x128xf32>
    %cst_30 = arith.constant 0.000000e+00 : f32
    %64 = vector.broadcast %cst_30 : f32 to vector<64x128xf32>
    %65 = arith.maximumf %63, %64 : vector<64x128xf32>
    %66 = tpu.concatenate %65, %0 in 0 : vector<64x128xf32>, vector<1x128xf32> -> vector<65x128xf32>
    %67 = arith.truncf %66 : vector<65x128xf32> to vector<65x128xbf16>
    %c320 = arith.constant 320 : index
    %c0_31 = arith.constant 0 : index
    %68 = vector.load %arg0[%c320, %c0_31] : memref<1824x256xbf16, #tpu.memory_space<vmem>>, vector<64x65xbf16>
    %cst_32 = arith.constant dense<0.000000e+00> : vector<64x128xf32>
    %69 = tpu.matmul %68, %67, %cst_32 {dimension_numbers = #tpu.dot_dimension_numbers<[1], [0], [0], [1], [0, 0, 1, 1], [], []>} : vector<64x65xbf16>, vector<65x128xbf16>, vector<64x128xf32> -> vector<64x128xf32>
    %cst_33 = arith.constant 0.000000e+00 : f32
    %70 = vector.broadcast %cst_33 : f32 to vector<64x128xf32>
    %71 = arith.maximumf %69, %70 : vector<64x128xf32>
    %72 = tpu.concatenate %71, %0 in 0 : vector<64x128xf32>, vector<1x128xf32> -> vector<65x128xf32>
    %73 = arith.truncf %72 : vector<65x128xf32> to vector<65x128xbf16>
    %c384 = arith.constant 384 : index
    %c0_34 = arith.constant 0 : index
    %74 = vector.load %arg0[%c384, %c0_34] : memref<1824x256xbf16, #tpu.memory_space<vmem>>, vector<192x65xbf16>
    %cst_35 = arith.constant dense<0.000000e+00> : vector<192x128xf32>
    %75 = tpu.matmul %74, %73, %cst_35 {dimension_numbers = #tpu.dot_dimension_numbers<[1], [0], [0], [1], [0, 0, 1, 1], [], []>} : vector<192x65xbf16>, vector<65x128xbf16>, vector<192x128xf32> -> vector<192x128xf32>
    %76 = vector.extract_strided_slice %75 {offsets = [0, 0], sizes = [64, 128], strides = [1, 1]} : vector<192x128xf32> to vector<64x128xf32>
    %77 = tpu.transpose %76, [1, 0] : vector<64x128xf32> -> vector<128x64xf32>
    %78 = arith.truncf %77 : vector<128x64xf32> to vector<128x64xbf16>
    %79 = vector.extract_strided_slice %75 {offsets = [64, 0], sizes = [64, 128], strides = [1, 1]} : vector<192x128xf32> to vector<64x128xf32>
    %80 = arith.truncf %79 : vector<64x128xf32> to vector<64x128xbf16>
    %81 = vector.extract_strided_slice %75 {offsets = [128, 0], sizes = [64, 128], strides = [1, 1]} : vector<192x128xf32> to vector<64x128xf32>
    %82 = arith.truncf %81 : vector<64x128xf32> to vector<64x128xbf16>
    %cst_36 = arith.constant dense<0.000000e+00> : vector<128x128xf32>
    %83 = tpu.matmul %78, %80, %cst_36 {dimension_numbers = #tpu.dot_dimension_numbers<[1], [0], [0], [1], [0, 0, 1, 1], [], []>} : vector<128x64xbf16>, vector<64x128xbf16>, vector<128x128xf32> -> vector<128x128xf32>
    %cst_37 = arith.constant dense<0xFF800000> : vector<128xf32>
    %84 = vector.multi_reduction <maximumf>, %83, %cst_37 [1] : vector<128x128xf32> to vector<128xf32>
    %85 = vector.shape_cast %84 : vector<128xf32> to vector<128x1xf32>
    %86 = vector.broadcast %85 : vector<128x1xf32> to vector<128x128xf32>
    %87 = arith.subf %83, %86 : vector<128x128xf32>
    %88 = math.exp %87 : vector<128x128xf32>
    %cst_38 = arith.constant dense<0.000000e+00> : vector<128xf32>
    %89 = vector.multi_reduction <add>, %88, %cst_38 [1] : vector<128x128xf32> to vector<128xf32>
    %90 = vector.shape_cast %89 : vector<128xf32> to vector<128x1xf32>
    %91 = vector.broadcast %90 : vector<128x1xf32> to vector<128x128xf32>
    %92 = arith.divf %88, %91 : vector<128x128xf32>
    %93 = arith.truncf %92 : vector<128x128xf32> to vector<128x128xbf16>
    %cst_39 = arith.constant dense<0.000000e+00> : vector<64x128xf32>
    %94 = tpu.matmul %82, %93, %cst_39 {dimension_numbers = #tpu.dot_dimension_numbers<[1], [1], [0], [0], [0, 0, 1, 0], [], []>} : vector<64x128xbf16>, vector<128x128xbf16>, vector<64x128xf32> -> vector<64x128xf32>
    %95 = tpu.concatenate %94, %0 in 0 : vector<64x128xf32>, vector<1x128xf32> -> vector<65x128xf32>
    %96 = arith.truncf %95 : vector<65x128xf32> to vector<65x128xbf16>
    %c576 = arith.constant 576 : index
    %c0_40 = arith.constant 0 : index
    %97 = vector.load %arg0[%c576, %c0_40] : memref<1824x256xbf16, #tpu.memory_space<vmem>>, vector<64x65xbf16>
    %cst_41 = arith.constant dense<0.000000e+00> : vector<64x128xf32>
    %98 = tpu.matmul %97, %96, %cst_41 {dimension_numbers = #tpu.dot_dimension_numbers<[1], [0], [0], [1], [0, 0, 1, 1], [], []>} : vector<64x65xbf16>, vector<65x128xbf16>, vector<64x128xf32> -> vector<64x128xf32>
    %99 = arith.addf %98, %71 : vector<64x128xf32>
    %100 = tpu.concatenate %99, %0 in 0 : vector<64x128xf32>, vector<1x128xf32> -> vector<65x128xf32>
    %101 = arith.truncf %100 : vector<65x128xf32> to vector<65x128xbf16>
    %c640 = arith.constant 640 : index
    %c0_42 = arith.constant 0 : index
    %102 = vector.load %arg0[%c640, %c0_42] : memref<1824x256xbf16, #tpu.memory_space<vmem>>, vector<64x65xbf16>
    %cst_43 = arith.constant dense<0.000000e+00> : vector<64x128xf32>
    %103 = tpu.matmul %102, %101, %cst_43 {dimension_numbers = #tpu.dot_dimension_numbers<[1], [0], [0], [1], [0, 0, 1, 1], [], []>} : vector<64x65xbf16>, vector<65x128xbf16>, vector<64x128xf32> -> vector<64x128xf32>
    %c0_44 = arith.constant 0 : index
    %c0_45 = arith.constant 0 : index
    %104 = vector.load %arg5[%c0_44, %c0_45] : memref<64x128xf32, #tpu.memory_space<vmem>>, vector<64x128xf32>
    tpu.vector_store %arg5[%c0_44, %c0_45], %103 {strides = array<i32>} : memref<64x128xf32, #tpu.memory_space<vmem>>, vector<64x128xf32>,
    %105 = tpu.concatenate %103, %0 in 0 : vector<64x128xf32>, vector<1x128xf32> -> vector<65x128xf32>
    %106 = arith.truncf %105 : vector<65x128xf32> to vector<65x128xbf16>
    %c704 = arith.constant 704 : index
    %c0_46 = arith.constant 0 : index
    %107 = vector.load %arg0[%c704, %c0_46] : memref<1824x256xbf16, #tpu.memory_space<vmem>>, vector<64x65xbf16>
    %cst_47 = arith.constant dense<0.000000e+00> : vector<64x128xf32>
    %108 = tpu.matmul %107, %106, %cst_47 {dimension_numbers = #tpu.dot_dimension_numbers<[1], [0], [0], [1], [0, 0, 1, 1], [], []>} : vector<64x65xbf16>, vector<65x128xbf16>, vector<64x128xf32> -> vector<64x128xf32>
    %cst_48 = arith.constant 0.000000e+00 : f32
    %109 = vector.broadcast %cst_48 : f32 to vector<64x128xf32>
    %110 = arith.maximumf %108, %109 : vector<64x128xf32>
    %111 = tpu.concatenate %110, %0 in 0 : vector<64x128xf32>, vector<1x128xf32> -> vector<65x128xf32>
    %112 = arith.truncf %111 : vector<65x128xf32> to vector<65x128xbf16>
    %c768 = arith.constant 768 : index
    %c0_49 = arith.constant 0 : index
    %113 = vector.load %arg0[%c768, %c0_49] : memref<1824x256xbf16, #tpu.memory_space<vmem>>, vector<64x65xbf16>
    %cst_50 = arith.constant dense<0.000000e+00> : vector<64x128xf32>
    %114 = tpu.matmul %113, %112, %cst_50 {dimension_numbers = #tpu.dot_dimension_numbers<[1], [0], [0], [1], [0, 0, 1, 1], [], []>} : vector<64x65xbf16>, vector<65x128xbf16>, vector<64x128xf32> -> vector<64x128xf32>
    %cst_51 = arith.constant 0.000000e+00 : f32
    %115 = vector.broadcast %cst_51 : f32 to vector<64x128xf32>
    %116 = arith.maximumf %114, %115 : vector<64x128xf32>
    %117 = tpu.concatenate %116, %0 in 0 : vector<64x128xf32>, vector<1x128xf32> -> vector<65x128xf32>
    %118 = arith.truncf %117 : vector<65x128xf32> to vector<65x128xbf16>
    %c832 = arith.constant 832 : index
    %c0_52 = arith.constant 0 : index
    %119 = vector.load %arg0[%c832, %c0_52] : memref<1824x256xbf16, #tpu.memory_space<vmem>>, vector<192x65xbf16>
    %cst_53 = arith.constant dense<0.000000e+00> : vector<192x128xf32>
    %120 = tpu.matmul %119, %118, %cst_53 {dimension_numbers = #tpu.dot_dimension_numbers<[1], [0], [0], [1], [0, 0, 1, 1], [], []>} : vector<192x65xbf16>, vector<65x128xbf16>, vector<192x128xf32> -> vector<192x128xf32>
    %121 = vector.extract_strided_slice %120 {offsets = [0, 0], sizes = [64, 128], strides = [1, 1]} : vector<192x128xf32> to vector<64x128xf32>
    %122 = tpu.transpose %121, [1, 0] : vector<64x128xf32> -> vector<128x64xf32>
    %123 = arith.truncf %122 : vector<128x64xf32> to vector<128x64xbf16>
    %124 = vector.extract_strided_slice %120 {offsets = [64, 0], sizes = [64, 128], strides = [1, 1]} : vector<192x128xf32> to vector<64x128xf32>
    %125 = arith.truncf %124 : vector<64x128xf32> to vector<64x128xbf16>
    %126 = vector.extract_strided_slice %120 {offsets = [128, 0], sizes = [64, 128], strides = [1, 1]} : vector<192x128xf32> to vector<64x128xf32>
    %127 = arith.truncf %126 : vector<64x128xf32> to vector<64x128xbf16>
    %cst_54 = arith.constant dense<0.000000e+00> : vector<128x128xf32>
    %128 = tpu.matmul %123, %125, %cst_54 {dimension_numbers = #tpu.dot_dimension_numbers<[1], [0], [0], [1], [0, 0, 1, 1], [], []>} : vector<128x64xbf16>, vector<64x128xbf16>, vector<128x128xf32> -> vector<128x128xf32>
    %cst_55 = arith.constant dense<0xFF800000> : vector<128xf32>
    %129 = vector.multi_reduction <maximumf>, %128, %cst_55 [1] : vector<128x128xf32> to vector<128xf32>
    %130 = vector.shape_cast %129 : vector<128xf32> to vector<128x1xf32>
    %131 = vector.broadcast %130 : vector<128x1xf32> to vector<128x128xf32>
    %132 = arith.subf %128, %131 : vector<128x128xf32>
    %133 = math.exp %132 : vector<128x128xf32>
    %cst_56 = arith.constant dense<0.000000e+00> : vector<128xf32>
    %134 = vector.multi_reduction <add>, %133, %cst_56 [1] : vector<128x128xf32> to vector<128xf32>
    %135 = vector.shape_cast %134 : vector<128xf32> to vector<128x1xf32>
    %136 = vector.broadcast %135 : vector<128x1xf32> to vector<128x128xf32>
    %137 = arith.divf %133, %136 : vector<128x128xf32>
    %138 = arith.truncf %137 : vector<128x128xf32> to vector<128x128xbf16>
    %cst_57 = arith.constant dense<0.000000e+00> : vector<64x128xf32>
    %139 = tpu.matmul %127, %138, %cst_57 {dimension_numbers = #tpu.dot_dimension_numbers<[1], [1], [0], [0], [0, 0, 1, 0], [], []>} : vector<64x128xbf16>, vector<128x128xbf16>, vector<64x128xf32> -> vector<64x128xf32>
    %140 = tpu.concatenate %139, %0 in 0 : vector<64x128xf32>, vector<1x128xf32> -> vector<65x128xf32>
    %141 = arith.truncf %140 : vector<65x128xf32> to vector<65x128xbf16>
    %c1024 = arith.constant 1024 : index
    %c0_58 = arith.constant 0 : index
    %142 = vector.load %arg0[%c1024, %c0_58] : memref<1824x256xbf16, #tpu.memory_space<vmem>>, vector<64x65xbf16>
    %cst_59 = arith.constant dense<0.000000e+00> : vector<64x128xf32>
    %143 = tpu.matmul %142, %141, %cst_59 {dimension_numbers = #tpu.dot_dimension_numbers<[1], [0], [0], [1], [0, 0, 1, 1], [], []>} : vector<64x65xbf16>, vector<65x128xbf16>, vector<64x128xf32> -> vector<64x128xf32>
    %144 = arith.addf %143, %116 : vector<64x128xf32>
    %145 = tpu.concatenate %144, %0 in 0 : vector<64x128xf32>, vector<1x128xf32> -> vector<65x128xf32>
    %146 = arith.truncf %145 : vector<65x128xf32> to vector<65x128xbf16>
    %c1088 = arith.constant 1088 : index
    %c0_60 = arith.constant 0 : index
    %147 = vector.load %arg0[%c1088, %c0_60] : memref<1824x256xbf16, #tpu.memory_space<vmem>>, vector<64x65xbf16>
    %cst_61 = arith.constant dense<0.000000e+00> : vector<64x128xf32>
    %148 = tpu.matmul %147, %146, %cst_61 {dimension_numbers = #tpu.dot_dimension_numbers<[1], [0], [0], [1], [0, 0, 1, 1], [], []>} : vector<64x65xbf16>, vector<65x128xbf16>, vector<64x128xf32> -> vector<64x128xf32>
    %149 = tpu.concatenate %148, %0 in 0 : vector<64x128xf32>, vector<1x128xf32> -> vector<65x128xf32>
    %150 = arith.truncf %149 : vector<65x128xf32> to vector<65x128xbf16>
    %c1152 = arith.constant 1152 : index
    %c0_62 = arith.constant 0 : index
    %151 = vector.load %arg0[%c1152, %c0_62] : memref<1824x256xbf16, #tpu.memory_space<vmem>>, vector<64x65xbf16>
    %cst_63 = arith.constant dense<0.000000e+00> : vector<64x128xf32>
    %152 = tpu.matmul %151, %150, %cst_63 {dimension_numbers = #tpu.dot_dimension_numbers<[1], [0], [0], [1], [0, 0, 1, 1], [], []>} : vector<64x65xbf16>, vector<65x128xbf16>, vector<64x128xf32> -> vector<64x128xf32>
    %cst_64 = arith.constant 0.000000e+00 : f32
    %153 = vector.broadcast %cst_64 : f32 to vector<64x128xf32>
    %154 = arith.maximumf %152, %153 : vector<64x128xf32>
    %155 = tpu.concatenate %154, %0 in 0 : vector<64x128xf32>, vector<1x128xf32> -> vector<65x128xf32>
    %156 = arith.truncf %155 : vector<65x128xf32> to vector<65x128xbf16>
    %c1216 = arith.constant 1216 : index
    %c0_65 = arith.constant 0 : index
    %157 = vector.load %arg0[%c1216, %c0_65] : memref<1824x256xbf16, #tpu.memory_space<vmem>>, vector<64x65xbf16>
    %cst_66 = arith.constant dense<0.000000e+00> : vector<64x128xf32>
    %158 = tpu.matmul %157, %156, %cst_66 {dimension_numbers = #tpu.dot_dimension_numbers<[1], [0], [0], [1], [0, 0, 1, 1], [], []>} : vector<64x65xbf16>, vector<65x128xbf16>, vector<64x128xf32> -> vector<64x128xf32>
    %159 = arith.addf %158, %148 : vector<64x128xf32>
    %cst_67 = arith.constant 0.000000e+00 : f32
    %160 = vector.broadcast %cst_67 : f32 to vector<64x128xf32>
    %161 = arith.maximumf %159, %160 : vector<64x128xf32>
    %162 = tpu.concatenate %148, %161, %0 in 0 : vector<64x128xf32>, vector<64x128xf32>, vector<1x128xf32> -> vector<129x128xf32>
    %163 = arith.truncf %162 : vector<129x128xf32> to vector<129x128xbf16>
    %c1280 = arith.constant 1280 : index
    %c0_68 = arith.constant 0 : index
    %164 = vector.load %arg0[%c1280, %c0_68] : memref<1824x256xbf16, #tpu.memory_space<vmem>>, vector<64x129xbf16>
    %cst_69 = arith.constant dense<0.000000e+00> : vector<64x128xf32>
    %165 = tpu.matmul %164, %163, %cst_69 {dimension_numbers = #tpu.dot_dimension_numbers<[1], [0], [0], [1], [0, 0, 1, 1], [], []>} : vector<64x129xbf16>, vector<129x128xbf16>, vector<64x128xf32> -> vector<64x128xf32>
    %cst_70 = arith.constant 0.000000e+00 : f32
    %166 = vector.broadcast %cst_70 : f32 to vector<64x128xf32>
    %167 = arith.maximumf %165, %166 : vector<64x128xf32>
    %168 = tpu.concatenate %167, %148, %161, %0 in 0 : vector<64x128xf32>, vector<64x128xf32>, vector<64x128xf32>, vector<1x128xf32> -> vector<193x128xf32>
    %169 = arith.truncf %168 : vector<193x128xf32> to vector<193x128xbf16>
    %c1344 = arith.constant 1344 : index
    %c0_71 = arith.constant 0 : index
    %170 = vector.load %arg0[%c1344, %c0_71] : memref<1824x256xbf16, #tpu.memory_space<vmem>>, vector<64x193xbf16>
    %cst_72 = arith.constant dense<0.000000e+00> : vector<64x128xf32>
    %171 = tpu.matmul %170, %169, %cst_72 {dimension_numbers = #tpu.dot_dimension_numbers<[1], [0], [0], [1], [0, 0, 1, 1], [], []>} : vector<64x193xbf16>, vector<193x128xbf16>, vector<64x128xf32> -> vector<64x128xf32>
    %cst_73 = arith.constant 0.000000e+00 : f32
    %172 = vector.broadcast %cst_73 : f32 to vector<64x128xf32>
    %173 = arith.maximumf %171, %172 : vector<64x128xf32>
    %c0_74 = arith.constant 0 : index
    %c0_75 = arith.constant 0 : index
    %174 = vector.load %arg5[%c0_74, %c0_75] : memref<64x128xf32, #tpu.memory_space<vmem>>, vector<64x128xf32>
    %175 = tpu.concatenate %174, %0 in 0 : vector<64x128xf32>, vector<1x128xf32> -> vector<65x128xf32>
    %176 = arith.truncf %175 : vector<65x128xf32> to vector<65x128xbf16>
    %c1408 = arith.constant 1408 : index
    %c0_76 = arith.constant 0 : index
    %177 = vector.load %arg0[%c1408, %c0_76] : memref<1824x256xbf16, #tpu.memory_space<vmem>>, vector<64x65xbf16>
    %cst_77 = arith.constant dense<0.000000e+00> : vector<64x128xf32>
    %178 = tpu.matmul %177, %176, %cst_77 {dimension_numbers = #tpu.dot_dimension_numbers<[1], [0], [0], [1], [0, 0, 1, 1], [], []>} : vector<64x65xbf16>, vector<65x128xbf16>, vector<64x128xf32> -> vector<64x128xf32>
    %cst_78 = arith.constant 0.000000e+00 : f32
    %179 = vector.broadcast %cst_78 : f32 to vector<64x128xf32>
    %180 = arith.maximumf %178, %179 : vector<64x128xf32>
    %181 = tpu.concatenate %180, %0 in 0 : vector<64x128xf32>, vector<1x128xf32> -> vector<65x128xf32>
    %182 = arith.truncf %181 : vector<65x128xf32> to vector<65x128xbf16>
    %c1472 = arith.constant 1472 : index
    %c0_79 = arith.constant 0 : index
    %183 = vector.load %arg0[%c1472, %c0_79] : memref<1824x256xbf16, #tpu.memory_space<vmem>>, vector<64x65xbf16>
    %cst_80 = arith.constant dense<0.000000e+00> : vector<64x128xf32>
    %184 = tpu.matmul %183, %182, %cst_80 {dimension_numbers = #tpu.dot_dimension_numbers<[1], [0], [0], [1], [0, 0, 1, 1], [], []>} : vector<64x65xbf16>, vector<65x128xbf16>, vector<64x128xf32> -> vector<64x128xf32>
    %185 = arith.addf %184, %174 : vector<64x128xf32>
    %cst_81 = arith.constant 0.000000e+00 : f32
    %186 = vector.broadcast %cst_81 : f32 to vector<64x128xf32>
    %187 = arith.maximumf %185, %186 : vector<64x128xf32>
    %188 = tpu.concatenate %173, %187, %0 in 0 : vector<64x128xf32>, vector<64x128xf32>, vector<1x128xf32> -> vector<129x128xf32>
    %189 = arith.truncf %188 : vector<129x128xf32> to vector<129x128xbf16>
    %c1536 = arith.constant 1536 : index
    %c0_82 = arith.constant 0 : index
    %190 = vector.load %arg0[%c1536, %c0_82] : memref<1824x256xbf16, #tpu.memory_space<vmem>>, vector<64x129xbf16>
    %cst_83 = arith.constant dense<0.000000e+00> : vector<64x128xf32>
    %191 = tpu.matmul %190, %189, %cst_83 {dimension_numbers = #tpu.dot_dimension_numbers<[1], [0], [0], [1], [0, 0, 1, 1], [], []>} : vector<64x129xbf16>, vector<129x128xbf16>, vector<64x128xf32> -> vector<64x128xf32>
    %cst_84 = arith.constant 0.000000e+00 : f32
    %192 = vector.broadcast %cst_84 : f32 to vector<64x128xf32>
    %193 = arith.maximumf %191, %192 : vector<64x128xf32>
    %194 = tpu.concatenate %193, %173, %187, %0 in 0 : vector<64x128xf32>, vector<64x128xf32>, vector<64x128xf32>, vector<1x128xf32> -> vector<193x128xf32>
    %195 = arith.truncf %194 : vector<193x128xf32> to vector<193x128xbf16>
    %c1600 = arith.constant 1600 : index
    %c0_85 = arith.constant 0 : index
    %196 = vector.load %arg0[%c1600, %c0_85] : memref<1824x256xbf16, #tpu.memory_space<vmem>>, vector<32x193xbf16>
    %cst_86 = arith.constant dense<0.000000e+00> : vector<32x128xf32>
    %197 = tpu.matmul %196, %195, %cst_86 {dimension_numbers = #tpu.dot_dimension_numbers<[1], [0], [0], [1], [0, 0, 1, 1], [], []>} : vector<32x193xbf16>, vector<193x128xbf16>, vector<32x128xf32> -> vector<32x128xf32>
    %cst_87 = arith.constant 0.000000e+00 : f32
    %198 = vector.broadcast %cst_87 : f32 to vector<32x128xf32>
    %199 = arith.maximumf %197, %198 : vector<32x128xf32>
    %c0_88 = arith.constant 0 : index
    %c0_89 = arith.constant 0 : index
    %200 = vector.load %arg4[%c0_88, %c0_89] : memref<32x128xf32, #tpu.memory_space<vmem>>, vector<32x128xf32>
    %201 = tpu.concatenate %200, %0 in 0 : vector<32x128xf32>, vector<1x128xf32> -> vector<33x128xf32>
    %202 = arith.truncf %201 : vector<33x128xf32> to vector<33x128xbf16>
    %c1632 = arith.constant 1632 : index
    %c0_90 = arith.constant 0 : index
    %203 = vector.load %arg0[%c1632, %c0_90] : memref<1824x256xbf16, #tpu.memory_space<vmem>>, vector<32x33xbf16>
    %cst_91 = arith.constant dense<0.000000e+00> : vector<32x128xf32>
    %204 = tpu.matmul %203, %202, %cst_91 {dimension_numbers = #tpu.dot_dimension_numbers<[1], [0], [0], [1], [0, 0, 1, 1], [], []>} : vector<32x33xbf16>, vector<33x128xbf16>, vector<32x128xf32> -> vector<32x128xf32>
    %cst_92 = arith.constant 0.000000e+00 : f32
    %205 = vector.broadcast %cst_92 : f32 to vector<32x128xf32>
    %206 = arith.maximumf %204, %205 : vector<32x128xf32>
    %207 = tpu.concatenate %206, %0 in 0 : vector<32x128xf32>, vector<1x128xf32> -> vector<33x128xf32>
    %208 = arith.truncf %207 : vector<33x128xf32> to vector<33x128xbf16>
    %c1664 = arith.constant 1664 : index
    %c0_93 = arith.constant 0 : index
    %209 = vector.load %arg0[%c1664, %c0_93] : memref<1824x256xbf16, #tpu.memory_space<vmem>>, vector<32x33xbf16>
    %cst_94 = arith.constant dense<0.000000e+00> : vector<32x128xf32>
    %210 = tpu.matmul %209, %208, %cst_94 {dimension_numbers = #tpu.dot_dimension_numbers<[1], [0], [0], [1], [0, 0, 1, 1], [], []>} : vector<32x33xbf16>, vector<33x128xbf16>, vector<32x128xf32> -> vector<32x128xf32>
    %211 = arith.addf %210, %200 : vector<32x128xf32>
    %cst_95 = arith.constant 0.000000e+00 : f32
    %212 = vector.broadcast %cst_95 : f32 to vector<32x128xf32>
    %213 = arith.maximumf %211, %212 : vector<32x128xf32>
    %214 = tpu.concatenate %199, %213, %0 in 0 : vector<32x128xf32>, vector<32x128xf32>, vector<1x128xf32> -> vector<65x128xf32>
    %215 = arith.truncf %214 : vector<65x128xf32> to vector<65x128xbf16>
    %c1696 = arith.constant 1696 : index
    %c0_96 = arith.constant 0 : index
    %216 = vector.load %arg0[%c1696, %c0_96] : memref<1824x256xbf16, #tpu.memory_space<vmem>>, vector<32x65xbf16>
    %cst_97 = arith.constant dense<0.000000e+00> : vector<32x128xf32>
    %217 = tpu.matmul %216, %215, %cst_97 {dimension_numbers = #tpu.dot_dimension_numbers<[1], [0], [0], [1], [0, 0, 1, 1], [], []>} : vector<32x65xbf16>, vector<65x128xbf16>, vector<32x128xf32> -> vector<32x128xf32>
    %cst_98 = arith.constant 0.000000e+00 : f32
    %218 = vector.broadcast %cst_98 : f32 to vector<32x128xf32>
    %219 = arith.maximumf %217, %218 : vector<32x128xf32>
    %220 = tpu.concatenate %219, %199, %213, %0 in 0 : vector<32x128xf32>, vector<32x128xf32>, vector<32x128xf32>, vector<1x128xf32> -> vector<97x128xf32>
    %221 = arith.truncf %220 : vector<97x128xf32> to vector<97x128xbf16>
    %c1728 = arith.constant 1728 : index
    %c0_99 = arith.constant 0 : index
    %222 = vector.load %arg0[%c1728, %c0_99] : memref<1824x256xbf16, #tpu.memory_space<vmem>>, vector<16x97xbf16>
    %cst_100 = arith.constant dense<0.000000e+00> : vector<16x128xf32>
    %223 = tpu.matmul %222, %221, %cst_100 {dimension_numbers = #tpu.dot_dimension_numbers<[1], [0], [0], [1], [0, 0, 1, 1], [], []>} : vector<16x97xbf16>, vector<97x128xbf16>, vector<16x128xf32> -> vector<16x128xf32>
    %cst_101 = arith.constant 0.000000e+00 : f32
    %224 = vector.broadcast %cst_101 : f32 to vector<16x128xf32>
    %225 = arith.maximumf %223, %224 : vector<16x128xf32>
    %c0_102 = arith.constant 0 : index
    %c0_103 = arith.constant 0 : index
    %226 = vector.load %arg3[%c0_102, %c0_103] : memref<16x128xf32, #tpu.memory_space<vmem>>, vector<16x128xf32>
    %227 = tpu.concatenate %226, %0 in 0 : vector<16x128xf32>, vector<1x128xf32> -> vector<17x128xf32>
    %228 = arith.truncf %227 : vector<17x128xf32> to vector<17x128xbf16>
    %c1744 = arith.constant 1744 : index
    %c0_104 = arith.constant 0 : index
    %229 = vector.load %arg0[%c1744, %c0_104] : memref<1824x256xbf16, #tpu.memory_space<vmem>>, vector<16x17xbf16>
    %cst_105 = arith.constant dense<0.000000e+00> : vector<16x128xf32>
    %230 = tpu.matmul %229, %228, %cst_105 {dimension_numbers = #tpu.dot_dimension_numbers<[1], [0], [0], [1], [0, 0, 1, 1], [], []>} : vector<16x17xbf16>, vector<17x128xbf16>, vector<16x128xf32> -> vector<16x128xf32>
    %cst_106 = arith.constant 0.000000e+00 : f32
    %231 = vector.broadcast %cst_106 : f32 to vector<16x128xf32>
    %232 = arith.maximumf %230, %231 : vector<16x128xf32>
    %233 = tpu.concatenate %232, %0 in 0 : vector<16x128xf32>, vector<1x128xf32> -> vector<17x128xf32>
    %234 = arith.truncf %233 : vector<17x128xf32> to vector<17x128xbf16>
    %c1760 = arith.constant 1760 : index
    %c0_107 = arith.constant 0 : index
    %235 = vector.load %arg0[%c1760, %c0_107] : memref<1824x256xbf16, #tpu.memory_space<vmem>>, vector<16x17xbf16>
    %cst_108 = arith.constant dense<0.000000e+00> : vector<16x128xf32>
    %236 = tpu.matmul %235, %234, %cst_108 {dimension_numbers = #tpu.dot_dimension_numbers<[1], [0], [0], [1], [0, 0, 1, 1], [], []>} : vector<16x17xbf16>, vector<17x128xbf16>, vector<16x128xf32> -> vector<16x128xf32>
    %237 = arith.addf %236, %226 : vector<16x128xf32>
    %cst_109 = arith.constant 0.000000e+00 : f32
    %238 = vector.broadcast %cst_109 : f32 to vector<16x128xf32>
    %239 = arith.maximumf %237, %238 : vector<16x128xf32>
    %240 = tpu.concatenate %225, %239, %0 in 0 : vector<16x128xf32>, vector<16x128xf32>, vector<1x128xf32> -> vector<33x128xf32>
    %241 = arith.truncf %240 : vector<33x128xf32> to vector<33x128xbf16>
    %c1776 = arith.constant 1776 : index
    %c0_110 = arith.constant 0 : index
    %242 = vector.load %arg0[%c1776, %c0_110] : memref<1824x256xbf16, #tpu.memory_space<vmem>>, vector<16x33xbf16>
    %cst_111 = arith.constant dense<0.000000e+00> : vector<16x128xf32>
    %243 = tpu.matmul %242, %241, %cst_111 {dimension_numbers = #tpu.dot_dimension_numbers<[1], [0], [0], [1], [0, 0, 1, 1], [], []>} : vector<16x33xbf16>, vector<33x128xbf16>, vector<16x128xf32> -> vector<16x128xf32>
    %cst_112 = arith.constant 0.000000e+00 : f32
    %244 = vector.broadcast %cst_112 : f32 to vector<16x128xf32>
    %245 = arith.maximumf %243, %244 : vector<16x128xf32>
    %246 = tpu.concatenate %245, %225, %239, %0 in 0 : vector<16x128xf32>, vector<16x128xf32>, vector<16x128xf32>, vector<1x128xf32> -> vector<49x128xf32>
    %247 = arith.truncf %246 : vector<49x128xf32> to vector<49x128xbf16>
    %c1792 = arith.constant 1792 : index
    %c0_113 = arith.constant 0 : index
    %248 = vector.load %arg0[%c1792, %c0_113] : memref<1824x256xbf16, #tpu.memory_space<vmem>>, vector<16x49xbf16>
    %cst_114 = arith.constant dense<0.000000e+00> : vector<16x128xf32>
    %249 = tpu.matmul %248, %247, %cst_114 {dimension_numbers = #tpu.dot_dimension_numbers<[1], [0], [0], [1], [0, 0, 1, 1], [], []>} : vector<16x49xbf16>, vector<49x128xbf16>, vector<16x128xf32> -> vector<16x128xf32>
    %cst_115 = arith.constant 0.000000e+00 : f32
    %250 = vector.broadcast %cst_115 : f32 to vector<16x128xf32>
    %251 = arith.maximumf %249, %250 : vector<16x128xf32>
    %252 = tpu.concatenate %251, %0 in 0 : vector<16x128xf32>, vector<1x128xf32> -> vector<17x128xf32>
    %253 = arith.truncf %252 : vector<17x128xf32> to vector<17x128xbf16>
    %c1808 = arith.constant 1808 : index
    %c0_116 = arith.constant 0 : index
    %254 = vector.load %arg0[%c1808, %c0_116] : memref<1824x256xbf16, #tpu.memory_space<vmem>>, vector<8x17xbf16>
    %cst_117 = arith.constant dense<0.000000e+00> : vector<8x128xf32>
    %255 = tpu.matmul %254, %253, %cst_117 {dimension_numbers = #tpu.dot_dimension_numbers<[1], [0], [0], [1], [0, 0, 1, 1], [], []>} : vector<8x17xbf16>, vector<17x128xbf16>, vector<8x128xf32> -> vector<8x128xf32>
    %256 = vector.extract_strided_slice %255 {offsets = [0, 0], sizes = [1, 128], strides = [1, 1]} : vector<8x128xf32> to vector<1x128xf32>
    %257 = arith.negf %256 : vector<1x128xf32>
    %258 = math.exp %257 : vector<1x128xf32>
    %cst_118 = arith.constant 1.000000e+00 : f32
    %259 = vector.broadcast %cst_118 : f32 to vector<1x128xf32>
    %260 = arith.addf %259, %258 : vector<1x128xf32>
    %261 = arith.divf %259, %260 : vector<1x128xf32>
    %c0_119 = arith.constant 0 : index
    %c0_120 = arith.constant 0 : index
    %262 = vector.load %arg2[%c0_119, %c0_120] : memref<1x128xf32, #tpu.memory_space<vmem>>, vector<1x128xf32>
    tpu.vector_store %arg2[%c0_119, %c0_120], %261 {strides = array<i32>} : memref<1x128xf32, #tpu.memory_space<vmem>>, vector<1x128xf32>,
    return
  }
}

</mosaic_0001>

<llo_original>
// kernel: _run.1
$region0: #{_run.1}
  #allocation0 [shape = 'u32[]', space=smem, size = 0x4, offset = 0x4, fixed_abs, tag = 'smem constant byte address 0x4 - core index']
  #allocation1 [shape = 'u32[144,128]{1,0:T(1,128)}', space=vmem, size = 0x12000, scoped, tag = 'internal scratch']
  #allocation2 [shape = 'f32[16,128]{1,0:T(8,128)}', space=vmem, size = 0x2000, scoped, tag = 'scratch operand']
  #allocation3 [shape = 'f32[32,128]{1,0:T(8,128)}', space=vmem, size = 0x4000, scoped, tag = 'scratch operand']
  #allocation4 [shape = 'f32[64,128]{1,0:T(8,128)}', space=vmem, size = 0x8000, scoped, tag = 'scratch operand']
  %s0 = inlined_call_operand.hbm [shape: bf16[1824,256], index: 0, kind: input, shape index: {}]
  %s1 = inlined_call_operand.vmem [shape: f32[4,128], index: 1, kind: input, shape index: {}]
  %s2 = inlined_call_operand.vmem [shape: f32[1,128], index: 2, kind: output, shape index: {}]
  %s3 = sld [smem:[#allocation0]]
  $region22: #{_run.1} parent=0
    _
  %s5 = ssub.s32 1, %s3
  %s6 = scalar_select 0, %s5, %s3
  $region1: #{_run.1} parent=0
    #allocation5 [shape = 'u8[933888]{0}', space=vmem, size = 0xe4000, scoped, tag = 'input window, operand 0, single buffered']
    #allocation6 [shape = 's32[1]{0}', space=sflag, size = 0x4, scoped, tag = 'scoped memory for _run.1']
    %7 = vsyncpa [#allocation6], 0
    // Predicated region
    $region2: #{_run.1} parent=1 // pred_check
      _
    $region3: #{_run.1} parent=1 // pred_check_branch
      %9 = sbr.rel (0) target = $region5
    $region4: #{_run.1} parent=1 // pred_region
      %s11 = ssub.s32 29184, 29184
      %12 = vsyncadd [#allocation6], %s11
      %s13 = sshll.u32 [#allocation5], 4
      %s14 = int_to_ptr.vmem [resolvable:$true] %s13
      %19 = dma.hbm_to_vmem [thread:$0]  %s0, 29184, %s14, [#allocation6], 128, 128, 8
    $region5: #{_run.1} parent=1 // pred_fallthru
      _
    // Predicated region
    $region6: #{_run.1} parent=1 // pred_check
      _
    $region7: #{_run.1} parent=1 // pred_check_branch
      %21 = sbr.rel (0) target = $region9
    $region8: #{_run.1} parent=1 // pred_region
      _
    $region9: #{_run.1} parent=1 // pred_fallthru
      _
    // Predicated region
    $region10: #{_run.1} parent=1 // pred_check
      _
    $region11: #{_run.1} parent=1 // pred_check_branch
      %23 = sbr.rel (0) target = $region13
    $region12: #{_run.1} parent=1 // pred_region
      %24 = dma.done [#allocation6], 29184
    $region13: #{_run.1} parent=1 // pred_fallthru
      _
    %v26 = vld [vmem:[%s1] sm:$0xf]
    %vm27 = vcmask 1043456
    %v28 = vsel %vm27, %v26, 1.0
    %v29 = vpack.c.bf16 %v28, %v28
    %v30 = vld [vmem:[#allocation5] sm:$0xf]
    %v31 = vld [vmem:[#allocation5 + $0x8] sm:$0xf]
    %v34 = vunpack.c.l.b16 %v30
    %v35 = vunpack.c.l.b16 %v31
    %v36 = vpack.c.b16 %v35, %v34
    %vm37 = vcmask 39936
    %v39 = vsel %vm37, %v36, 0
    %vm41 = vcmask 1041408
    %vm42 = vcmask 1042432
    %v43 = vsel %vm41, 4294967295, 65535
    %v44 = vsel %vm42, %v43, 0
    %v46 = vand.u32 %v29, %v44
    %48 = vmatprep.subr.bf16.mxu0 0
    %49 = vmatpush1.bf16.msra.mxu0 %v46
    %50 = vmatprep.subr.bf16.mxu0 0
    %51 = vmatpush1.bf16.msra.mxu0 0
    %52 = vmatprep.subr.bf16.mxu0 0
    %53 = vmatpush1.bf16.msra.mxu0 0
    %54 = vmatprep.subr.bf16.mxu0 0
    %55 = vmatpush1.bf16.msra.mxu0 0
    %56 = vmatprep.subr.bf16.mxu0 0
    %57 = vmatpush1.bf16.msra.mxu0 0
    %58 = vmatprep.subr.bf16.mxu0 0
    %59 = vmatpush1.bf16.msra.mxu0 0
    %60 = vmatprep.subr.bf16.mxu0 0
    %61 = vmatpush1.bf16.msra.mxu0 0
    %62 = vmatprep.subr.bf16.mxu0 0
    %63 = vmatpush1.bf16.msra.mxu0 0
    %64 = vmatprep.subr.bf16.mxu0 0
    %65 = vmatpush1.bf16.msra.mxu0 0
    %66 = vmatprep.subr.bf16.mxu0 0
    %67 = vmatpush1.bf16.msra.mxu0 0
    %68 = vmatprep.subr.bf16.mxu0 0
    %69 = vmatpush1.bf16.msra.mxu0 0
    %70 = vmatprep.subr.bf16.mxu0 0
    %71 = vmatpush1.bf16.msra.mxu0 0
    %72 = vmatprep.subr.bf16.mxu0 0
    %73 = vmatpush1.bf16.msra.mxu0 0
    %74 = vmatprep.subr.bf16.mxu0 0
    %75 = vmatpush1.bf16.msra.mxu0 0
    %76 = vmatprep.subr.bf16.mxu0 0
    %77 = vmatpush1.bf16.msra.mxu0 0
    %78 = vmatprep.subr.bf16.mxu0 0
    %79 = vmatpush1.bf16.msra.mxu0 0
    %80 = vmatprep.mubr.bf16.mxu0 0
    %81 = vmatmul.mubr.bf16.gmra.mrb[0].mxu0 %v39
    %v82 = vpop.f32.mrb[0].mxu0
    %v83 = vadd.f32 0.0, %v82
    %v84 = vpop.f32.mrb[0].mxu0
    %v85 = vpop.f32.mrb[0].mxu0
    %v86 = vadd.f32 0.0, %v85
    %v87 = vpop.f32.mrb[0].mxu0
    %88 = vdwg.mxu0
    %v89 = vmax.f32 %v83, 0.0
    %v90 = vmax.f32 %v86, 0.0
    %v91 = vpack.c.bf16 %v90, %v89
    %v92 = vpack.c.bf16 1.0, 1.0
    %v93 = vld [vmem:[#allocation5 + $0x10] sm:$0xf]
    %v94 = vld [vmem:[#allocation5 + $0x18] sm:$0xf]
    %v97 = vunpack.c.l.b16 %v93
    %v98 = vunpack.c.l.b16 %v94
    %v99 = vpack.c.b16 %v98, %v97
    %vm100 = vcmask 138240
    %v102 = vsel %vm100, %v99, 0
    %vm104 = vcmask 1040384
    %v105 = vsel 0, 4294967295, 65535
    %v106 = vsel %vm104, %v105, 0
    %v108 = vand.u32 %v92, %v106
    %110 = vmatprep.subr.bf16.mxu0 0
    %111 = vmatpush1.bf16.msra.mxu0 %v91
    %112 = vmatprep.subr.bf16.mxu0 0
    %113 = vmatpush1.bf16.msra.mxu0 %v108
    %114 = vmatprep.subr.bf16.mxu0 0
    %115 = vmatpush1.bf16.msra.mxu0 0
    %116 = vmatprep.subr.bf16.mxu0 0
    %117 = vmatpush1.bf16.msra.mxu0 0
    %118 = vmatprep.subr.bf16.mxu0 0
    %119 = vmatpush1.bf16.msra.mxu0 0
    %120 = vmatprep.subr.bf16.mxu0 0
    %121 = vmatpush1.bf16.msra.mxu0 0
    %122 = vmatprep.subr.bf16.mxu0 0
    %123 = vmatpush1.bf16.msra.mxu0 0
    %124 = vmatprep.subr.bf16.mxu0 0
    %125 = vmatpush1.bf16.msra.mxu0 0
    %126 = vmatprep.subr.bf16.mxu0 0
    %127 = vmatpush1.bf16.msra.mxu0 0
    %128 = vmatprep.subr.bf16.mxu0 0
    %129 = vmatpush1.bf16.msra.mxu0 0
    %130 = vmatprep.subr.bf16.mxu0 0
    %131 = vmatpush1.bf16.msra.mxu0 0
    %132 = vmatprep.subr.bf16.mxu0 0
    %133 = vmatpush1.bf16.msra.mxu0 0
    %134 = vmatprep.subr.bf16.mxu0 0
    %135 = vmatpush1.bf16.msra.mxu0 0
    %136 = vmatprep.subr.bf16.mxu0 0
    %137 = vmatpush1.bf16.msra.mxu0 0
    %138 = vmatprep.subr.bf16.mxu0 0
    %139 = vmatpush1.bf16.msra.mxu0 0
    %140 = vmatprep.subr.bf16.mxu0 0
    %141 = vmatpush1.bf16.msra.mxu0 0
    %142 = vmatprep.mubr.bf16.mxu0 0
    %143 = vmatmul.mubr.bf16.gmra.mrb[0].mxu0 %v102
    %v144 = vpop.f32.mrb[0].mxu0
    %v145 = vadd.f32 0.0, %v144
    %v146 = vpop.f32.mrb[0].mxu0
    %v147 = vpop.f32.mrb[0].mxu0
    %v148 = vadd.f32 0.0, %v147
    %v149 = vpop.f32.mrb[0].mxu0
    %150 = vdwg.mxu0
    %v151 = vmax.f32 %v145, 0.0
    %v152 = vmax.f32 %v148, 0.0
    %153 = vst [vmem:[#allocation2] sm:$0xff] %v151
    %154 = vst [vmem:[#allocation2 + $0x8] sm:$0xff] %v152
    %v155 = vpack.c.bf16 %v152, %v151
    %v156 = vld [vmem:[#allocation5 + $0x20] sm:$0xf]
    %v157 = vld [vmem:[#allocation5 + $0x28] sm:$0xf]
    %v158 = vld [vmem:[#allocation5 + $0x30] sm:$0xf]
    %v159 = vld [vmem:[#allocation5 + $0x38] sm:$0xf]
    %v164 = vunpack.c.l.b16 %v156
    %v165 = vunpack.c.l.b16 %v157
    %v166 = vunpack.c.l.b16 %v158
    %v167 = vunpack.c.l.b16 %v159
    %v168 = vpack.c.b16 %v165, %v164
    %v169 = vpack.c.b16 %v167, %v166
    %v171 = vsel %vm100, %v168, 0
    %v174 = vsel %vm100, %v169, 0
    %176 = vmatprep.subr.bf16.mxu0 0
    %177 = vmatpush1.bf16.msra.mxu0 %v155
    %178 = vmatprep.subr.bf16.mxu0 0
    %179 = vmatpush1.bf16.msra.mxu0 %v108
    %180 = vmatprep.subr.bf16.mxu0 0
    %181 = vmatpush1.bf16.msra.mxu0 0
    %182 = vmatprep.subr.bf16.mxu0 0
    %183 = vmatpush1.bf16.msra.mxu0 0
    %184 = vmatprep.subr.bf16.mxu0 0
    %185 = vmatpush1.bf16.msra.mxu0 0
    %186 = vmatprep.subr.bf16.mxu0 0
    %187 = vmatpush1.bf16.msra.mxu0 0
    %188 = vmatprep.subr.bf16.mxu0 0
    %189 = vmatpush1.bf16.msra.mxu0 0
    %190 = vmatprep.subr.bf16.mxu0 0
    %191 = vmatpush1.bf16.msra.mxu0 0
    %192 = vmatprep.subr.bf16.mxu0 0
    %193 = vmatpush1.bf16.msra.mxu0 0
    %194 = vmatprep.subr.bf16.mxu0 0
    %195 = vmatpush1.bf16.msra.mxu0 0
    %196 = vmatprep.subr.bf16.mxu0 0
    %197 = vmatpush1.bf16.msra.mxu0 0
    %198 = vmatprep.subr.bf16.mxu0 0
    %199 = vmatpush1.bf16.msra.mxu0 0
    %200 = vmatprep.subr.bf16.mxu0 0
    %201 = vmatpush1.bf16.msra.mxu0 0
    %202 = vmatprep.subr.bf16.mxu0 0
    %203 = vmatpush1.bf16.msra.mxu0 0
    %204 = vmatprep.subr.bf16.mxu0 0
    %205 = vmatpush1.bf16.msra.mxu0 0
    %206 = vmatprep.subr.bf16.mxu0 0
    %207 = vmatpush1.bf16.msra.mxu0 0
    %208 = vmatprep.mubr.bf16.mxu0 0
    %209 = vmatmul.mubr.bf16.gmra.mrb[0].mxu0 %v171
    %v210 = vpop.f32.mrb[0].mxu0
    %v211 = vadd.f32 0.0, %v210
    %v212 = vpop.f32.mrb[0].mxu0
    %v213 = vpop.f32.mrb[0].mxu0
    %v214 = vadd.f32 0.0, %v213
    %v215 = vpop.f32.mrb[0].mxu0
    %216 = vmatprep.mubr.bf16.mxu0 0
    %217 = vmatmul.mubr.bf16.gmra.mrb[0].mxu0 %v174
    %v218 = vpop.f32.mrb[0].mxu0
    %v219 = vadd.f32 0.0, %v218
    %v220 = vpop.f32.mrb[0].mxu0
    %v221 = vpop.f32.mrb[0].mxu0
    %v222 = vadd.f32 0.0, %v221
    %v223 = vpop.f32.mrb[0].mxu0
    %224 = vdwg.mxu0
    %v225 = vmax.f32 %v211, 0.0
    %v226 = vmax.f32 %v214, 0.0
    %v227 = vmax.f32 %v219, 0.0
    %v228 = vmax.f32 %v222, 0.0
    %v229 = vpack.c.bf16 %v226, %v225
    %v230 = vpack.c.bf16 %v228, %v227
    %v231 = vld [vmem:[#allocation5 + $0x40] sm:$0xf]
    %v232 = vld [vmem:[#allocation5 + $0x48] sm:$0xf]
    %v233 = vld [vmem:[#allocation5 + $0x50] sm:$0xf]
    %v234 = vld [vmem:[#allocation5 + $0x58] sm:$0xf]
    %v239 = vunpack.c.l.b16 %v231
    %v240 = vunpack.c.l.b16 %v232
    %v241 = vunpack.c.l.b16 %v233
    %v242 = vunpack.c.l.b16 %v234
    %v243 = vpack.c.b16 %v240, %v239
    %v244 = vpack.c.b16 %v242, %v241
    %vm245 = vcmask 269312
    %v247 = vsel %vm245, %v243, 0
    %v250 = vsel %vm245, %v244, 0
    %252 = vmatprep.subr.bf16.mxu0 0
    %253 = vmatpush1.bf16.msra.mxu0 %v229
    %254 = vmatprep.subr.bf16.mxu0 0
    %255 = vmatpush1.bf16.msra.mxu0 %v230
    %256 = vmatprep.subr.bf16.mxu0 0
    %257 = vmatpush1.bf16.msra.mxu0 %v108
    %258 = vmatprep.subr.bf16.mxu0 0
    %259 = vmatpush1.bf16.msra.mxu0 0
    %260 = vmatprep.subr.bf16.mxu0 0
    %261 = vmatpush1.bf16.msra.mxu0 0
    %262 = vmatprep.subr.bf16.mxu0 0
    %263 = vmatpush1.bf16.msra.mxu0 0
    %264 = vmatprep.subr.bf16.mxu0 0
    %265 = vmatpush1.bf16.msra.mxu0 0
    %266 = vmatprep.subr.bf16.mxu0 0
    %267 = vmatpush1.bf16.msra.mxu0 0
    %268 = vmatprep.subr.bf16.mxu0 0
    %269 = vmatpush1.bf16.msra.mxu0 0
    %270 = vmatprep.subr.bf16.mxu0 0
    %271 = vmatpush1.bf16.msra.mxu0 0
    %272 = vmatprep.subr.bf16.mxu0 0
    %273 = vmatpush1.bf16.msra.mxu0 0
    %274 = vmatprep.subr.bf16.mxu0 0
    %275 = vmatpush1.bf16.msra.mxu0 0
    %276 = vmatprep.subr.bf16.mxu0 0
    %277 = vmatpush1.bf16.msra.mxu0 0
    %278 = vmatprep.subr.bf16.mxu0 0
    %279 = vmatpush1.bf16.msra.mxu0 0
    %280 = vmatprep.subr.bf16.mxu0 0
    %281 = vmatpush1.bf16.msra.mxu0 0
    %282 = vmatprep.subr.bf16.mxu0 0
    %283 = vmatpush1.bf16.msra.mxu0 0
    %284 = vmatprep.mubr.bf16.mxu0 0
    %285 = vmatmul.mubr.bf16.gmra.mrb[0].mxu0 %v247
    %v286 = vpop.f32.mrb[0].mxu0
    %v287 = vadd.f32 0.0, %v286
    %v288 = vpop.f32.mrb[0].mxu0
    %v289 = vpop.f32.mrb[0].mxu0
    %v290 = vadd.f32 0.0, %v289
    %v291 = vpop.f32.mrb[0].mxu0
    %292 = vmatprep.mubr.bf16.mxu0 0
    %293 = vmatmul.mubr.bf16.gmra.mrb[0].mxu0 %v250
    %v294 = vpop.f32.mrb[0].mxu0
    %v295 = vadd.f32 0.0, %v294
    %v296 = vpop.f32.mrb[0].mxu0
    %v297 = vpop.f32.mrb[0].mxu0
    %v298 = vadd.f32 0.0, %v297
    %v299 = vpop.f32.mrb[0].mxu0
    %300 = vdwg.mxu0
    %v301 = vmax.f32 %v287, 0.0
    %v302 = vmax.f32 %v290, 0.0
    %v303 = vmax.f32 %v295, 0.0
    %v304 = vmax.f32 %v298, 0.0
    %v305 = vpack.c.bf16 %v302, %v301
    %v306 = vpack.c.bf16 %v304, %v303
    %v307 = vld [vmem:[#allocation5 + $0x60] sm:$0xf]
    %v308 = vld [vmem:[#allocation5 + $0x68] sm:$0xf]
    %v309 = vld [vmem:[#allocation5 + $0x70] sm:$0xf]
    %v310 = vld [vmem:[#allocation5 + $0x78] sm:$0xf]
    %v311 = vld [vmem:[#allocation5 + $0x80] sm:$0xf]
    %v312 = vld [vmem:[#allocation5 + $0x88] sm:$0xf]
    %v313 = vld [vmem:[#allocation5 + $0x90] sm:$0xf]
    %v314 = vld [vmem:[#allocation5 + $0x98] sm:$0xf]
    %v315 = vld [vmem:[#allocation5 + $0xa0] sm:$0xf]
    %v316 = vld [vmem:[#allocation5 + $0xa8] sm:$0xf]
    %v317 = vld [vmem:[#allocation5 + $0xb0] sm:$0xf]
    %v318 = vld [vmem:[#allocation5 + $0xb8] sm:$0xf]
    %v331 = vunpack.c.l.b16 %v307
    %v332 = vunpack.c.l.b16 %v308
    %v333 = vunpack.c.l.b16 %v309
    %v334 = vunpack.c.l.b16 %v310
    %v335 = vunpack.c.l.b16 %v311
    %v336 = vunpack.c.l.b16 %v312
    %v337 = vunpack.c.l.b16 %v313
    %v338 = vunpack.c.l.b16 %v314
    %v339 = vunpack.c.l.b16 %v315
    %v340 = vunpack.c.l.b16 %v316
    %v341 = vunpack.c.l.b16 %v317
    %v342 = vunpack.c.l.b16 %v318
    %v343 = vpack.c.b16 %v332, %v331
    %v344 = vpack.c.b16 %v334, %v333
    %v345 = vpack.c.b16 %v336, %v335
    %v346 = vpack.c.b16 %v338, %v337
    %v347 = vpack.c.b16 %v340, %v339
    %v348 = vpack.c.b16 %v342, %v341
    %v350 = vsel %vm245, %v343, 0
    %v353 = vsel %vm245, %v344, 0
    %v356 = vsel %vm245, %v345, 0
    %v359 = vsel %vm245, %v346, 0
    %v362 = vsel %vm245, %v347, 0
    %v365 = vsel %vm245, %v348, 0
    %367 = vmatprep.subr.bf16.mxu0 0
    %368 = vmatpush1.bf16.msra.mxu0 %v305
    %369 = vmatprep.subr.bf16.mxu0 0
    %370 = vmatpush1.bf16.msra.mxu0 %v306
    %371 = vmatprep.subr.bf16.mxu0 0
    %372 = vmatpush1.bf16.msra.mxu0 %v108
    %373 = vmatprep.subr.bf16.mxu0 0
    %374 = vmatpush1.bf16.msra.mxu0 0
    %375 = vmatprep.subr.bf16.mxu0 0
    %376 = vmatpush1.bf16.msra.mxu0 0
    %377 = vmatprep.subr.bf16.mxu0 0
    %378 = vmatpush1.bf16.msra.mxu0 0
    %379 = vmatprep.subr.bf16.mxu0 0
    %380 = vmatpush1.bf16.msra.mxu0 0
    %381 = vmatprep.subr.bf16.mxu0 0
    %382 = vmatpush1.bf16.msra.mxu0 0
    %383 = vmatprep.subr.bf16.mxu0 0
    %384 = vmatpush1.bf16.msra.mxu0 0
    %385 = vmatprep.subr.bf16.mxu0 0
    %386 = vmatpush1.bf16.msra.mxu0 0
    %387 = vmatprep.subr.bf16.mxu0 0
    %388 = vmatpush1.bf16.msra.mxu0 0
    %389 = vmatprep.subr.bf16.mxu0 0
    %390 = vmatpush1.bf16.msra.mxu0 0
    %391 = vmatprep.subr.bf16.mxu0 0
    %392 = vmatpush1.bf16.msra.mxu0 0
    %393 = vmatprep.subr.bf16.mxu0 0
    %394 = vmatpush1.bf16.msra.mxu0 0
    %395 = vmatprep.subr.bf16.mxu0 0
    %396 = vmatpush1.bf16.msra.mxu0 0
    %397 = vmatprep.subr.bf16.mxu0 0
    %398 = vmatpush1.bf16.msra.mxu0 0
    %399 = vmatprep.mubr.bf16.mxu0 0
    %400 = vmatmul.mubr.bf16.gmra.mrb[0].mxu0 %v350
    %v401 = vpop.f32.mrb[0].mxu0
    %v402 = vadd.f32 0.0, %v401
    %v403 = vpop.f32.mrb[0].mxu0
    %v404 = vpop.f32.mrb[0].mxu0
    %v405 = vadd.f32 0.0, %v404
    %v406 = vpop.f32.mrb[0].mxu0
    %407 = vmatprep.mubr.bf16.mxu0 0
    %408 = vmatmul.mubr.bf16.gmra.mrb[0].mxu0 %v353
    %v409 = vpop.f32.mrb[0].mxu0
    %v410 = vadd.f32 0.0, %v409
    %v411 = vpop.f32.mrb[0].mxu0
    %v412 = vpop.f32.mrb[0].mxu0
    %v413 = vadd.f32 0.0, %v412
    %v414 = vpop.f32.mrb[0].mxu0
    %415 = vmatprep.mubr.bf16.mxu0 0
    %416 = vmatmul.mubr.bf16.gmra.mrb[0].mxu0 %v356
    %v417 = vpop.f32.mrb[0].mxu0
    %v418 = vadd.f32 0.0, %v417
    %v419 = vpop.f32.mrb[0].mxu0
    %v420 = vpop.f32.mrb[0].mxu0
    %v421 = vadd.f32 0.0, %v420
    %v422 = vpop.f32.mrb[0].mxu0
    %423 = vmatprep.mubr.bf16.mxu0 0
    %424 = vmatmul.mubr.bf16.gmra.mrb[0].mxu0 %v359
    %v425 = vpop.f32.mrb[0].mxu0
    %v426 = vadd.f32 0.0, %v425
    %v427 = vpop.f32.mrb[0].mxu0
    %v428 = vpop.f32.mrb[0].mxu0
    %v429 = vadd.f32 0.0, %v428
    %v430 = vpop.f32.mrb[0].mxu0
    %431 = vmatprep.mubr.bf16.mxu0 0
    %432 = vmatmul.mubr.bf16.gmra.mrb[0].mxu0 %v362
    %v433 = vpop.f32.mrb[0].mxu0
    %v434 = vadd.f32 0.0, %v433
    %v435 = vpop.f32.mrb[0].mxu0
    %v436 = vpop.f32.mrb[0].mxu0
    %v437 = vadd.f32 0.0, %v436
    %v438 = vpop.f32.mrb[0].mxu0
    %439 = vmatprep.mubr.bf16.mxu0 0
    %440 = vmatmul.mubr.bf16.gmra.mrb[0].mxu0 %v365
    %v441 = vpop.f32.mrb[0].mxu0
    %v442 = vadd.f32 0.0, %v441
    %v443 = vpop.f32.mrb[0].mxu0
    %v444 = vpop.f32.mrb[0].mxu0
    %v445 = vadd.f32 0.0, %v444
    %v446 = vpop.f32.mrb[0].mxu0
    %447 = vdwg.mxu0
    %448 = vxpose.xlu0.b32.start [1/16] %v402, 128
    %449 = vxpose.xlu0.b32.cont [2/16] %v405, 128
    %450 = vxpose.xlu0.b32.cont [3/16] %v410, 128
    %451 = vxpose.xlu0.b32.cont [4/16] %v413, 128
    %452 = vxpose.xlu0.b32.cont [5/16] 0.0, 128
    %453 = vxpose.xlu0.b32.cont [6/16] 0.0, 128
    %454 = vxpose.xlu0.b32.cont [7/16] 0.0, 128
    %455 = vxpose.xlu0.b32.cont [8/16] 0.0, 128
    %456 = vxpose.xlu0.b32.cont [9/16] 0.0, 128
    %457 = vxpose.xlu0.b32.cont [10/16] 0.0, 128
    %458 = vxpose.xlu0.b32.cont [11/16] 0.0, 128
    %459 = vxpose.xlu0.b32.cont [12/16] 0.0, 128
    %460 = vxpose.xlu0.b32.cont [13/16] 0.0, 128
    %461 = vxpose.xlu0.b32.cont [14/16] 0.0, 128
    %462 = vxpose.xlu0.b32.cont [15/16] 0.0, 128
    %463 = vxpose.xlu0.b32.end [16/16] 0.0, 128
    %v464 = vpop.trf.xlu0
    %v465 = vpop.trf.xlu0
    %v466 = vpop.trf.xlu0
    %v467 = vpop.trf.xlu0
    %v468 = vpop.trf.xlu0
    %v469 = vpop.trf.xlu0
    %v470 = vpop.trf.xlu0
    %v471 = vpop.trf.xlu0
    %v472 = vpop.trf.xlu0
    %v473 = vpop.trf.xlu0
    %v474 = vpop.trf.xlu0
    %v475 = vpop.trf.xlu0
    %v476 = vpop.trf.xlu0
    %v477 = vpop.trf.xlu0
    %v478 = vpop.trf.xlu0
    %v479 = vpop.trf.xlu0
    %v480 = vpack.c.bf16 %v465, %v464
    %v481 = vpack.c.bf16 %v467, %v466
    %v482 = vpack.c.bf16 %v469, %v468
    %v483 = vpack.c.bf16 %v471, %v470
    %v484 = vpack.c.bf16 %v473, %v472
    %v485 = vpack.c.bf16 %v475, %v474
    %v486 = vpack.c.bf16 %v477, %v476
    %v487 = vpack.c.bf16 %v479, %v478
    %v488 = vpack.c.bf16 %v421, %v418
    %v489 = vpack.c.bf16 %v429, %v426
    %v490 = vpack.c.bf16 %v437, %v434
    %v491 = vpack.c.bf16 %v445, %v442
    %vm492 = vcmask 261120
    %v494 = vsel %vm492, %v480, 0
    %v497 = vsel %vm492, %v481, 0
    %v500 = vsel %vm492, %v482, 0
    %v503 = vsel %vm492, %v483, 0
    %v506 = vsel %vm492, %v484, 0
    %v509 = vsel %vm492, %v485, 0
    %v512 = vsel %vm492, %v486, 0
    %v515 = vsel %vm492, %v487, 0
    %517 = vmatprep.subr.bf16.mxu0 0
    %518 = vmatpush1.bf16.msra.mxu0 %v488
    %519 = vmatprep.subr.bf16.mxu0 0
    %520 = vmatpush1.bf16.msra.mxu0 %v489
    %521 = vmatprep.subr.bf16.mxu0 0
    %522 = vmatpush1.bf16.msra.mxu0 0
    %523 = vmatprep.subr.bf16.mxu0 0
    %524 = vmatpush1.bf16.msra.mxu0 0
    %525 = vmatprep.subr.bf16.mxu0 0
    %526 = vmatpush1.bf16.msra.mxu0 0
    %527 = vmatprep.subr.bf16.mxu0 0
    %528 = vmatpush1.bf16.msra.mxu0 0
    %529 = vmatprep.subr.bf16.mxu0 0
    %530 = vmatpush1.bf16.msra.mxu0 0
    %531 = vmatprep.subr.bf16.mxu0 0
    %532 = vmatpush1.bf16.msra.mxu0 0
    %533 = vmatprep.subr.bf16.mxu0 0
    %534 = vmatpush1.bf16.msra.mxu0 0
    %535 = vmatprep.subr.bf16.mxu0 0
    %536 = vmatpush1.bf16.msra.mxu0 0
    %537 = vmatprep.subr.bf16.mxu0 0
    %538 = vmatpush1.bf16.msra.mxu0 0
    %539 = vmatprep.subr.bf16.mxu0 0
    %540 = vmatpush1.bf16.msra.mxu0 0
    %541 = vmatprep.subr.bf16.mxu0 0
    %542 = vmatpush1.bf16.msra.mxu0 0
    %543 = vmatprep.subr.bf16.mxu0 0
    %544 = vmatpush1.bf16.msra.mxu0 0
    %545 = vmatprep.subr.bf16.mxu0 0
    %546 = vmatpush1.bf16.msra.mxu0 0
    %547 = vmatprep.subr.bf16.mxu0 0
    %548 = vmatpush1.bf16.msra.mxu0 0
    %549 = vmatprep.mubr.bf16.mxu0 0
    %550 = vmatmul.mubr.bf16.gmra.mrb[0].mxu0 %v494
    %v551 = vpop.f32.mrb[0].mxu0
    %v552 = vadd.f32 0.0, %v551
    %v553 = vpop.f32.mrb[0].mxu0
    %v554 = vpop.f32.mrb[0].mxu0
    %v555 = vadd.f32 0.0, %v554
    %v556 = vpop.f32.mrb[0].mxu0
    %557 = vmatprep.mubr.bf16.mxu0 0
    %558 = vmatmul.mubr.bf16.gmra.mrb[0].mxu0 %v497
    %v559 = vpop.f32.mrb[0].mxu0
    %v560 = vadd.f32 0.0, %v559
    %v561 = vpop.f32.mrb[0].mxu0
    %v562 = vpop.f32.mrb[0].mxu0
    %v563 = vadd.f32 0.0, %v562
    %v564 = vpop.f32.mrb[0].mxu0
    %565 = vmatprep.mubr.bf16.mxu0 0
    %566 = vmatmul.mubr.bf16.gmra.mrb[0].mxu0 %v500
    %v567 = vpop.f32.mrb[0].mxu0
    %v568 = vadd.f32 0.0, %v567
    %v569 = vpop.f32.mrb[0].mxu0
    %v570 = vpop.f32.mrb[0].mxu0
    %v571 = vadd.f32 0.0, %v570
    %v572 = vpop.f32.mrb[0].mxu0
    %573 = vmatprep.mubr.bf16.mxu0 0
    %574 = vmatmul.mubr.bf16.gmra.mrb[0].mxu0 %v503
    %v575 = vpop.f32.mrb[0].mxu0
    %v576 = vadd.f32 0.0, %v575
    %v577 = vpop.f32.mrb[0].mxu0
    %v578 = vpop.f32.mrb[0].mxu0
    %v579 = vadd.f32 0.0, %v578
    %v580 = vpop.f32.mrb[0].mxu0
    %581 = vmatprep.mubr.bf16.mxu0 0
    %582 = vmatmul.mubr.bf16.gmra.mrb[0].mxu0 %v506
    %v583 = vpop.f32.mrb[0].mxu0
    %v584 = vadd.f32 0.0, %v583
    %v585 = vpop.f32.mrb[0].mxu0
    %v586 = vpop.f32.mrb[0].mxu0
    %v587 = vadd.f32 0.0, %v586
    %v588 = vpop.f32.mrb[0].mxu0
    %589 = vmatprep.mubr.bf16.mxu0 0
    %590 = vmatmul.mubr.bf16.gmra.mrb[0].mxu0 %v509
    %v591 = vpop.f32.mrb[0].mxu0
    %v592 = vadd.f32 0.0, %v591
    %v593 = vpop.f32.mrb[0].mxu0
    %v594 = vpop.f32.mrb[0].mxu0
    %v595 = vadd.f32 0.0, %v594
    %v596 = vpop.f32.mrb[0].mxu0
    %597 = vmatprep.mubr.bf16.mxu0 0
    %598 = vmatmul.mubr.bf16.gmra.mrb[0].mxu0 %v512
    %v599 = vpop.f32.mrb[0].mxu0
    %v600 = vadd.f32 0.0, %v599
    %v601 = vpop.f32.mrb[0].mxu0
    %v602 = vpop.f32.mrb[0].mxu0
    %v603 = vadd.f32 0.0, %v602
    %v604 = vpop.f32.mrb[0].mxu0
    %605 = vmatprep.mubr.bf16.mxu0 0
    %606 = vmatmul.mubr.bf16.gmra.mrb[0].mxu0 %v515
    %v607 = vpop.f32.mrb[0].mxu0
    %v608 = vadd.f32 0.0, %v607
    %v609 = vpop.f32.mrb[0].mxu0
    %v610 = vpop.f32.mrb[0].mxu0
    %v611 = vadd.f32 0.0, %v610
    %v612 = vpop.f32.mrb[0].mxu0
    %613 = vdwg.mxu0
    %614 = vmax.xlane.f32.xlu0 %v552
    %v615 = vpop.xlane.xlu0 %614
    %616 = vmax.xlane.f32.xlu0 %v555
    %v617 = vpop.xlane.xlu0 %616
    %618 = vmax.xlane.f32.xlu0 %v560
    %v619 = vpop.xlane.xlu0 %618
    %620 = vmax.xlane.f32.xlu0 %v563
    %v621 = vpop.xlane.xlu0 %620
    %622 = vmax.xlane.f32.xlu0 %v568
    %v623 = vpop.xlane.xlu0 %622
    %624 = vmax.xlane.f32.xlu0 %v571
    %v625 = vpop.xlane.xlu0 %624
    %626 = vmax.xlane.f32.xlu0 %v576
    %v627 = vpop.xlane.xlu0 %626
    %628 = vmax.xlane.f32.xlu0 %v579
    %v629 = vpop.xlane.xlu0 %628
    %630 = vmax.xlane.f32.xlu0 %v584
    %v631 = vpop.xlane.xlu0 %630
    %632 = vmax.xlane.f32.xlu0 %v587
    %v633 = vpop.xlane.xlu0 %632
    %634 = vmax.xlane.f32.xlu0 %v592
    %v635 = vpop.xlane.xlu0 %634
    %636 = vmax.xlane.f32.xlu0 %v595
    %v637 = vpop.xlane.xlu0 %636
    %638 = vmax.xlane.f32.xlu0 %v600
    %v639 = vpop.xlane.xlu0 %638
    %640 = vmax.xlane.f32.xlu0 %v603
    %v641 = vpop.xlane.xlu0 %640
    %642 = vmax.xlane.f32.xlu0 %v608
    %v643 = vpop.xlane.xlu0 %642
    %644 = vmax.xlane.f32.xlu0 %v611
    %v645 = vpop.xlane.xlu0 %644
    %v646 = vsub.f32 %v552, %v615
    %v647 = vsub.f32 %v555, %v617
    %v648 = vsub.f32 %v560, %v619
    %v649 = vsub.f32 %v563, %v621
    %v650 = vsub.f32 %v568, %v623
    %v651 = vsub.f32 %v571, %v625
    %v652 = vsub.f32 %v576, %v627
    %v653 = vsub.f32 %v579, %v629
    %v654 = vsub.f32 %v584, %v631
    %v655 = vsub.f32 %v587, %v633
    %v656 = vsub.f32 %v592, %v635
    %v657 = vsub.f32 %v595, %v637
    %v658 = vsub.f32 %v600, %v639
    %v659 = vsub.f32 %v603, %v641
    %v660 = vsub.f32 %v608, %v643
    %v661 = vsub.f32 %v611, %v645
    %v662 = vmul.f32 %v646, 1.442695
    %v663 = vpow.pop %v662
    %v664 = vmul.f32 %v647, 1.442695
    %v665 = vpow.pop %v664
    %v666 = vmul.f32 %v648, 1.442695
    %v667 = vpow.pop %v666
    %v668 = vmul.f32 %v649, 1.442695
    %v669 = vpow.pop %v668
    %v670 = vmul.f32 %v650, 1.442695
    %v671 = vpow.pop %v670
    %v672 = vmul.f32 %v651, 1.442695
    %v673 = vpow.pop %v672
    %v674 = vmul.f32 %v652, 1.442695
    %v675 = vpow.pop %v674
    %v676 = vmul.f32 %v653, 1.442695
    %v677 = vpow.pop %v676
    %v678 = vmul.f32 %v654, 1.442695
    %v679 = vpow.pop %v678
    %v680 = vmul.f32 %v655, 1.442695
    %v681 = vpow.pop %v680
    %v682 = vmul.f32 %v656, 1.442695
    %v683 = vpow.pop %v682
    %v684 = vmul.f32 %v657, 1.442695
    %v685 = vpow.pop %v684
    %v686 = vmul.f32 %v658, 1.442695
    %v687 = vpow.pop %v686
    %v688 = vmul.f32 %v659, 1.442695
    %v689 = vpow.pop %v688
    %v690 = vmul.f32 %v660, 1.442695
    %v691 = vpow.pop %v690
    %v692 = vmul.f32 %v661, 1.442695
    %v693 = vpow.pop %v692
    %694 = vadd.xlane.f32.xlu0 %v663
    %v695 = vpop.xlane.xlu0 %694
    %696 = vadd.xlane.f32.xlu0 %v665
    %v697 = vpop.xlane.xlu0 %696
    %698 = vadd.xlane.f32.xlu0 %v667
    %v699 = vpop.xlane.xlu0 %698
    %700 = vadd.xlane.f32.xlu0 %v669
    %v701 = vpop.xlane.xlu0 %700
    %702 = vadd.xlane.f32.xlu0 %v671
    %v703 = vpop.xlane.xlu0 %702
    %704 = vadd.xlane.f32.xlu0 %v673
    %v705 = vpop.xlane.xlu0 %704
    %706 = vadd.xlane.f32.xlu0 %v675
    %v707 = vpop.xlane.xlu0 %706
    %708 = vadd.xlane.f32.xlu0 %v677
    %v709 = vpop.xlane.xlu0 %708
    %710 = vadd.xlane.f32.xlu0 %v679
    %v711 = vpop.xlane.xlu0 %710
    %712 = vadd.xlane.f32.xlu0 %v681
    %v713 = vpop.xlane.xlu0 %712
    %714 = vadd.xlane.f32.xlu0 %v683
    %v715 = vpop.xlane.xlu0 %714
    %716 = vadd.xlane.f32.xlu0 %v685
    %v717 = vpop.xlane.xlu0 %716
    %718 = vadd.xlane.f32.xlu0 %v687
    %v719 = vpop.xlane.xlu0 %718
    %720 = vadd.xlane.f32.xlu0 %v689
    %v721 = vpop.xlane.xlu0 %720
    %722 = vadd.xlane.f32.xlu0 %v691
    %v723 = vpop.xlane.xlu0 %722
    %724 = vadd.xlane.f32.xlu0 %v693
    %v725 = vpop.xlane.xlu0 %724
    %v726 = vrcp.pop %v695
    %v727 = vmul.f32 %v663, %v726
    %v728 = vrcp.pop %v697
    %v729 = vmul.f32 %v665, %v728
    %v730 = vrcp.pop %v699
    %v731 = vmul.f32 %v667, %v730
    %v732 = vrcp.pop %v701
    %v733 = vmul.f32 %v669, %v732
    %v734 = vrcp.pop %v703
    %v735 = vmul.f32 %v671, %v734
    %v736 = vrcp.pop %v705
    %v737 = vmul.f32 %v673, %v736
    %v738 = vrcp.pop %v707
    %v739 = vmul.f32 %v675, %v738
    %v740 = vrcp.pop %v709
    %v741 = vmul.f32 %v677, %v740
    %v742 = vrcp.pop %v711
    %v743 = vmul.f32 %v679, %v742
    %v744 = vrcp.pop %v713
    %v745 = vmul.f32 %v681, %v744
    %v746 = vrcp.pop %v715
    %v747 = vmul.f32 %v683, %v746
    %v748 = vrcp.pop %v717
    %v749 = vmul.f32 %v685, %v748
    %v750 = vrcp.pop %v719
    %v751 = vmul.f32 %v687, %v750
    %v752 = vrcp.pop %v721
    %v753 = vmul.f32 %v689, %v752
    %v754 = vrcp.pop %v723
    %v755 = vmul.f32 %v691, %v754
    %v756 = vrcp.pop %v725
    %v757 = vmul.f32 %v693, %v756
    %v758 = vpack.c.bf16 %v729, %v727
    %v759 = vpack.c.bf16 %v733, %v731
    %v760 = vpack.c.bf16 %v737, %v735
    %v761 = vpack.c.bf16 %v741, %v739
    %v762 = vpack.c.bf16 %v745, %v743
    %v763 = vpack.c.bf16 %v749, %v747
    %v764 = vpack.c.bf16 %v753, %v751
    %v765 = vpack.c.bf16 %v757, %v755
    %766 = vmatprep.subr.bf16.mxu0 0
    %767 = vmatpush1.bf16.xpose.msra.mxu0 %v758
    %768 = vmatprep.subr.bf16.mxu0 0
    %769 = vmatpush1.bf16.xpose.msra.mxu0 %v759
    %770 = vmatprep.subr.bf16.mxu0 0
    %771 = vmatpush1.bf16.xpose.msra.mxu0 %v760
    %772 = vmatprep.subr.bf16.mxu0 0
    %773 = vmatpush1.bf16.xpose.msra.mxu0 %v761
    %774 = vmatprep.subr.bf16.mxu0 0
    %775 = vmatpush1.bf16.xpose.msra.mxu0 %v762
    %776 = vmatprep.subr.bf16.mxu0 0
    %777 = vmatpush1.bf16.xpose.msra.mxu0 %v763
    %778 = vmatprep.subr.bf16.mxu0 0
    %779 = vmatpush1.bf16.xpose.msra.mxu0 %v764
    %780 = vmatprep.subr.bf16.mxu0 0
    %781 = vmatpush1.bf16.xpose.msra.mxu0 %v765
    %782 = vmatprep.subr.bf16.mxu0 0
    %783 = vmatpush1.bf16.xpose.msra.mxu0 0
    %784 = vmatprep.subr.bf16.mxu0 0
    %785 = vmatpush1.bf16.xpose.msra.mxu0 0
    %786 = vmatprep.subr.bf16.mxu0 0
    %787 = vmatpush1.bf16.xpose.msra.mxu0 0
    %788 = vmatprep.subr.bf16.mxu0 0
    %789 = vmatpush1.bf16.xpose.msra.mxu0 0
    %790 = vmatprep.subr.bf16.mxu0 0
    %791 = vmatpush1.bf16.xpose.msra.mxu0 0
    %792 = vmatprep.subr.bf16.mxu0 0
    %793 = vmatpush1.bf16.xpose.msra.mxu0 0
    %794 = vmatprep.subr.bf16.mxu0 0
    %795 = vmatpush1.bf16.xpose.msra.mxu0 0
    %796 = vmatprep.subr.bf16.mxu0 0
    %797 = vmatpush1.bf16.xpose.msra.mxu0 0
    %798 = vmatprep.mubr.bf16.mxu0 0
    %799 = vmatmul.mubr.bf16.gmra.mrb[0].mxu0 %v490
    %v800 = vpop.f32.mrb[0].mxu0
    %v801 = vadd.f32 0.0, %v800
    %v802 = vpop.f32.mrb[0].mxu0
    %v803 = vpop.f32.mrb[0].mxu0
    %v804 = vadd.f32 0.0, %v803
    %v805 = vpop.f32.mrb[0].mxu0
    %806 = vmatprep.mubr.bf16.mxu0 0
    %807 = vmatmul.mubr.bf16.gmra.mrb[0].mxu0 %v491
    %v808 = vpop.f32.mrb[0].mxu0
    %v809 = vadd.f32 0.0, %v808
    %v810 = vpop.f32.mrb[0].mxu0
    %v811 = vpop.f32.mrb[0].mxu0
    %v812 = vadd.f32 0.0, %v811
    %v813 = vpop.f32.mrb[0].mxu0
    %814 = vdwg.mxu0
    %v815 = vpack.c.bf16 %v804, %v801
    %v816 = vpack.c.bf16 %v812, %v809
    %v817 = vld [vmem:[#allocation5 + $0xc0] sm:$0xf]
    %v818 = vld [vmem:[#allocation5 + $0xc8] sm:$0xf]
    %v819 = vld [vmem:[#allocation5 + $0xd0] sm:$0xf]
    %v820 = vld [vmem:[#allocation5 + $0xd8] sm:$0xf]
    %v825 = vunpack.c.l.b16 %v817
    %v826 = vunpack.c.l.b16 %v818
    %v827 = vunpack.c.l.b16 %v819
    %v828 = vunpack.c.l.b16 %v820
    %v829 = vpack.c.b16 %v826, %v825
    %v830 = vpack.c.b16 %v828, %v827
    %v832 = vsel %vm245, %v829, 0
    %v835 = vsel %vm245, %v830, 0
    %837 = vmatprep.subr.bf16.mxu0 0
    %838 = vmatpush1.bf16.msra.mxu0 %v815
    %839 = vmatprep.subr.bf16.mxu0 0
    %840 = vmatpush1.bf16.msra.mxu0 %v816
    %841 = vmatprep.subr.bf16.mxu0 0
    %842 = vmatpush1.bf16.msra.mxu0 %v108
    %843 = vmatprep.subr.bf16.mxu0 0
    %844 = vmatpush1.bf16.msra.mxu0 0
    %845 = vmatprep.subr.bf16.mxu0 0
    %846 = vmatpush1.bf16.msra.mxu0 0
    %847 = vmatprep.subr.bf16.mxu0 0
    %848 = vmatpush1.bf16.msra.mxu0 0
    %849 = vmatprep.subr.bf16.mxu0 0
    %850 = vmatpush1.bf16.msra.mxu0 0
    %851 = vmatprep.subr.bf16.mxu0 0
    %852 = vmatpush1.bf16.msra.mxu0 0
    %853 = vmatprep.subr.bf16.mxu0 0
    %854 = vmatpush1.bf16.msra.mxu0 0
    %855 = vmatprep.subr.bf16.mxu0 0
    %856 = vmatpush1.bf16.msra.mxu0 0
    %857 = vmatprep.subr.bf16.mxu0 0
    %858 = vmatpush1.bf16.msra.mxu0 0
    %859 = vmatprep.subr.bf16.mxu0 0
    %860 = vmatpush1.bf16.msra.mxu0 0
    %861 = vmatprep.subr.bf16.mxu0 0
    %862 = vmatpush1.bf16.msra.mxu0 0
    %863 = vmatprep.subr.bf16.mxu0 0
    %864 = vmatpush1.bf16.msra.mxu0 0
    %865 = vmatprep.subr.bf16.mxu0 0
    %866 = vmatpush1.bf16.msra.mxu0 0
    %867 = vmatprep.subr.bf16.mxu0 0
    %868 = vmatpush1.bf16.msra.mxu0 0
    %869 = vmatprep.mubr.bf16.mxu0 0
    %870 = vmatmul.mubr.bf16.gmra.mrb[0].mxu0 %v832
    %v871 = vpop.f32.mrb[0].mxu0
    %v872 = vadd.f32 %v301, %v871
    %v873 = vpop.f32.mrb[0].mxu0
    %v874 = vpop.f32.mrb[0].mxu0
    %v875 = vadd.f32 %v302, %v874
    %v876 = vpop.f32.mrb[0].mxu0
    %877 = vmatprep.mubr.bf16.mxu0 0
    %878 = vmatmul.mubr.bf16.gmra.mrb[0].mxu0 %v835
    %v879 = vpop.f32.mrb[0].mxu0
    %v880 = vadd.f32 %v303, %v879
    %v881 = vpop.f32.mrb[0].mxu0
    %v882 = vpop.f32.mrb[0].mxu0
    %v883 = vadd.f32 %v304, %v882
    %v884 = vpop.f32.mrb[0].mxu0
    %885 = vdwg.mxu0
    %v886 = vpack.c.bf16 %v875, %v872
    %v887 = vpack.c.bf16 %v883, %v880
    %v888 = vld [vmem:[#allocation5 + $0xe0] sm:$0xf]
    %v889 = vld [vmem:[#allocation5 + $0xe8] sm:$0xf]
    %v890 = vld [vmem:[#allocation5 + $0xf0] sm:$0xf]
    %v891 = vld [vmem:[#allocation5 + $0xf8] sm:$0xf]
    %v896 = vunpack.c.l.b16 %v888
    %v897 = vunpack.c.l.b16 %v889
    %v898 = vunpack.c.l.b16 %v890
    %v899 = vunpack.c.l.b16 %v891
    %v900 = vpack.c.b16 %v897, %v896
    %v901 = vpack.c.b16 %v899, %v898
    %v903 = vsel %vm245, %v900, 0
    %v906 = vsel %vm245, %v901, 0
    %908 = vmatprep.subr.bf16.mxu0 0
    %909 = vmatpush1.bf16.msra.mxu0 %v886
    %910 = vmatprep.subr.bf16.mxu0 0
    %911 = vmatpush1.bf16.msra.mxu0 %v887
    %912 = vmatprep.subr.bf16.mxu0 0
    %913 = vmatpush1.bf16.msra.mxu0 %v108
    %914 = vmatprep.subr.bf16.mxu0 0
    %915 = vmatpush1.bf16.msra.mxu0 0
    %916 = vmatprep.subr.bf16.mxu0 0
    %917 = vmatpush1.bf16.msra.mxu0 0
    %918 = vmatprep.subr.bf16.mxu0 0
    %919 = vmatpush1.bf16.msra.mxu0 0
    %920 = vmatprep.subr.bf16.mxu0 0
    %921 = vmatpush1.bf16.msra.mxu0 0
    %922 = vmatprep.subr.bf16.mxu0 0
    %923 = vmatpush1.bf16.msra.mxu0 0
    %924 = vmatprep.subr.bf16.mxu0 0
    %925 = vmatpush1.bf16.msra.mxu0 0
    %926 = vmatprep.subr.bf16.mxu0 0
    %927 = vmatpush1.bf16.msra.mxu0 0
    %928 = vmatprep.subr.bf16.mxu0 0
    %929 = vmatpush1.bf16.msra.mxu0 0
    %930 = vmatprep.subr.bf16.mxu0 0
    %931 = vmatpush1.bf16.msra.mxu0 0
    %932 = vmatprep.subr.bf16.mxu0 0
    %933 = vmatpush1.bf16.msra.mxu0 0
    %934 = vmatprep.subr.bf16.mxu0 0
    %935 = vmatpush1.bf16.msra.mxu0 0
    %936 = vmatprep.subr.bf16.mxu0 0
    %937 = vmatpush1.bf16.msra.mxu0 0
    %938 = vmatprep.subr.bf16.mxu0 0
    %939 = vmatpush1.bf16.msra.mxu0 0
    %940 = vmatprep.mubr.bf16.mxu0 0
    %941 = vmatmul.mubr.bf16.gmra.mrb[0].mxu0 %v903
    %v942 = vpop.f32.mrb[0].mxu0
    %v943 = vadd.f32 0.0, %v942
    %v944 = vpop.f32.mrb[0].mxu0
    %v945 = vpop.f32.mrb[0].mxu0
    %v946 = vadd.f32 0.0, %v945
    %v947 = vpop.f32.mrb[0].mxu0
    %948 = vmatprep.mubr.bf16.mxu0 0
    %949 = vmatmul.mubr.bf16.gmra.mrb[0].mxu0 %v906
    %v950 = vpop.f32.mrb[0].mxu0
    %v951 = vadd.f32 0.0, %v950
    %v952 = vpop.f32.mrb[0].mxu0
    %v953 = vpop.f32.mrb[0].mxu0
    %v954 = vadd.f32 0.0, %v953
    %v955 = vpop.f32.mrb[0].mxu0
    %956 = vdwg.mxu0
    %957 = vst [vmem:[#allocation3] sm:$0xff] %v943
    %958 = vst [vmem:[#allocation3 + $0x8] sm:$0xff] %v946
    %959 = vst [vmem:[#allocation3 + $0x10] sm:$0xff] %v951
    %960 = vst [vmem:[#allocation3 + $0x18] sm:$0xff] %v954
    %v961 = vpack.c.bf16 %v946, %v943
    %v962 = vpack.c.bf16 %v954, %v951
    %v963 = vld [vmem:[#allocation5 + $0x100] sm:$0xf]
    %v964 = vld [vmem:[#allocation5 + $0x108] sm:$0xf]
    %v965 = vld [vmem:[#allocation5 + $0x110] sm:$0xf]
    %v966 = vld [vmem:[#allocation5 + $0x118] sm:$0xf]
    %v967 = vld [vmem:[#allocation5 + $0x120] sm:$0xf]
    %v968 = vld [vmem:[#allocation5 + $0x128] sm:$0xf]
    %v969 = vld [vmem:[#allocation5 + $0x130] sm:$0xf]
    %v970 = vld [vmem:[#allocation5 + $0x138] sm:$0xf]
    %v979 = vunpack.c.l.b16 %v963
    %v980 = vunpack.c.l.b16 %v964
    %v981 = vunpack.c.l.b16 %v965
    %v982 = vunpack.c.l.b16 %v966
    %v983 = vunpack.c.l.b16 %v967
    %v984 = vunpack.c.l.b16 %v968
    %v985 = vunpack.c.l.b16 %v969
    %v986 = vunpack.c.l.b16 %v970
    %v987 = vpack.c.b16 %v980, %v979
    %v988 = vpack.c.b16 %v982, %v981
    %v989 = vpack.c.b16 %v984, %v983
    %v990 = vpack.c.b16 %v986, %v985
    %v992 = vsel %vm245, %v987, 0
    %v995 = vsel %vm245, %v988, 0
    %v998 = vsel %vm245, %v989, 0
    %v1001 = vsel %vm245, %v990, 0
    %1003 = vmatprep.subr.bf16.mxu0 0
    %1004 = vmatpush1.bf16.msra.mxu0 %v961
    %1005 = vmatprep.subr.bf16.mxu0 0
    %1006 = vmatpush1.bf16.msra.mxu0 %v962
    %1007 = vmatprep.subr.bf16.mxu0 0
    %1008 = vmatpush1.bf16.msra.mxu0 %v108
    %1009 = vmatprep.subr.bf16.mxu0 0
    %1010 = vmatpush1.bf16.msra.mxu0 0
    %1011 = vmatprep.subr.bf16.mxu0 0
    %1012 = vmatpush1.bf16.msra.mxu0 0
    %1013 = vmatprep.subr.bf16.mxu0 0
    %1014 = vmatpush1.bf16.msra.mxu0 0
    %1015 = vmatprep.subr.bf16.mxu0 0
    %1016 = vmatpush1.bf16.msra.mxu0 0
    %1017 = vmatprep.subr.bf16.mxu0 0
    %1018 = vmatpush1.bf16.msra.mxu0 0
    %1019 = vmatprep.subr.bf16.mxu0 0
    %1020 = vmatpush1.bf16.msra.mxu0 0
    %1021 = vmatprep.subr.bf16.mxu0 0
    %1022 = vmatpush1.bf16.msra.mxu0 0
    %1023 = vmatprep.subr.bf16.mxu0 0
    %1024 = vmatpush1.bf16.msra.mxu0 0
    %1025 = vmatprep.subr.bf16.mxu0 0
    %1026 = vmatpush1.bf16.msra.mxu0 0
    %1027 = vmatprep.subr.bf16.mxu0 0
    %1028 = vmatpush1.bf16.msra.mxu0 0
    %1029 = vmatprep.subr.bf16.mxu0 0
    %1030 = vmatpush1.bf16.msra.mxu0 0
    %1031 = vmatprep.subr.bf16.mxu0 0
    %1032 = vmatpush1.bf16.msra.mxu0 0
    %1033 = vmatprep.subr.bf16.mxu0 0
    %1034 = vmatpush1.bf16.msra.mxu0 0
    %1035 = vmatprep.mubr.bf16.mxu0 0
    %1036 = vmatmul.mubr.bf16.gmra.mrb[0].mxu0 %v992
    %v1037 = vpop.f32.mrb[0].mxu0
    %v1038 = vadd.f32 0.0, %v1037
    %v1039 = vpop.f32.mrb[0].mxu0
    %v1040 = vpop.f32.mrb[0].mxu0
    %v1041 = vadd.f32 0.0, %v1040
    %v1042 = vpop.f32.mrb[0].mxu0
    %1043 = vmatprep.mubr.bf16.mxu0 0
    %1044 = vmatmul.mubr.bf16.gmra.mrb[0].mxu0 %v995
    %v1045 = vpop.f32.mrb[0].mxu0
    %v1046 = vadd.f32 0.0, %v1045
    %v1047 = vpop.f32.mrb[0].mxu0
    %v1048 = vpop.f32.mrb[0].mxu0
    %v1049 = vadd.f32 0.0, %v1048
    %v1050 = vpop.f32.mrb[0].mxu0
    %1051 = vmatprep.mubr.bf16.mxu0 0
    %1052 = vmatmul.mubr.bf16.gmra.mrb[0].mxu0 %v998
    %v1053 = vpop.f32.mrb[0].mxu0
    %v1054 = vadd.f32 0.0, %v1053
    %v1055 = vpop.f32.mrb[0].mxu0
    %v1056 = vpop.f32.mrb[0].mxu0
    %v1057 = vadd.f32 0.0, %v1056
    %v1058 = vpop.f32.mrb[0].mxu0
    %1059 = vmatprep.mubr.bf16.mxu0 0
    %1060 = vmatmul.mubr.bf16.gmra.mrb[0].mxu0 %v1001
    %v1061 = vpop.f32.mrb[0].mxu0
    %v1062 = vadd.f32 0.0, %v1061
    %v1063 = vpop.f32.mrb[0].mxu0
    %v1064 = vpop.f32.mrb[0].mxu0
    %v1065 = vadd.f32 0.0, %v1064
    %v1066 = vpop.f32.mrb[0].mxu0
    %1067 = vdwg.mxu0
    %v1068 = vmax.f32 %v1038, 0.0
    %v1069 = vmax.f32 %v1041, 0.0
    %v1070 = vmax.f32 %v1046, 0.0
    %v1071 = vmax.f32 %v1049, 0.0
    %v1072 = vmax.f32 %v1054, 0.0
    %v1073 = vmax.f32 %v1057, 0.0
    %v1074 = vmax.f32 %v1062, 0.0
    %v1075 = vmax.f32 %v1065, 0.0
    %v1076 = vpack.c.bf16 %v1069, %v1068
    %v1077 = vpack.c.bf16 %v1071, %v1070
    %v1078 = vpack.c.bf16 %v1073, %v1072
    %v1079 = vpack.c.bf16 %v1075, %v1074
    %v1080 = vld [vmem:[#allocation5 + $0x140] sm:$0xf]
    %v1081 = vld [vmem:[#allocation5 + $0x148] sm:$0xf]
    %v1082 = vld [vmem:[#allocation5 + $0x150] sm:$0xf]
    %v1083 = vld [vmem:[#allocation5 + $0x158] sm:$0xf]
    %v1084 = vld [vmem:[#allocation5 + $0x160] sm:$0xf]
    %v1085 = vld [vmem:[#allocation5 + $0x168] sm:$0xf]
    %v1086 = vld [vmem:[#allocation5 + $0x170] sm:$0xf]
    %v1087 = vld [vmem:[#allocation5 + $0x178] sm:$0xf]
    %v1096 = vunpack.c.l.b16 %v1080
    %v1097 = vunpack.c.l.b16 %v1081
    %v1098 = vunpack.c.l.b16 %v1082
    %v1099 = vunpack.c.l.b16 %v1083
    %v1100 = vunpack.c.l.b16 %v1084
    %v1101 = vunpack.c.l.b16 %v1085
    %v1102 = vunpack.c.l.b16 %v1086
    %v1103 = vunpack.c.l.b16 %v1087
    %v1104 = vpack.c.b16 %v1097, %v1096
    %v1105 = vpack.c.b16 %v1099, %v1098
    %v1106 = vpack.c.b16 %v1101, %v1100
    %v1107 = vpack.c.b16 %v1103, %v1102
    %vm1108 = vcmask 531456
    %v1110 = vsel %vm1108, %v1104, 0
    %v1113 = vsel %vm1108, %v1105, 0
    %v1116 = vsel %vm1108, %v1106, 0
    %v1119 = vsel %vm1108, %v1107, 0
    %1121 = vmatprep.subr.bf16.mxu0 0
    %1122 = vmatpush1.bf16.msra.mxu0 %v1076
    %1123 = vmatprep.subr.bf16.mxu0 0
    %1124 = vmatpush1.bf16.msra.mxu0 %v1077
    %1125 = vmatprep.subr.bf16.mxu0 0
    %1126 = vmatpush1.bf16.msra.mxu0 %v1078
    %1127 = vmatprep.subr.bf16.mxu0 0
    %1128 = vmatpush1.bf16.msra.mxu0 %v1079
    %1129 = vmatprep.subr.bf16.mxu0 0
    %1130 = vmatpush1.bf16.msra.mxu0 %v108
    %1131 = vmatprep.subr.bf16.mxu0 0
    %1132 = vmatpush1.bf16.msra.mxu0 0
    %1133 = vmatprep.subr.bf16.mxu0 0
    %1134 = vmatpush1.bf16.msra.mxu0 0
    %1135 = vmatprep.subr.bf16.mxu0 0
    %1136 = vmatpush1.bf16.msra.mxu0 0
    %1137 = vmatprep.subr.bf16.mxu0 0
    %1138 = vmatpush1.bf16.msra.mxu0 0
    %1139 = vmatprep.subr.bf16.mxu0 0
    %1140 = vmatpush1.bf16.msra.mxu0 0
    %1141 = vmatprep.subr.bf16.mxu0 0
    %1142 = vmatpush1.bf16.msra.mxu0 0
    %1143 = vmatprep.subr.bf16.mxu0 0
    %1144 = vmatpush1.bf16.msra.mxu0 0
    %1145 = vmatprep.subr.bf16.mxu0 0
    %1146 = vmatpush1.bf16.msra.mxu0 0
    %1147 = vmatprep.subr.bf16.mxu0 0
    %1148 = vmatpush1.bf16.msra.mxu0 0
    %1149 = vmatprep.subr.bf16.mxu0 0
    %1150 = vmatpush1.bf16.msra.mxu0 0
    %1151 = vmatprep.subr.bf16.mxu0 0
    %1152 = vmatpush1.bf16.msra.mxu0 0
    %1153 = vmatprep.mubr.bf16.mxu0 0
    %1154 = vmatmul.mubr.bf16.gmra.mrb[0].mxu0 %v1110
    %v1155 = vpop.f32.mrb[0].mxu0
    %v1156 = vadd.f32 0.0, %v1155
    %v1157 = vpop.f32.mrb[0].mxu0
    %v1158 = vpop.f32.mrb[0].mxu0
    %v1159 = vadd.f32 0.0, %v1158
    %v1160 = vpop.f32.mrb[0].mxu0
    %1161 = vmatprep.mubr.bf16.mxu0 0
    %1162 = vmatmul.mubr.bf16.gmra.mrb[0].mxu0 %v1113
    %v1163 = vpop.f32.mrb[0].mxu0
    %v1164 = vadd.f32 0.0, %v1163
    %v1165 = vpop.f32.mrb[0].mxu0
    %v1166 = vpop.f32.mrb[0].mxu0
    %v1167 = vadd.f32 0.0, %v1166
    %v1168 = vpop.f32.mrb[0].mxu0
    %1169 = vmatprep.mubr.bf16.mxu0 0
    %1170 = vmatmul.mubr.bf16.gmra.mrb[0].mxu0 %v1116
    %v1171 = vpop.f32.mrb[0].mxu0
    %v1172 = vadd.f32 0.0, %v1171
    %v1173 = vpop.f32.mrb[0].mxu0
    %v1174 = vpop.f32.mrb[0].mxu0
    %v1175 = vadd.f32 0.0, %v1174
    %v1176 = vpop.f32.mrb[0].mxu0
    %1177 = vmatprep.mubr.bf16.mxu0 0
    %1178 = vmatmul.mubr.bf16.gmra.mrb[0].mxu0 %v1119
    %v1179 = vpop.f32.mrb[0].mxu0
    %v1180 = vadd.f32 0.0, %v1179
    %v1181 = vpop.f32.mrb[0].mxu0
    %v1182 = vpop.f32.mrb[0].mxu0
    %v1183 = vadd.f32 0.0, %v1182
    %v1184 = vpop.f32.mrb[0].mxu0
    %1185 = vdwg.mxu0
    %v1186 = vmax.f32 %v1156, 0.0
    %v1187 = vmax.f32 %v1159, 0.0
    %v1188 = vmax.f32 %v1164, 0.0
    %v1189 = vmax.f32 %v1167, 0.0
    %v1190 = vmax.f32 %v1172, 0.0
    %v1191 = vmax.f32 %v1175, 0.0
    %v1192 = vmax.f32 %v1180, 0.0
    %v1193 = vmax.f32 %v1183, 0.0
    %v1194 = vpack.c.bf16 %v1187, %v1186
    %v1195 = vpack.c.bf16 %v1189, %v1188
    %v1196 = vpack.c.bf16 %v1191, %v1190
    %v1197 = vpack.c.bf16 %v1193, %v1192
    %v1198 = vld [vmem:[#allocation5 + $0x180] sm:$0xf]
    %v1199 = vld [vmem:[#allocation5 + $0x188] sm:$0xf]
    %v1200 = vld [vmem:[#allocation5 + $0x190] sm:$0xf]
    %v1201 = vld [vmem:[#allocation5 + $0x198] sm:$0xf]
    %v1202 = vld [vmem:[#allocation5 + $0x1a0] sm:$0xf]
    %v1203 = vld [vmem:[#allocation5 + $0x1a8] sm:$0xf]
    %v1204 = vld [vmem:[#allocation5 + $0x1b0] sm:$0xf]
    %v1205 = vld [vmem:[#allocation5 + $0x1b8] sm:$0xf]
    %v1206 = vld [vmem:[#allocation5 + $0x1c0] sm:$0xf]
    %v1207 = vld [vmem:[#allocation5 + $0x1c8] sm:$0xf]
    %v1208 = vld [vmem:[#allocation5 + $0x1d0] sm:$0xf]
    %v1209 = vld [vmem:[#allocation5 + $0x1d8] sm:$0xf]
    %v1210 = vld [vmem:[#allocation5 + $0x1e0] sm:$0xf]
    %v1211 = vld [vmem:[#allocation5 + $0x1e8] sm:$0xf]
    %v1212 = vld [vmem:[#allocation5 + $0x1f0] sm:$0xf]
    %v1213 = vld [vmem:[#allocation5 + $0x1f8] sm:$0xf]
    %v1214 = vld [vmem:[#allocation5 + $0x200] sm:$0xf]
    %v1215 = vld [vmem:[#allocation5 + $0x208] sm:$0xf]
    %v1216 = vld [vmem:[#allocation5 + $0x210] sm:$0xf]
    %v1217 = vld [vmem:[#allocation5 + $0x218] sm:$0xf]
    %v1218 = vld [vmem:[#allocation5 + $0x220] sm:$0xf]
    %v1219 = vld [vmem:[#allocation5 + $0x228] sm:$0xf]
    %v1220 = vld [vmem:[#allocation5 + $0x230] sm:$0xf]
    %v1221 = vld [vmem:[#allocation5 + $0x238] sm:$0xf]
    %v1246 = vunpack.c.l.b16 %v1198
    %v1247 = vunpack.c.l.b16 %v1199
    %v1248 = vunpack.c.l.b16 %v1200
    %v1249 = vunpack.c.l.b16 %v1201
    %v1250 = vunpack.c.l.b16 %v1202
    %v1251 = vunpack.c.l.b16 %v1203
    %v1252 = vunpack.c.l.b16 %v1204
    %v1253 = vunpack.c.l.b16 %v1205
    %v1254 = vunpack.c.l.b16 %v1206
    %v1255 = vunpack.c.l.b16 %v1207
    %v1256 = vunpack.c.l.b16 %v1208
    %v1257 = vunpack.c.l.b16 %v1209
    %v1258 = vunpack.c.l.b16 %v1210
    %v1259 = vunpack.c.l.b16 %v1211
    %v1260 = vunpack.c.l.b16 %v1212
    %v1261 = vunpack.c.l.b16 %v1213
    %v1262 = vunpack.c.l.b16 %v1214
    %v1263 = vunpack.c.l.b16 %v1215
    %v1264 = vunpack.c.l.b16 %v1216
    %v1265 = vunpack.c.l.b16 %v1217
    %v1266 = vunpack.c.l.b16 %v1218
    %v1267 = vunpack.c.l.b16 %v1219
    %v1268 = vunpack.c.l.b16 %v1220
    %v1269 = vunpack.c.l.b16 %v1221
    %v1270 = vpack.c.b16 %v1247, %v1246
    %v1271 = vpack.c.b16 %v1249, %v1248
    %v1272 = vpack.c.b16 %v1251, %v1250
    %v1273 = vpack.c.b16 %v1253, %v1252
    %v1274 = vpack.c.b16 %v1255, %v1254
    %v1275 = vpack.c.b16 %v1257, %v1256
    %v1276 = vpack.c.b16 %v1259, %v1258
    %v1277 = vpack.c.b16 %v1261, %v1260
    %v1278 = vpack.c.b16 %v1263, %v1262
    %v1279 = vpack.c.b16 %v1265, %v1264
    %v1280 = vpack.c.b16 %v1267, %v1266
    %v1281 = vpack.c.b16 %v1269, %v1268
    %v1283 = vsel %vm1108, %v1270, 0
    %v1286 = vsel %vm1108, %v1271, 0
    %v1289 = vsel %vm1108, %v1272, 0
    %v1292 = vsel %vm1108, %v1273, 0
    %v1295 = vsel %vm1108, %v1274, 0
    %v1298 = vsel %vm1108, %v1275, 0
    %v1301 = vsel %vm1108, %v1276, 0
    %v1304 = vsel %vm1108, %v1277, 0
    %v1307 = vsel %vm1108, %v1278, 0
    %v1310 = vsel %vm1108, %v1279, 0
    %v1313 = vsel %vm1108, %v1280, 0
    %v1316 = vsel %vm1108, %v1281, 0
    %1318 = vmatprep.subr.bf16.mxu0 0
    %1319 = vmatpush1.bf16.msra.mxu0 %v1194
    %1320 = vmatprep.subr.bf16.mxu0 0
    %1321 = vmatpush1.bf16.msra.mxu0 %v1195
    %1322 = vmatprep.subr.bf16.mxu0 0
    %1323 = vmatpush1.bf16.msra.mxu0 %v1196
    %1324 = vmatprep.subr.bf16.mxu0 0
    %1325 = vmatpush1.bf16.msra.mxu0 %v1197
    %1326 = vmatprep.subr.bf16.mxu0 0
    %1327 = vmatpush1.bf16.msra.mxu0 %v108
    %1328 = vmatprep.subr.bf16.mxu0 0
    %1329 = vmatpush1.bf16.msra.mxu0 0
    %1330 = vmatprep.subr.bf16.mxu0 0
    %1331 = vmatpush1.bf16.msra.mxu0 0
    %1332 = vmatprep.subr.bf16.mxu0 0
    %1333 = vmatpush1.bf16.msra.mxu0 0
    %1334 = vmatprep.subr.bf16.mxu0 0
    %1335 = vmatpush1.bf16.msra.mxu0 0
    %1336 = vmatprep.subr.bf16.mxu0 0
    %1337 = vmatpush1.bf16.msra.mxu0 0
    %1338 = vmatprep.subr.bf16.mxu0 0
    %1339 = vmatpush1.bf16.msra.mxu0 0
    %1340 = vmatprep.subr.bf16.mxu0 0
    %1341 = vmatpush1.bf16.msra.mxu0 0
    %1342 = vmatprep.subr.bf16.mxu0 0
    %1343 = vmatpush1.bf16.msra.mxu0 0
    %1344 = vmatprep.subr.bf16.mxu0 0
    %1345 = vmatpush1.bf16.msra.mxu0 0
    %1346 = vmatprep.subr.bf16.mxu0 0
    %1347 = vmatpush1.bf16.msra.mxu0 0
    %1348 = vmatprep.subr.bf16.mxu0 0
    %1349 = vmatpush1.bf16.msra.mxu0 0
    %1350 = vmatprep.mubr.bf16.mxu0 0
    %1351 = vmatmul.mubr.bf16.gmra.mrb[0].mxu0 %v1283
    %v1352 = vpop.f32.mrb[0].mxu0
    %v1353 = vadd.f32 0.0, %v1352
    %v1354 = vpop.f32.mrb[0].mxu0
    %v1355 = vpop.f32.mrb[0].mxu0
    %v1356 = vadd.f32 0.0, %v1355
    %v1357 = vpop.f32.mrb[0].mxu0
    %1358 = vmatprep.mubr.bf16.mxu0 0
    %1359 = vmatmul.mubr.bf16.gmra.mrb[0].mxu0 %v1286
    %v1360 = vpop.f32.mrb[0].mxu0
    %v1361 = vadd.f32 0.0, %v1360
    %v1362 = vpop.f32.mrb[0].mxu0
    %v1363 = vpop.f32.mrb[0].mxu0
    %v1364 = vadd.f32 0.0, %v1363
    %v1365 = vpop.f32.mrb[0].mxu0
    %1366 = vmatprep.mubr.bf16.mxu0 0
    %1367 = vmatmul.mubr.bf16.gmra.mrb[0].mxu0 %v1289
    %v1368 = vpop.f32.mrb[0].mxu0
    %v1369 = vadd.f32 0.0, %v1368
    %v1370 = vpop.f32.mrb[0].mxu0
    %v1371 = vpop.f32.mrb[0].mxu0
    %v1372 = vadd.f32 0.0, %v1371
    %v1373 = vpop.f32.mrb[0].mxu0
    %1374 = vmatprep.mubr.bf16.mxu0 0
    %1375 = vmatmul.mubr.bf16.gmra.mrb[0].mxu0 %v1292
    %v1376 = vpop.f32.mrb[0].mxu0
    %v1377 = vadd.f32 0.0, %v1376
    %v1378 = vpop.f32.mrb[0].mxu0
    %v1379 = vpop.f32.mrb[0].mxu0
    %v1380 = vadd.f32 0.0, %v1379
    %v1381 = vpop.f32.mrb[0].mxu0
    %1382 = vmatprep.mubr.bf16.mxu0 0
    %1383 = vmatmul.mubr.bf16.gmra.mrb[0].mxu0 %v1295
    %v1384 = vpop.f32.mrb[0].mxu0
    %v1385 = vadd.f32 0.0, %v1384
    %v1386 = vpop.f32.mrb[0].mxu0
    %v1387 = vpop.f32.mrb[0].mxu0
    %v1388 = vadd.f32 0.0, %v1387
    %v1389 = vpop.f32.mrb[0].mxu0
    %1390 = vmatprep.mubr.bf16.mxu0 0
    %1391 = vmatmul.mubr.bf16.gmra.mrb[0].mxu0 %v1298
    %v1392 = vpop.f32.mrb[0].mxu0
    %v1393 = vadd.f32 0.0, %v1392
    %v1394 = vpop.f32.mrb[0].mxu0
    %v1395 = vpop.f32.mrb[0].mxu0
    %v1396 = vadd.f32 0.0, %v1395
    %v1397 = vpop.f32.mrb[0].mxu0
    %1398 = vmatprep.mubr.bf16.mxu0 0
    %1399 = vmatmul.mubr.bf16.gmra.mrb[0].mxu0 %v1301
    %v1400 = vpop.f32.mrb[0].mxu0
    %v1401 = vadd.f32 0.0, %v1400
    %v1402 = vpop.f32.mrb[0].mxu0
    %v1403 = vpop.f32.mrb[0].mxu0
    %v1404 = vadd.f32 0.0, %v1403
    %v1405 = vpop.f32.mrb[0].mxu0
    %1406 = vmatprep.mubr.bf16.mxu0 0
    %1407 = vmatmul.mubr.bf16.gmra.mrb[0].mxu0 %v1304
    %v1408 = vpop.f32.mrb[0].mxu0
    %v1409 = vadd.f32 0.0, %v1408
    %v1410 = vpop.f32.mrb[0].mxu0
    %v1411 = vpop.f32.mrb[0].mxu0
    %v1412 = vadd.f32 0.0, %v1411
    %v1413 = vpop.f32.mrb[0].mxu0
    %1414 = vmatprep.mubr.bf16.mxu0 0
    %1415 = vmatmul.mubr.bf16.gmra.mrb[0].mxu0 %v1307
    %v1416 = vpop.f32.mrb[0].mxu0
    %v1417 = vadd.f32 0.0, %v1416
    %v1418 = vpop.f32.mrb[0].mxu0
    %v1419 = vpop.f32.mrb[0].mxu0
    %v1420 = vadd.f32 0.0, %v1419
    %v1421 = vpop.f32.mrb[0].mxu0
    %1422 = vmatprep.mubr.bf16.mxu0 0
    %1423 = vmatmul.mubr.bf16.gmra.mrb[0].mxu0 %v1310
    %v1424 = vpop.f32.mrb[0].mxu0
    %v1425 = vadd.f32 0.0, %v1424
    %v1426 = vpop.f32.mrb[0].mxu0
    %v1427 = vpop.f32.mrb[0].mxu0
    %v1428 = vadd.f32 0.0, %v1427
    %v1429 = vpop.f32.mrb[0].mxu0
    %1430 = vmatprep.mubr.bf16.mxu0 0
    %1431 = vmatmul.mubr.bf16.gmra.mrb[0].mxu0 %v1313
    %v1432 = vpop.f32.mrb[0].mxu0
    %v1433 = vadd.f32 0.0, %v1432
    %v1434 = vpop.f32.mrb[0].mxu0
    %v1435 = vpop.f32.mrb[0].mxu0
    %v1436 = vadd.f32 0.0, %v1435
    %v1437 = vpop.f32.mrb[0].mxu0
    %1438 = vmatprep.mubr.bf16.mxu0 0
    %1439 = vmatmul.mubr.bf16.gmra.mrb[0].mxu0 %v1316
    %v1440 = vpop.f32.mrb[0].mxu0
    %v1441 = vadd.f32 0.0, %v1440
    %v1442 = vpop.f32.mrb[0].mxu0
    %v1443 = vpop.f32.mrb[0].mxu0
    %v1444 = vadd.f32 0.0, %v1443
    %v1445 = vpop.f32.mrb[0].mxu0
    %1446 = vdwg.mxu0
    %1447 = vxpose.xlu0.b32.start [1/16] %v1353, 128
    %1448 = vxpose.xlu0.b32.cont [2/16] %v1356, 128
    %1449 = vxpose.xlu0.b32.cont [3/16] %v1361, 128
    %1450 = vxpose.xlu0.b32.cont [4/16] %v1364, 128
    %1451 = vxpose.xlu0.b32.cont [5/16] %v1369, 128
    %1452 = vxpose.xlu0.b32.cont [6/16] %v1372, 128
    %1453 = vxpose.xlu0.b32.cont [7/16] %v1377, 128
    %1454 = vxpose.xlu0.b32.cont [8/16] %v1380, 128
    %1455 = vxpose.xlu0.b32.cont [9/16] 0.0, 128
    %1456 = vxpose.xlu0.b32.cont [10/16] 0.0, 128
    %1457 = vxpose.xlu0.b32.cont [11/16] 0.0, 128
    %1458 = vxpose.xlu0.b32.cont [12/16] 0.0, 128
    %1459 = vxpose.xlu0.b32.cont [13/16] 0.0, 128
    %1460 = vxpose.xlu0.b32.cont [14/16] 0.0, 128
    %1461 = vxpose.xlu0.b32.cont [15/16] 0.0, 128
    %1462 = vxpose.xlu0.b32.end [16/16] 0.0, 128
    %v1463 = vpop.trf.xlu0
    %v1464 = vpop.trf.xlu0
    %v1465 = vpop.trf.xlu0
    %v1466 = vpop.trf.xlu0
    %v1467 = vpop.trf.xlu0
    %v1468 = vpop.trf.xlu0
    %v1469 = vpop.trf.xlu0
    %v1470 = vpop.trf.xlu0
    %v1471 = vpop.trf.xlu0
    %v1472 = vpop.trf.xlu0
    %v1473 = vpop.trf.xlu0
    %v1474 = vpop.trf.xlu0
    %v1475 = vpop.trf.xlu0
    %v1476 = vpop.trf.xlu0
    %v1477 = vpop.trf.xlu0
    %v1478 = vpop.trf.xlu0
    %v1479 = vpack.c.bf16 %v1464, %v1463
    %v1480 = vpack.c.bf16 %v1466, %v1465
    %v1481 = vpack.c.bf16 %v1468, %v1467
    %v1482 = vpack.c.bf16 %v1470, %v1469
    %v1483 = vpack.c.bf16 %v1472, %v1471
    %v1484 = vpack.c.bf16 %v1474, %v1473
    %v1485 = vpack.c.bf16 %v1476, %v1475
    %v1486 = vpack.c.bf16 %v1478, %v1477
    %v1487 = vpack.c.bf16 %v1388, %v1385
    %v1488 = vpack.c.bf16 %v1396, %v1393
    %v1489 = vpack.c.bf16 %v1404, %v1401
    %v1490 = vpack.c.bf16 %v1412, %v1409
    %v1491 = vpack.c.bf16 %v1420, %v1417
    %v1492 = vpack.c.bf16 %v1428, %v1425
    %v1493 = vpack.c.bf16 %v1436, %v1433
    %v1494 = vpack.c.bf16 %v1444, %v1441
    %vm1495 = vcmask 523264
    %v1497 = vsel %vm1495, %v1479, 0
    %v1500 = vsel %vm1495, %v1480, 0
    %v1503 = vsel %vm1495, %v1481, 0
    %v1506 = vsel %vm1495, %v1482, 0
    %v1509 = vsel %vm1495, %v1483, 0
    %v1512 = vsel %vm1495, %v1484, 0
    %v1515 = vsel %vm1495, %v1485, 0
    %v1518 = vsel %vm1495, %v1486, 0
    %1520 = vmatprep.subr.bf16.mxu0 0
    %1521 = vmatpush1.bf16.msra.mxu0 %v1487
    %1522 = vmatprep.subr.bf16.mxu0 0
    %1523 = vmatpush1.bf16.msra.mxu0 %v1488
    %1524 = vmatprep.subr.bf16.mxu0 0
    %1525 = vmatpush1.bf16.msra.mxu0 %v1489
    %1526 = vmatprep.subr.bf16.mxu0 0
    %1527 = vmatpush1.bf16.msra.mxu0 %v1490
    %1528 = vmatprep.subr.bf16.mxu0 0
    %1529 = vmatpush1.bf16.msra.mxu0 0
    %1530 = vmatprep.subr.bf16.mxu0 0
    %1531 = vmatpush1.bf16.msra.mxu0 0
    %1532 = vmatprep.subr.bf16.mxu0 0
    %1533 = vmatpush1.bf16.msra.mxu0 0
    %1534 = vmatprep.subr.bf16.mxu0 0
    %1535 = vmatpush1.bf16.msra.mxu0 0
    %1536 = vmatprep.subr.bf16.mxu0 0
    %1537 = vmatpush1.bf16.msra.mxu0 0
    %1538 = vmatprep.subr.bf16.mxu0 0
    %1539 = vmatpush1.bf16.msra.mxu0 0
    %1540 = vmatprep.subr.bf16.mxu0 0
    %1541 = vmatpush1.bf16.msra.mxu0 0
    %1542 = vmatprep.subr.bf16.mxu0 0
    %1543 = vmatpush1.bf16.msra.mxu0 0
    %1544 = vmatprep.subr.bf16.mxu0 0
    %1545 = vmatpush1.bf16.msra.mxu0 0
    %1546 = vmatprep.subr.bf16.mxu0 0
    %1547 = vmatpush1.bf16.msra.mxu0 0
    %1548 = vmatprep.subr.bf16.mxu0 0
    %1549 = vmatpush1.bf16.msra.mxu0 0
    %1550 = vmatprep.subr.bf16.mxu0 0
    %1551 = vmatpush1.bf16.msra.mxu0 0
    %1552 = vmatprep.mubr.bf16.mxu0 0
    %1553 = vmatmul.mubr.bf16.gmra.mrb[0].mxu0 %v1497
    %v1554 = vpop.f32.mrb[0].mxu0
    %v1555 = vadd.f32 0.0, %v1554
    %v1556 = vpop.f32.mrb[0].mxu0
    %v1557 = vpop.f32.mrb[0].mxu0
    %v1558 = vadd.f32 0.0, %v1557
    %v1559 = vpop.f32.mrb[0].mxu0
    %1560 = vmatprep.mubr.bf16.mxu0 0
    %1561 = vmatmul.mubr.bf16.gmra.mrb[0].mxu0 %v1500
    %v1562 = vpop.f32.mrb[0].mxu0
    %v1563 = vadd.f32 0.0, %v1562
    %v1564 = vpop.f32.mrb[0].mxu0
    %v1565 = vpop.f32.mrb[0].mxu0
    %v1566 = vadd.f32 0.0, %v1565
    %v1567 = vpop.f32.mrb[0].mxu0
    %1568 = vmatprep.mubr.bf16.mxu0 0
    %1569 = vmatmul.mubr.bf16.gmra.mrb[0].mxu0 %v1503
    %v1570 = vpop.f32.mrb[0].mxu0
    %v1571 = vadd.f32 0.0, %v1570
    %v1572 = vpop.f32.mrb[0].mxu0
    %v1573 = vpop.f32.mrb[0].mxu0
    %v1574 = vadd.f32 0.0, %v1573
    %v1575 = vpop.f32.mrb[0].mxu0
    %1576 = vmatprep.mubr.bf16.mxu0 0
    %1577 = vmatmul.mubr.bf16.gmra.mrb[0].mxu0 %v1506
    %v1578 = vpop.f32.mrb[0].mxu0
    %v1579 = vadd.f32 0.0, %v1578
    %v1580 = vpop.f32.mrb[0].mxu0
    %v1581 = vpop.f32.mrb[0].mxu0
    %v1582 = vadd.f32 0.0, %v1581
    %v1583 = vpop.f32.mrb[0].mxu0
    %1584 = vmatprep.mubr.bf16.mxu0 0
    %1585 = vmatmul.mubr.bf16.gmra.mrb[0].mxu0 %v1509
    %v1586 = vpop.f32.mrb[0].mxu0
    %v1587 = vadd.f32 0.0, %v1586
    %v1588 = vpop.f32.mrb[0].mxu0
    %v1589 = vpop.f32.mrb[0].mxu0
    %v1590 = vadd.f32 0.0, %v1589
    %v1591 = vpop.f32.mrb[0].mxu0
    %1592 = vmatprep.mubr.bf16.mxu0 0
    %1593 = vmatmul.mubr.bf16.gmra.mrb[0].mxu0 %v1512
    %v1594 = vpop.f32.mrb[0].mxu0
    %v1595 = vadd.f32 0.0, %v1594
    %v1596 = vpop.f32.mrb[0].mxu0
    %v1597 = vpop.f32.mrb[0].mxu0
    %v1598 = vadd.f32 0.0, %v1597
    %v1599 = vpop.f32.mrb[0].mxu0
    %1600 = vmatprep.mubr.bf16.mxu0 0
    %1601 = vmatmul.mubr.bf16.gmra.mrb[0].mxu0 %v1515
    %v1602 = vpop.f32.mrb[0].mxu0
    %v1603 = vadd.f32 0.0, %v1602
    %v1604 = vpop.f32.mrb[0].mxu0
    %v1605 = vpop.f32.mrb[0].mxu0
    %v1606 = vadd.f32 0.0, %v1605
    %v1607 = vpop.f32.mrb[0].mxu0
    %1608 = vmatprep.mubr.bf16.mxu0 0
    %1609 = vmatmul.mubr.bf16.gmra.mrb[0].mxu0 %v1518
    %v1610 = vpop.f32.mrb[0].mxu0
    %v1611 = vadd.f32 0.0, %v1610
    %v1612 = vpop.f32.mrb[0].mxu0
    %v1613 = vpop.f32.mrb[0].mxu0
    %v1614 = vadd.f32 0.0, %v1613
    %v1615 = vpop.f32.mrb[0].mxu0
    %1616 = vdwg.mxu0
    %1617 = vmax.xlane.f32.xlu0 %v1555
    %v1618 = vpop.xlane.xlu0 %1617
    %1619 = vmax.xlane.f32.xlu0 %v1558
    %v1620 = vpop.xlane.xlu0 %1619
    %1621 = vmax.xlane.f32.xlu0 %v1563
    %v1622 = vpop.xlane.xlu0 %1621
    %1623 = vmax.xlane.f32.xlu0 %v1566
    %v1624 = vpop.xlane.xlu0 %1623
    %1625 = vmax.xlane.f32.xlu0 %v1571
    %v1626 = vpop.xlane.xlu0 %1625
    %1627 = vmax.xlane.f32.xlu0 %v1574
    %v1628 = vpop.xlane.xlu0 %1627
    %1629 = vmax.xlane.f32.xlu0 %v1579
    %v1630 = vpop.xlane.xlu0 %1629
    %1631 = vmax.xlane.f32.xlu0 %v1582
    %v1632 = vpop.xlane.xlu0 %1631
    %1633 = vmax.xlane.f32.xlu0 %v1587
    %v1634 = vpop.xlane.xlu0 %1633
    %1635 = vmax.xlane.f32.xlu0 %v1590
    %v1636 = vpop.xlane.xlu0 %1635
    %1637 = vmax.xlane.f32.xlu0 %v1595
    %v1638 = vpop.xlane.xlu0 %1637
    %1639 = vmax.xlane.f32.xlu0 %v1598
    %v1640 = vpop.xlane.xlu0 %1639
    %1641 = vmax.xlane.f32.xlu0 %v1603
    %v1642 = vpop.xlane.xlu0 %1641
    %1643 = vmax.xlane.f32.xlu0 %v1606
    %v1644 = vpop.xlane.xlu0 %1643
    %1645 = vmax.xlane.f32.xlu0 %v1611
    %v1646 = vpop.xlane.xlu0 %1645
    %1647 = vmax.xlane.f32.xlu0 %v1614
    %v1648 = vpop.xlane.xlu0 %1647
    %v1649 = vsub.f32 %v1555, %v1618
    %v1650 = vsub.f32 %v1558, %v1620
    %v1651 = vsub.f32 %v1563, %v1622
    %v1652 = vsub.f32 %v1566, %v1624
    %v1653 = vsub.f32 %v1571, %v1626
    %v1654 = vsub.f32 %v1574, %v1628
    %v1655 = vsub.f32 %v1579, %v1630
    %v1656 = vsub.f32 %v1582, %v1632
    %v1657 = vsub.f32 %v1587, %v1634
    %v1658 = vsub.f32 %v1590, %v1636
    %v1659 = vsub.f32 %v1595, %v1638
    %v1660 = vsub.f32 %v1598, %v1640
    %v1661 = vsub.f32 %v1603, %v1642
    %v1662 = vsub.f32 %v1606, %v1644
    %v1663 = vsub.f32 %v1611, %v1646
    %v1664 = vsub.f32 %v1614, %v1648
    %v1665 = vmul.f32 %v1649, 1.442695
    %v1666 = vpow.pop %v1665
    %v1667 = vmul.f32 %v1650, 1.442695
    %v1668 = vpow.pop %v1667
    %v1669 = vmul.f32 %v1651, 1.442695
    %v1670 = vpow.pop %v1669
    %v1671 = vmul.f32 %v1652, 1.442695
    %v1672 = vpow.pop %v1671
    %v1673 = vmul.f32 %v1653, 1.442695
    %v1674 = vpow.pop %v1673
    %v1675 = vmul.f32 %v1654, 1.442695
    %v1676 = vpow.pop %v1675
    %v1677 = vmul.f32 %v1655, 1.442695
    %v1678 = vpow.pop %v1677
    %v1679 = vmul.f32 %v1656, 1.442695
    %v1680 = vpow.pop %v1679
    %v1681 = vmul.f32 %v1657, 1.442695
    %v1682 = vpow.pop %v1681
    %v1683 = vmul.f32 %v1658, 1.442695
    %v1684 = vpow.pop %v1683
    %v1685 = vmul.f32 %v1659, 1.442695
    %v1686 = vpow.pop %v1685
    %v1687 = vmul.f32 %v1660, 1.442695
    %v1688 = vpow.pop %v1687
    %v1689 = vmul.f32 %v1661, 1.442695
    %v1690 = vpow.pop %v1689
    %v1691 = vmul.f32 %v1662, 1.442695
    %v1692 = vpow.pop %v1691
    %v1693 = vmul.f32 %v1663, 1.442695
    %v1694 = vpow.pop %v1693
    %v1695 = vmul.f32 %v1664, 1.442695
    %v1696 = vpow.pop %v1695
    %1697 = vadd.xlane.f32.xlu0 %v1666
    %v1698 = vpop.xlane.xlu0 %1697
    %1699 = vadd.xlane.f32.xlu0 %v1668
    %v1700 = vpop.xlane.xlu0 %1699
    %1701 = vadd.xlane.f32.xlu0 %v1670
    %v1702 = vpop.xlane.xlu0 %1701
    %1703 = vadd.xlane.f32.xlu0 %v1672
    %v1704 = vpop.xlane.xlu0 %1703
    %1705 = vadd.xlane.f32.xlu0 %v1674
    %v1706 = vpop.xlane.xlu0 %1705
    %1707 = vadd.xlane.f32.xlu0 %v1676
    %v1708 = vpop.xlane.xlu0 %1707
    %1709 = vadd.xlane.f32.xlu0 %v1678
    %v1710 = vpop.xlane.xlu0 %1709
    %1711 = vadd.xlane.f32.xlu0 %v1680
    %v1712 = vpop.xlane.xlu0 %1711
    %1713 = vadd.xlane.f32.xlu0 %v1682
    %v1714 = vpop.xlane.xlu0 %1713
    %1715 = vadd.xlane.f32.xlu0 %v1684
    %v1716 = vpop.xlane.xlu0 %1715
    %1717 = vadd.xlane.f32.xlu0 %v1686
    %v1718 = vpop.xlane.xlu0 %1717
    %1719 = vadd.xlane.f32.xlu0 %v1688
    %v1720 = vpop.xlane.xlu0 %1719
    %1721 = vadd.xlane.f32.xlu0 %v1690
    %v1722 = vpop.xlane.xlu0 %1721
    %1723 = vadd.xlane.f32.xlu0 %v1692
    %v1724 = vpop.xlane.xlu0 %1723
    %1725 = vadd.xlane.f32.xlu0 %v1694
    %v1726 = vpop.xlane.xlu0 %1725
    %1727 = vadd.xlane.f32.xlu0 %v1696
    %v1728 = vpop.xlane.xlu0 %1727
    %v1729 = vrcp.pop %v1698
    %v1730 = vmul.f32 %v1666, %v1729
    %v1731 = vrcp.pop %v1700
    %v1732 = vmul.f32 %v1668, %v1731
    %v1733 = vrcp.pop %v1702
    %v1734 = vmul.f32 %v1670, %v1733
    %v1735 = vrcp.pop %v1704
    %v1736 = vmul.f32 %v1672, %v1735
    %v1737 = vrcp.pop %v1706
    %v1738 = vmul.f32 %v1674, %v1737
    %v1739 = vrcp.pop %v1708
    %v1740 = vmul.f32 %v1676, %v1739
    %v1741 = vrcp.pop %v1710
    %v1742 = vmul.f32 %v1678, %v1741
    %v1743 = vrcp.pop %v1712
    %v1744 = vmul.f32 %v1680, %v1743
    %v1745 = vrcp.pop %v1714
    %v1746 = vmul.f32 %v1682, %v1745
    %v1747 = vrcp.pop %v1716
    %v1748 = vmul.f32 %v1684, %v1747
    %v1749 = vrcp.pop %v1718
    %v1750 = vmul.f32 %v1686, %v1749
    %v1751 = vrcp.pop %v1720
    %v1752 = vmul.f32 %v1688, %v1751
    %v1753 = vrcp.pop %v1722
    %v1754 = vmul.f32 %v1690, %v1753
    %v1755 = vrcp.pop %v1724
    %v1756 = vmul.f32 %v1692, %v1755
    %v1757 = vrcp.pop %v1726
    %v1758 = vmul.f32 %v1694, %v1757
    %v1759 = vrcp.pop %v1728
    %v1760 = vmul.f32 %v1696, %v1759
    %v1761 = vpack.c.bf16 %v1732, %v1730
    %v1762 = vpack.c.bf16 %v1736, %v1734
    %v1763 = vpack.c.bf16 %v1740, %v1738
    %v1764 = vpack.c.bf16 %v1744, %v1742
    %v1765 = vpack.c.bf16 %v1748, %v1746
    %v1766 = vpack.c.bf16 %v1752, %v1750
    %v1767 = vpack.c.bf16 %v1756, %v1754
    %v1768 = vpack.c.bf16 %v1760, %v1758
    %1769 = vmatprep.subr.bf16.mxu0 0
    %1770 = vmatpush1.bf16.xpose.msra.mxu0 %v1761
    %1771 = vmatprep.subr.bf16.mxu0 0
    %1772 = vmatpush1.bf16.xpose.msra.mxu0 %v1762
    %1773 = vmatprep.subr.bf16.mxu0 0
    %1774 = vmatpush1.bf16.xpose.msra.mxu0 %v1763
    %1775 = vmatprep.subr.bf16.mxu0 0
    %1776 = vmatpush1.bf16.xpose.msra.mxu0 %v1764
    %1777 = vmatprep.subr.bf16.mxu0 0
    %1778 = vmatpush1.bf16.xpose.msra.mxu0 %v1765
    %1779 = vmatprep.subr.bf16.mxu0 0
    %1780 = vmatpush1.bf16.xpose.msra.mxu0 %v1766
    %1781 = vmatprep.subr.bf16.mxu0 0
    %1782 = vmatpush1.bf16.xpose.msra.mxu0 %v1767
    %1783 = vmatprep.subr.bf16.mxu0 0
    %1784 = vmatpush1.bf16.xpose.msra.mxu0 %v1768
    %1785 = vmatprep.subr.bf16.mxu0 0
    %1786 = vmatpush1.bf16.xpose.msra.mxu0 0
    %1787 = vmatprep.subr.bf16.mxu0 0
    %1788 = vmatpush1.bf16.xpose.msra.mxu0 0
    %1789 = vmatprep.subr.bf16.mxu0 0
    %1790 = vmatpush1.bf16.xpose.msra.mxu0 0
    %1791 = vmatprep.subr.bf16.mxu0 0
    %1792 = vmatpush1.bf16.xpose.msra.mxu0 0
    %1793 = vmatprep.subr.bf16.mxu0 0
    %1794 = vmatpush1.bf16.xpose.msra.mxu0 0
    %1795 = vmatprep.subr.bf16.mxu0 0
    %1796 = vmatpush1.bf16.xpose.msra.mxu0 0
    %1797 = vmatprep.subr.bf16.mxu0 0
    %1798 = vmatpush1.bf16.xpose.msra.mxu0 0
    %1799 = vmatprep.subr.bf16.mxu0 0
    %1800 = vmatpush1.bf16.xpose.msra.mxu0 0
    %1801 = vmatprep.mubr.bf16.mxu0 0
    %1802 = vmatmul.mubr.bf16.gmra.mrb[0].mxu0 %v1491
    %v1803 = vpop.f32.mrb[0].mxu0
    %v1804 = vadd.f32 0.0, %v1803
    %v1805 = vpop.f32.mrb[0].mxu0
    %v1806 = vpop.f32.mrb[0].mxu0
    %v1807 = vadd.f32 0.0, %v1806
    %v1808 = vpop.f32.mrb[0].mxu0
    %1809 = vmatprep.mubr.bf16.mxu0 0
    %1810 = vmatmul.mubr.bf16.gmra.mrb[0].mxu0 %v1492
    %v1811 = vpop.f32.mrb[0].mxu0
    %v1812 = vadd.f32 0.0, %v1811
    %v1813 = vpop.f32.mrb[0].mxu0
    %v1814 = vpop.f32.mrb[0].mxu0
    %v1815 = vadd.f32 0.0, %v1814
    %v1816 = vpop.f32.mrb[0].mxu0
    %1817 = vmatprep.mubr.bf16.mxu0 0
    %1818 = vmatmul.mubr.bf16.gmra.mrb[0].mxu0 %v1493
    %v1819 = vpop.f32.mrb[0].mxu0
    %v1820 = vadd.f32 0.0, %v1819
    %v1821 = vpop.f32.mrb[0].mxu0
    %v1822 = vpop.f32.mrb[0].mxu0
    %v1823 = vadd.f32 0.0, %v1822
    %v1824 = vpop.f32.mrb[0].mxu0
    %1825 = vmatprep.mubr.bf16.mxu0 0
    %1826 = vmatmul.mubr.bf16.gmra.mrb[0].mxu0 %v1494
    %v1827 = vpop.f32.mrb[0].mxu0
    %v1828 = vadd.f32 0.0, %v1827
    %v1829 = vpop.f32.mrb[0].mxu0
    %v1830 = vpop.f32.mrb[0].mxu0
    %v1831 = vadd.f32 0.0, %v1830
    %v1832 = vpop.f32.mrb[0].mxu0
    %1833 = vdwg.mxu0
    %v1834 = vpack.c.bf16 %v1807, %v1804
    %v1835 = vpack.c.bf16 %v1815, %v1812
    %v1836 = vpack.c.bf16 %v1823, %v1820
    %v1837 = vpack.c.bf16 %v1831, %v1828
    %v1838 = vld [vmem:[#allocation5 + $0x240] sm:$0xf]
    %v1839 = vld [vmem:[#allocation5 + $0x248] sm:$0xf]
    %v1840 = vld [vmem:[#allocation5 + $0x250] sm:$0xf]
    %v1841 = vld [vmem:[#allocation5 + $0x258] sm:$0xf]
    %v1842 = vld [vmem:[#allocation5 + $0x260] sm:$0xf]
    %v1843 = vld [vmem:[#allocation5 + $0x268] sm:$0xf]
    %v1844 = vld [vmem:[#allocation5 + $0x270] sm:$0xf]
    %v1845 = vld [vmem:[#allocation5 + $0x278] sm:$0xf]
    %v1854 = vunpack.c.l.b16 %v1838
    %v1855 = vunpack.c.l.b16 %v1839
    %v1856 = vunpack.c.l.b16 %v1840
    %v1857 = vunpack.c.l.b16 %v1841
    %v1858 = vunpack.c.l.b16 %v1842
    %v1859 = vunpack.c.l.b16 %v1843
    %v1860 = vunpack.c.l.b16 %v1844
    %v1861 = vunpack.c.l.b16 %v1845
    %v1862 = vpack.c.b16 %v1855, %v1854
    %v1863 = vpack.c.b16 %v1857, %v1856
    %v1864 = vpack.c.b16 %v1859, %v1858
    %v1865 = vpack.c.b16 %v1861, %v1860
    %v1867 = vsel %vm1108, %v1862, 0
    %v1870 = vsel %vm1108, %v1863, 0
    %v1873 = vsel %vm1108, %v1864, 0
    %v1876 = vsel %vm1108, %v1865, 0
    %1878 = vmatprep.subr.bf16.mxu0 0
    %1879 = vmatpush1.bf16.msra.mxu0 %v1834
    %1880 = vmatprep.subr.bf16.mxu0 0
    %1881 = vmatpush1.bf16.msra.mxu0 %v1835
    %1882 = vmatprep.subr.bf16.mxu0 0
    %1883 = vmatpush1.bf16.msra.mxu0 %v1836
    %1884 = vmatprep.subr.bf16.mxu0 0
    %1885 = vmatpush1.bf16.msra.mxu0 %v1837
    %1886 = vmatprep.subr.bf16.mxu0 0
    %1887 = vmatpush1.bf16.msra.mxu0 %v108
    %1888 = vmatprep.subr.bf16.mxu0 0
    %1889 = vmatpush1.bf16.msra.mxu0 0
    %1890 = vmatprep.subr.bf16.mxu0 0
    %1891 = vmatpush1.bf16.msra.mxu0 0
    %1892 = vmatprep.subr.bf16.mxu0 0
    %1893 = vmatpush1.bf16.msra.mxu0 0
    %1894 = vmatprep.subr.bf16.mxu0 0
    %1895 = vmatpush1.bf16.msra.mxu0 0
    %1896 = vmatprep.subr.bf16.mxu0 0
    %1897 = vmatpush1.bf16.msra.mxu0 0
    %1898 = vmatprep.subr.bf16.mxu0 0
    %1899 = vmatpush1.bf16.msra.mxu0 0
    %1900 = vmatprep.subr.bf16.mxu0 0
    %1901 = vmatpush1.bf16.msra.mxu0 0
    %1902 = vmatprep.subr.bf16.mxu0 0
    %1903 = vmatpush1.bf16.msra.mxu0 0
    %1904 = vmatprep.subr.bf16.mxu0 0
    %1905 = vmatpush1.bf16.msra.mxu0 0
    %1906 = vmatprep.subr.bf16.mxu0 0
    %1907 = vmatpush1.bf16.msra.mxu0 0
    %1908 = vmatprep.subr.bf16.mxu0 0
    %1909 = vmatpush1.bf16.msra.mxu0 0
    %1910 = vmatprep.mubr.bf16.mxu0 0
    %1911 = vmatmul.mubr.bf16.gmra.mrb[0].mxu0 %v1867
    %v1912 = vpop.f32.mrb[0].mxu0
    %v1913 = vadd.f32 %v1186, %v1912
    %v1914 = vpop.f32.mrb[0].mxu0
    %v1915 = vpop.f32.mrb[0].mxu0
    %v1916 = vadd.f32 %v1187, %v1915
    %v1917 = vpop.f32.mrb[0].mxu0
    %1918 = vmatprep.mubr.bf16.mxu0 0
    %1919 = vmatmul.mubr.bf16.gmra.mrb[0].mxu0 %v1870
    %v1920 = vpop.f32.mrb[0].mxu0
    %v1921 = vadd.f32 %v1188, %v1920
    %v1922 = vpop.f32.mrb[0].mxu0
    %v1923 = vpop.f32.mrb[0].mxu0
    %v1924 = vadd.f32 %v1189, %v1923
    %v1925 = vpop.f32.mrb[0].mxu0
    %1926 = vmatprep.mubr.bf16.mxu0 0
    %1927 = vmatmul.mubr.bf16.gmra.mrb[0].mxu0 %v1873
    %v1928 = vpop.f32.mrb[0].mxu0
    %v1929 = vadd.f32 %v1190, %v1928
    %v1930 = vpop.f32.mrb[0].mxu0
    %v1931 = vpop.f32.mrb[0].mxu0
    %v1932 = vadd.f32 %v1191, %v1931
    %v1933 = vpop.f32.mrb[0].mxu0
    %1934 = vmatprep.mubr.bf16.mxu0 0
    %1935 = vmatmul.mubr.bf16.gmra.mrb[0].mxu0 %v1876
    %v1936 = vpop.f32.mrb[0].mxu0
    %v1937 = vadd.f32 %v1192, %v1936
    %v1938 = vpop.f32.mrb[0].mxu0
    %v1939 = vpop.f32.mrb[0].mxu0
    %v1940 = vadd.f32 %v1193, %v1939
    %v1941 = vpop.f32.mrb[0].mxu0
    %1942 = vdwg.mxu0
    %v1943 = vpack.c.bf16 %v1916, %v1913
    %v1944 = vpack.c.bf16 %v1924, %v1921
    %v1945 = vpack.c.bf16 %v1932, %v1929
    %v1946 = vpack.c.bf16 %v1940, %v1937
    %v1947 = vld [vmem:[#allocation5 + $0x280] sm:$0xf]
    %v1948 = vld [vmem:[#allocation5 + $0x288] sm:$0xf]
    %v1949 = vld [vmem:[#allocation5 + $0x290] sm:$0xf]
    %v1950 = vld [vmem:[#allocation5 + $0x298] sm:$0xf]
    %v1951 = vld [vmem:[#allocation5 + $0x2a0] sm:$0xf]
    %v1952 = vld [vmem:[#allocation5 + $0x2a8] sm:$0xf]
    %v1953 = vld [vmem:[#allocation5 + $0x2b0] sm:$0xf]
    %v1954 = vld [vmem:[#allocation5 + $0x2b8] sm:$0xf]
    %v1963 = vunpack.c.l.b16 %v1947
    %v1964 = vunpack.c.l.b16 %v1948
    %v1965 = vunpack.c.l.b16 %v1949
    %v1966 = vunpack.c.l.b16 %v1950
    %v1967 = vunpack.c.l.b16 %v1951
    %v1968 = vunpack.c.l.b16 %v1952
    %v1969 = vunpack.c.l.b16 %v1953
    %v1970 = vunpack.c.l.b16 %v1954
    %v1971 = vpack.c.b16 %v1964, %v1963
    %v1972 = vpack.c.b16 %v1966, %v1965
    %v1973 = vpack.c.b16 %v1968, %v1967
    %v1974 = vpack.c.b16 %v1970, %v1969
    %v1976 = vsel %vm1108, %v1971, 0
    %v1979 = vsel %vm1108, %v1972, 0
    %v1982 = vsel %vm1108, %v1973, 0
    %v1985 = vsel %vm1108, %v1974, 0
    %1987 = vmatprep.subr.bf16.mxu0 0
    %1988 = vmatpush1.bf16.msra.mxu0 %v1943
    %1989 = vmatprep.subr.bf16.mxu0 0
    %1990 = vmatpush1.bf16.msra.mxu0 %v1944
    %1991 = vmatprep.subr.bf16.mxu0 0
    %1992 = vmatpush1.bf16.msra.mxu0 %v1945
    %1993 = vmatprep.subr.bf16.mxu0 0
    %1994 = vmatpush1.bf16.msra.mxu0 %v1946
    %1995 = vmatprep.subr.bf16.mxu0 0
    %1996 = vmatpush1.bf16.msra.mxu0 %v108
    %1997 = vmatprep.subr.bf16.mxu0 0
    %1998 = vmatpush1.bf16.msra.mxu0 0
    %1999 = vmatprep.subr.bf16.mxu0 0
    %2000 = vmatpush1.bf16.msra.mxu0 0
    %2001 = vmatprep.subr.bf16.mxu0 0
    %2002 = vmatpush1.bf16.msra.mxu0 0
    %2003 = vmatprep.subr.bf16.mxu0 0
    %2004 = vmatpush1.bf16.msra.mxu0 0
    %2005 = vmatprep.subr.bf16.mxu0 0
    %2006 = vmatpush1.bf16.msra.mxu0 0
    %2007 = vmatprep.subr.bf16.mxu0 0
    %2008 = vmatpush1.bf16.msra.mxu0 0
    %2009 = vmatprep.subr.bf16.mxu0 0
    %2010 = vmatpush1.bf16.msra.mxu0 0
    %2011 = vmatprep.subr.bf16.mxu0 0
    %2012 = vmatpush1.bf16.msra.mxu0 0
    %2013 = vmatprep.subr.bf16.mxu0 0
    %2014 = vmatpush1.bf16.msra.mxu0 0
    %2015 = vmatprep.subr.bf16.mxu0 0
    %2016 = vmatpush1.bf16.msra.mxu0 0
    %2017 = vmatprep.subr.bf16.mxu0 0
    %2018 = vmatpush1.bf16.msra.mxu0 0
    %2019 = vmatprep.mubr.bf16.mxu0 0
    %2020 = vmatmul.mubr.bf16.gmra.mrb[0].mxu0 %v1976
    %v2021 = vpop.f32.mrb[0].mxu0
    %v2022 = vadd.f32 0.0, %v2021
    %v2023 = vpop.f32.mrb[0].mxu0
    %v2024 = vpop.f32.mrb[0].mxu0
    %v2025 = vadd.f32 0.0, %v2024
    %v2026 = vpop.f32.mrb[0].mxu0
    %2027 = vmatprep.mubr.bf16.mxu0 0
    %2028 = vmatmul.mubr.bf16.gmra.mrb[0].mxu0 %v1979
    %v2029 = vpop.f32.mrb[0].mxu0
    %v2030 = vadd.f32 0.0, %v2029
    %v2031 = vpop.f32.mrb[0].mxu0
    %v2032 = vpop.f32.mrb[0].mxu0
    %v2033 = vadd.f32 0.0, %v2032
    %v2034 = vpop.f32.mrb[0].mxu0
    %2035 = vmatprep.mubr.bf16.mxu0 0
    %2036 = vmatmul.mubr.bf16.gmra.mrb[0].mxu0 %v1982
    %v2037 = vpop.f32.mrb[0].mxu0
    %v2038 = vadd.f32 0.0, %v2037
    %v2039 = vpop.f32.mrb[0].mxu0
    %v2040 = vpop.f32.mrb[0].mxu0
    %v2041 = vadd.f32 0.0, %v2040
    %v2042 = vpop.f32.mrb[0].mxu0
    %2043 = vmatprep.mubr.bf16.mxu0 0
    %2044 = vmatmul.mubr.bf16.gmra.mrb[0].mxu0 %v1985
    %v2045 = vpop.f32.mrb[0].mxu0
    %v2046 = vadd.f32 0.0, %v2045
    %v2047 = vpop.f32.mrb[0].mxu0
    %v2048 = vpop.f32.mrb[0].mxu0
    %v2049 = vadd.f32 0.0, %v2048
    %v2050 = vpop.f32.mrb[0].mxu0
    %2051 = vdwg.mxu0
    %2052 = vst [vmem:[#allocation4] sm:$0xff] %v2022
    %2053 = vst [vmem:[#allocation4 + $0x8] sm:$0xff] %v2025
    %2054 = vst [vmem:[#allocation4 + $0x10] sm:$0xff] %v2030
    %2055 = vst [vmem:[#allocation4 + $0x18] sm:$0xff] %v2033
    %2056 = vst [vmem:[#allocation4 + $0x20] sm:$0xff] %v2038
    %2057 = vst [vmem:[#allocation4 + $0x28] sm:$0xff] %v2041
    %2058 = vst [vmem:[#allocation4 + $0x30] sm:$0xff] %v2046
    %2059 = vst [vmem:[#allocation4 + $0x38] sm:$0xff] %v2049
    %v2060 = vpack.c.bf16 %v2025, %v2022
    %v2061 = vpack.c.bf16 %v2033, %v2030
    %v2062 = vpack.c.bf16 %v2041, %v2038
    %v2063 = vpack.c.bf16 %v2049, %v2046
    %v2064 = vld [vmem:[#allocation5 + $0x2c0] sm:$0xf]
    %v2065 = vld [vmem:[#allocation5 + $0x2c8] sm:$0xf]
    %v2066 = vld [vmem:[#allocation5 + $0x2d0] sm:$0xf]
    %v2067 = vld [vmem:[#allocation5 + $0x2d8] sm:$0xf]
    %v2068 = vld [vmem:[#allocation5 + $0x2e0] sm:$0xf]
    %v2069 = vld [vmem:[#allocation5 + $0x2e8] sm:$0xf]
    %v2070 = vld [vmem:[#allocation5 + $0x2f0] sm:$0xf]
    %v2071 = vld [vmem:[#allocation5 + $0x2f8] sm:$0xf]
    %v2080 = vunpack.c.l.b16 %v2064
    %v2081 = vunpack.c.l.b16 %v2065
    %v2082 = vunpack.c.l.b16 %v2066
    %v2083 = vunpack.c.l.b16 %v2067
    %v2084 = vunpack.c.l.b16 %v2068
    %v2085 = vunpack.c.l.b16 %v2069
    %v2086 = vunpack.c.l.b16 %v2070
    %v2087 = vunpack.c.l.b16 %v2071
    %v2088 = vpack.c.b16 %v2081, %v2080
    %v2089 = vpack.c.b16 %v2083, %v2082
    %v2090 = vpack.c.b16 %v2085, %v2084
    %v2091 = vpack.c.b16 %v2087, %v2086
    %v2093 = vsel %vm1108, %v2088, 0
    %v2096 = vsel %vm1108, %v2089, 0
    %v2099 = vsel %vm1108, %v2090, 0
    %v2102 = vsel %vm1108, %v2091, 0
    %2104 = vmatprep.subr.bf16.mxu0 0
    %2105 = vmatpush1.bf16.msra.mxu0 %v2060
    %2106 = vmatprep.subr.bf16.mxu0 0
    %2107 = vmatpush1.bf16.msra.mxu0 %v2061
    %2108 = vmatprep.subr.bf16.mxu0 0
    %2109 = vmatpush1.bf16.msra.mxu0 %v2062
    %2110 = vmatprep.subr.bf16.mxu0 0
    %2111 = vmatpush1.bf16.msra.mxu0 %v2063
    %2112 = vmatprep.subr.bf16.mxu0 0
    %2113 = vmatpush1.bf16.msra.mxu0 %v108
    %2114 = vmatprep.subr.bf16.mxu0 0
    %2115 = vmatpush1.bf16.msra.mxu0 0
    %2116 = vmatprep.subr.bf16.mxu0 0
    %2117 = vmatpush1.bf16.msra.mxu0 0
    %2118 = vmatprep.subr.bf16.mxu0 0
    %2119 = vmatpush1.bf16.msra.mxu0 0
    %2120 = vmatprep.subr.bf16.mxu0 0
    %2121 = vmatpush1.bf16.msra.mxu0 0
    %2122 = vmatprep.subr.bf16.mxu0 0
    %2123 = vmatpush1.bf16.msra.mxu0 0
    %2124 = vmatprep.subr.bf16.mxu0 0
    %2125 = vmatpush1.bf16.msra.mxu0 0
    %2126 = vmatprep.subr.bf16.mxu0 0
    %2127 = vmatpush1.bf16.msra.mxu0 0
    %2128 = vmatprep.subr.bf16.mxu0 0
    %2129 = vmatpush1.bf16.msra.mxu0 0
    %2130 = vmatprep.subr.bf16.mxu0 0
    %2131 = vmatpush1.bf16.msra.mxu0 0
    %2132 = vmatprep.subr.bf16.mxu0 0
    %2133 = vmatpush1.bf16.msra.mxu0 0
    %2134 = vmatprep.subr.bf16.mxu0 0
    %2135 = vmatpush1.bf16.msra.mxu0 0
    %2136 = vmatprep.mubr.bf16.mxu0 0
    %2137 = vmatmul.mubr.bf16.gmra.mrb[0].mxu0 %v2093
    %v2138 = vpop.f32.mrb[0].mxu0
    %v2139 = vadd.f32 0.0, %v2138
    %v2140 = vpop.f32.mrb[0].mxu0
    %v2141 = vpop.f32.mrb[0].mxu0
    %v2142 = vadd.f32 0.0, %v2141
    %v2143 = vpop.f32.mrb[0].mxu0
    %2144 = vmatprep.mubr.bf16.mxu0 0
    %2145 = vmatmul.mubr.bf16.gmra.mrb[0].mxu0 %v2096
    %v2146 = vpop.f32.mrb[0].mxu0
    %v2147 = vadd.f32 0.0, %v2146
    %v2148 = vpop.f32.mrb[0].mxu0
    %v2149 = vpop.f32.mrb[0].mxu0
    %v2150 = vadd.f32 0.0, %v2149
    %v2151 = vpop.f32.mrb[0].mxu0
    %2152 = vmatprep.mubr.bf16.mxu0 0
    %2153 = vmatmul.mubr.bf16.gmra.mrb[0].mxu0 %v2099
    %v2154 = vpop.f32.mrb[0].mxu0
    %v2155 = vadd.f32 0.0, %v2154
    %v2156 = vpop.f32.mrb[0].mxu0
    %v2157 = vpop.f32.mrb[0].mxu0
    %v2158 = vadd.f32 0.0, %v2157
    %v2159 = vpop.f32.mrb[0].mxu0
    %2160 = vmatprep.mubr.bf16.mxu0 0
    %2161 = vmatmul.mubr.bf16.gmra.mrb[0].mxu0 %v2102
    %v2162 = vpop.f32.mrb[0].mxu0
    %v2163 = vadd.f32 0.0, %v2162
    %v2164 = vpop.f32.mrb[0].mxu0
    %v2165 = vpop.f32.mrb[0].mxu0
    %v2166 = vadd.f32 0.0, %v2165
    %v2167 = vpop.f32.mrb[0].mxu0
    %2168 = vdwg.mxu0
    %v2169 = vmax.f32 %v2139, 0.0
    %v2170 = vmax.f32 %v2142, 0.0
    %v2171 = vmax.f32 %v2147, 0.0
    %v2172 = vmax.f32 %v2150, 0.0
    %v2173 = vmax.f32 %v2155, 0.0
    %v2174 = vmax.f32 %v2158, 0.0
    %v2175 = vmax.f32 %v2163, 0.0
    %v2176 = vmax.f32 %v2166, 0.0
    %v2177 = vpack.c.bf16 %v2170, %v2169
    %v2178 = vpack.c.bf16 %v2172, %v2171
    %v2179 = vpack.c.bf16 %v2174, %v2173
    %v2180 = vpack.c.bf16 %v2176, %v2175
    %v2181 = vld [vmem:[#allocation5 + $0x300] sm:$0xf]
    %v2182 = vld [vmem:[#allocation5 + $0x308] sm:$0xf]
    %v2183 = vld [vmem:[#allocation5 + $0x310] sm:$0xf]
    %v2184 = vld [vmem:[#allocation5 + $0x318] sm:$0xf]
    %v2185 = vld [vmem:[#allocation5 + $0x320] sm:$0xf]
    %v2186 = vld [vmem:[#allocation5 + $0x328] sm:$0xf]
    %v2187 = vld [vmem:[#allocation5 + $0x330] sm:$0xf]
    %v2188 = vld [vmem:[#allocation5 + $0x338] sm:$0xf]
    %v2197 = vunpack.c.l.b16 %v2181
    %v2198 = vunpack.c.l.b16 %v2182
    %v2199 = vunpack.c.l.b16 %v2183
    %v2200 = vunpack.c.l.b16 %v2184
    %v2201 = vunpack.c.l.b16 %v2185
    %v2202 = vunpack.c.l.b16 %v2186
    %v2203 = vunpack.c.l.b16 %v2187
    %v2204 = vunpack.c.l.b16 %v2188
    %v2205 = vpack.c.b16 %v2198, %v2197
    %v2206 = vpack.c.b16 %v2200, %v2199
    %v2207 = vpack.c.b16 %v2202, %v2201
    %v2208 = vpack.c.b16 %v2204, %v2203
    %v2210 = vsel %vm1108, %v2205, 0
    %v2213 = vsel %vm1108, %v2206, 0
    %v2216 = vsel %vm1108, %v2207, 0
    %v2219 = vsel %vm1108, %v2208, 0
    %2221 = vmatprep.subr.bf16.mxu0 0
    %2222 = vmatpush1.bf16.msra.mxu0 %v2177
    %2223 = vmatprep.subr.bf16.mxu0 0
    %2224 = vmatpush1.bf16.msra.mxu0 %v2178
    %2225 = vmatprep.subr.bf16.mxu0 0
    %2226 = vmatpush1.bf16.msra.mxu0 %v2179
    %2227 = vmatprep.subr.bf16.mxu0 0
    %2228 = vmatpush1.bf16.msra.mxu0 %v2180
    %2229 = vmatprep.subr.bf16.mxu0 0
    %2230 = vmatpush1.bf16.msra.mxu0 %v108
    %2231 = vmatprep.subr.bf16.mxu0 0
    %2232 = vmatpush1.bf16.msra.mxu0 0
    %2233 = vmatprep.subr.bf16.mxu0 0
    %2234 = vmatpush1.bf16.msra.mxu0 0
    %2235 = vmatprep.subr.bf16.mxu0 0
    %2236 = vmatpush1.bf16.msra.mxu0 0
    %2237 = vmatprep.subr.bf16.mxu0 0
    %2238 = vmatpush1.bf16.msra.mxu0 0
    %2239 = vmatprep.subr.bf16.mxu0 0
    %2240 = vmatpush1.bf16.msra.mxu0 0
    %2241 = vmatprep.subr.bf16.mxu0 0
    %2242 = vmatpush1.bf16.msra.mxu0 0
    %2243 = vmatprep.subr.bf16.mxu0 0
    %2244 = vmatpush1.bf16.msra.mxu0 0
    %2245 = vmatprep.subr.bf16.mxu0 0
    %2246 = vmatpush1.bf16.msra.mxu0 0
    %2247 = vmatprep.subr.bf16.mxu0 0
    %2248 = vmatpush1.bf16.msra.mxu0 0
    %2249 = vmatprep.subr.bf16.mxu0 0
    %2250 = vmatpush1.bf16.msra.mxu0 0
    %2251 = vmatprep.subr.bf16.mxu0 0
    %2252 = vmatpush1.bf16.msra.mxu0 0
    %2253 = vmatprep.mubr.bf16.mxu0 0
    %2254 = vmatmul.mubr.bf16.gmra.mrb[0].mxu0 %v2210
    %v2255 = vpop.f32.mrb[0].mxu0
    %v2256 = vadd.f32 0.0, %v2255
    %v2257 = vpop.f32.mrb[0].mxu0
    %v2258 = vpop.f32.mrb[0].mxu0
    %v2259 = vadd.f32 0.0, %v2258
    %v2260 = vpop.f32.mrb[0].mxu0
    %2261 = vmatprep.mubr.bf16.mxu0 0
    %2262 = vmatmul.mubr.bf16.gmra.mrb[0].mxu0 %v2213
    %v2263 = vpop.f32.mrb[0].mxu0
    %v2264 = vadd.f32 0.0, %v2263
    %v2265 = vpop.f32.mrb[0].mxu0
    %v2266 = vpop.f32.mrb[0].mxu0
    %v2267 = vadd.f32 0.0, %v2266
    %v2268 = vpop.f32.mrb[0].mxu0
    %2269 = vmatprep.mubr.bf16.mxu0 0
    %2270 = vmatmul.mubr.bf16.gmra.mrb[0].mxu0 %v2216
    %v2271 = vpop.f32.mrb[0].mxu0
    %v2272 = vadd.f32 0.0, %v2271
    %v2273 = vpop.f32.mrb[0].mxu0
    %v2274 = vpop.f32.mrb[0].mxu0
    %v2275 = vadd.f32 0.0, %v2274
    %v2276 = vpop.f32.mrb[0].mxu0
    %2277 = vmatprep.mubr.bf16.mxu0 0
    %2278 = vmatmul.mubr.bf16.gmra.mrb[0].mxu0 %v2219
    %v2279 = vpop.f32.mrb[0].mxu0
    %v2280 = vadd.f32 0.0, %v2279
    %v2281 = vpop.f32.mrb[0].mxu0
    %v2282 = vpop.f32.mrb[0].mxu0
    %v2283 = vadd.f32 0.0, %v2282
    %v2284 = vpop.f32.mrb[0].mxu0
    %2285 = vdwg.mxu0
    %v2286 = vmax.f32 %v2256, 0.0
    %v2287 = vmax.f32 %v2259, 0.0
    %v2288 = vmax.f32 %v2264, 0.0
    %v2289 = vmax.f32 %v2267, 0.0
    %v2290 = vmax.f32 %v2272, 0.0
    %v2291 = vmax.f32 %v2275, 0.0
    %v2292 = vmax.f32 %v2280, 0.0
    %v2293 = vmax.f32 %v2283, 0.0
    %v2294 = vpack.c.bf16 %v2287, %v2286
    %v2295 = vpack.c.bf16 %v2289, %v2288
    %v2296 = vpack.c.bf16 %v2291, %v2290
    %v2297 = vpack.c.bf16 %v2293, %v2292
    %v2298 = vld [vmem:[#allocation5 + $0x340] sm:$0xf]
    %v2299 = vld [vmem:[#allocation5 + $0x348] sm:$0xf]
    %v2300 = vld [vmem:[#allocation5 + $0x350] sm:$0xf]
    %v2301 = vld [vmem:[#allocation5 + $0x358] sm:$0xf]
    %v2302 = vld [vmem:[#allocation5 + $0x360] sm:$0xf]
    %v2303 = vld [vmem:[#allocation5 + $0x368] sm:$0xf]
    %v2304 = vld [vmem:[#allocation5 + $0x370] sm:$0xf]
    %v2305 = vld [vmem:[#allocation5 + $0x378] sm:$0xf]
    %v2306 = vld [vmem:[#allocation5 + $0x380] sm:$0xf]
    %v2307 = vld [vmem:[#allocation5 + $0x388] sm:$0xf]
    %v2308 = vld [vmem:[#allocation5 + $0x390] sm:$0xf]
    %v2309 = vld [vmem:[#allocation5 + $0x398] sm:$0xf]
    %v2310 = vld [vmem:[#allocation5 + $0x3a0] sm:$0xf]
    %v2311 = vld [vmem:[#allocation5 + $0x3a8] sm:$0xf]
    %v2312 = vld [vmem:[#allocation5 + $0x3b0] sm:$0xf]
    %v2313 = vld [vmem:[#allocation5 + $0x3b8] sm:$0xf]
    %v2314 = vld [vmem:[#allocation5 + $0x3c0] sm:$0xf]
    %v2315 = vld [vmem:[#allocation5 + $0x3c8] sm:$0xf]
    %v2316 = vld [vmem:[#allocation5 + $0x3d0] sm:$0xf]
    %v2317 = vld [vmem:[#allocation5 + $0x3d8] sm:$0xf]
    %v2318 = vld [vmem:[#allocation5 + $0x3e0] sm:$0xf]
    %v2319 = vld [vmem:[#allocation5 + $0x3e8] sm:$0xf]
    %v2320 = vld [vmem:[#allocation5 + $0x3f0] sm:$0xf]
    %v2321 = vld [vmem:[#allocation5 + $0x3f8] sm:$0xf]
    %v2346 = vunpack.c.l.b16 %v2298
    %v2347 = vunpack.c.l.b16 %v2299
    %v2348 = vunpack.c.l.b16 %v2300
    %v2349 = vunpack.c.l.b16 %v2301
    %v2350 = vunpack.c.l.b16 %v2302
    %v2351 = vunpack.c.l.b16 %v2303
    %v2352 = vunpack.c.l.b16 %v2304
    %v2353 = vunpack.c.l.b16 %v2305
    %v2354 = vunpack.c.l.b16 %v2306
    %v2355 = vunpack.c.l.b16 %v2307
    %v2356 = vunpack.c.l.b16 %v2308
    %v2357 = vunpack.c.l.b16 %v2309
    %v2358 = vunpack.c.l.b16 %v2310
    %v2359 = vunpack.c.l.b16 %v2311
    %v2360 = vunpack.c.l.b16 %v2312
    %v2361 = vunpack.c.l.b16 %v2313
    %v2362 = vunpack.c.l.b16 %v2314
    %v2363 = vunpack.c.l.b16 %v2315
    %v2364 = vunpack.c.l.b16 %v2316
    %v2365 = vunpack.c.l.b16 %v2317
    %v2366 = vunpack.c.l.b16 %v2318
    %v2367 = vunpack.c.l.b16 %v2319
    %v2368 = vunpack.c.l.b16 %v2320
    %v2369 = vunpack.c.l.b16 %v2321
    %v2370 = vpack.c.b16 %v2347, %v2346
    %v2371 = vpack.c.b16 %v2349, %v2348
    %v2372 = vpack.c.b16 %v2351, %v2350
    %v2373 = vpack.c.b16 %v2353, %v2352
    %v2374 = vpack.c.b16 %v2355, %v2354
    %v2375 = vpack.c.b16 %v2357, %v2356
    %v2376 = vpack.c.b16 %v2359, %v2358
    %v2377 = vpack.c.b16 %v2361, %v2360
    %v2378 = vpack.c.b16 %v2363, %v2362
    %v2379 = vpack.c.b16 %v2365, %v2364
    %v2380 = vpack.c.b16 %v2367, %v2366
    %v2381 = vpack.c.b16 %v2369, %v2368
    %v2383 = vsel %vm1108, %v2370, 0
    %v2386 = vsel %vm1108, %v2371, 0
    %v2389 = vsel %vm1108, %v2372, 0
    %v2392 = vsel %vm1108, %v2373, 0
    %v2395 = vsel %vm1108, %v2374, 0
    %v2398 = vsel %vm1108, %v2375, 0
    %v2401 = vsel %vm1108, %v2376, 0
    %v2404 = vsel %vm1108, %v2377, 0
    %v2407 = vsel %vm1108, %v2378, 0
    %v2410 = vsel %vm1108, %v2379, 0
    %v2413 = vsel %vm1108, %v2380, 0
    %v2416 = vsel %vm1108, %v2381, 0
    %2418 = vmatprep.subr.bf16.mxu0 0
    %2419 = vmatpush1.bf16.msra.mxu0 %v2294
    %2420 = vmatprep.subr.bf16.mxu0 0
    %2421 = vmatpush1.bf16.msra.mxu0 %v2295
    %2422 = vmatprep.subr.bf16.mxu0 0
    %2423 = vmatpush1.bf16.msra.mxu0 %v2296
    %2424 = vmatprep.subr.bf16.mxu0 0
    %2425 = vmatpush1.bf16.msra.mxu0 %v2297
    %2426 = vmatprep.subr.bf16.mxu0 0
    %2427 = vmatpush1.bf16.msra.mxu0 %v108
    %2428 = vmatprep.subr.bf16.mxu0 0
    %2429 = vmatpush1.bf16.msra.mxu0 0
    %2430 = vmatprep.subr.bf16.mxu0 0
    %2431 = vmatpush1.bf16.msra.mxu0 0
    %2432 = vmatprep.subr.bf16.mxu0 0
    %2433 = vmatpush1.bf16.msra.mxu0 0
    %2434 = vmatprep.subr.bf16.mxu0 0
    %2435 = vmatpush1.bf16.msra.mxu0 0
    %2436 = vmatprep.subr.bf16.mxu0 0
    %2437 = vmatpush1.bf16.msra.mxu0 0
    %2438 = vmatprep.subr.bf16.mxu0 0
    %2439 = vmatpush1.bf16.msra.mxu0 0
    %2440 = vmatprep.subr.bf16.mxu0 0
    %2441 = vmatpush1.bf16.msra.mxu0 0
    %2442 = vmatprep.subr.bf16.mxu0 0
    %2443 = vmatpush1.bf16.msra.mxu0 0
    %2444 = vmatprep.subr.bf16.mxu0 0
    %2445 = vmatpush1.bf16.msra.mxu0 0
    %2446 = vmatprep.subr.bf16.mxu0 0
    %2447 = vmatpush1.bf16.msra.mxu0 0
    %2448 = vmatprep.subr.bf16.mxu0 0
    %2449 = vmatpush1.bf16.msra.mxu0 0
    %2450 = vmatprep.mubr.bf16.mxu0 0
    %2451 = vmatmul.mubr.bf16.gmra.mrb[0].mxu0 %v2383
    %v2452 = vpop.f32.mrb[0].mxu0
    %v2453 = vadd.f32 0.0, %v2452
    %v2454 = vpop.f32.mrb[0].mxu0
    %v2455 = vpop.f32.mrb[0].mxu0
    %v2456 = vadd.f32 0.0, %v2455
    %v2457 = vpop.f32.mrb[0].mxu0
    %2458 = vmatprep.mubr.bf16.mxu0 0
    %2459 = vmatmul.mubr.bf16.gmra.mrb[0].mxu0 %v2386
    %v2460 = vpop.f32.mrb[0].mxu0
    %v2461 = vadd.f32 0.0, %v2460
    %v2462 = vpop.f32.mrb[0].mxu0
    %v2463 = vpop.f32.mrb[0].mxu0
    %v2464 = vadd.f32 0.0, %v2463
    %v2465 = vpop.f32.mrb[0].mxu0
    %2466 = vmatprep.mubr.bf16.mxu0 0
    %2467 = vmatmul.mubr.bf16.gmra.mrb[0].mxu0 %v2389
    %v2468 = vpop.f32.mrb[0].mxu0
    %v2469 = vadd.f32 0.0, %v2468
    %v2470 = vpop.f32.mrb[0].mxu0
    %v2471 = vpop.f32.mrb[0].mxu0
    %v2472 = vadd.f32 0.0, %v2471
    %v2473 = vpop.f32.mrb[0].mxu0
    %2474 = vmatprep.mubr.bf16.mxu0 0
    %2475 = vmatmul.mubr.bf16.gmra.mrb[0].mxu0 %v2392
    %v2476 = vpop.f32.mrb[0].mxu0
    %v2477 = vadd.f32 0.0, %v2476
    %v2478 = vpop.f32.mrb[0].mxu0
    %v2479 = vpop.f32.mrb[0].mxu0
    %v2480 = vadd.f32 0.0, %v2479
    %v2481 = vpop.f32.mrb[0].mxu0
    %2482 = vmatprep.mubr.bf16.mxu0 0
    %2483 = vmatmul.mubr.bf16.gmra.mrb[0].mxu0 %v2395
    %v2484 = vpop.f32.mrb[0].mxu0
    %v2485 = vadd.f32 0.0, %v2484
    %v2486 = vpop.f32.mrb[0].mxu0
    %v2487 = vpop.f32.mrb[0].mxu0
    %v2488 = vadd.f32 0.0, %v2487
    %v2489 = vpop.f32.mrb[0].mxu0
    %2490 = vmatprep.mubr.bf16.mxu0 0
    %2491 = vmatmul.mubr.bf16.gmra.mrb[0].mxu0 %v2398
    %v2492 = vpop.f32.mrb[0].mxu0
    %v2493 = vadd.f32 0.0, %v2492
    %v2494 = vpop.f32.mrb[0].mxu0
    %v2495 = vpop.f32.mrb[0].mxu0
    %v2496 = vadd.f32 0.0, %v2495
    %v2497 = vpop.f32.mrb[0].mxu0
    %2498 = vmatprep.mubr.bf16.mxu0 0
    %2499 = vmatmul.mubr.bf16.gmra.mrb[0].mxu0 %v2401
    %v2500 = vpop.f32.mrb[0].mxu0
    %v2501 = vadd.f32 0.0, %v2500
    %v2502 = vpop.f32.mrb[0].mxu0
    %v2503 = vpop.f32.mrb[0].mxu0
    %v2504 = vadd.f32 0.0, %v2503
    %v2505 = vpop.f32.mrb[0].mxu0
    %2506 = vmatprep.mubr.bf16.mxu0 0
    %2507 = vmatmul.mubr.bf16.gmra.mrb[0].mxu0 %v2404
    %v2508 = vpop.f32.mrb[0].mxu0
    %v2509 = vadd.f32 0.0, %v2508
    %v2510 = vpop.f32.mrb[0].mxu0
    %v2511 = vpop.f32.mrb[0].mxu0
    %v2512 = vadd.f32 0.0, %v2511
    %v2513 = vpop.f32.mrb[0].mxu0
    %2514 = vmatprep.mubr.bf16.mxu0 0
    %2515 = vmatmul.mubr.bf16.gmra.mrb[0].mxu0 %v2407
    %v2516 = vpop.f32.mrb[0].mxu0
    %v2517 = vadd.f32 0.0, %v2516
    %v2518 = vpop.f32.mrb[0].mxu0
    %v2519 = vpop.f32.mrb[0].mxu0
    %v2520 = vadd.f32 0.0, %v2519
    %v2521 = vpop.f32.mrb[0].mxu0
    %2522 = vmatprep.mubr.bf16.mxu0 0
    %2523 = vmatmul.mubr.bf16.gmra.mrb[0].mxu0 %v2410
    %v2524 = vpop.f32.mrb[0].mxu0
    %v2525 = vadd.f32 0.0, %v2524
    %v2526 = vpop.f32.mrb[0].mxu0
    %v2527 = vpop.f32.mrb[0].mxu0
    %v2528 = vadd.f32 0.0, %v2527
    %v2529 = vpop.f32.mrb[0].mxu0
    %2530 = vmatprep.mubr.bf16.mxu0 0
    %2531 = vmatmul.mubr.bf16.gmra.mrb[0].mxu0 %v2413
    %v2532 = vpop.f32.mrb[0].mxu0
    %v2533 = vadd.f32 0.0, %v2532
    %v2534 = vpop.f32.mrb[0].mxu0
    %v2535 = vpop.f32.mrb[0].mxu0
    %v2536 = vadd.f32 0.0, %v2535
    %v2537 = vpop.f32.mrb[0].mxu0
    %2538 = vmatprep.mubr.bf16.mxu0 0
    %2539 = vmatmul.mubr.bf16.gmra.mrb[0].mxu0 %v2416
    %v2540 = vpop.f32.mrb[0].mxu0
    %v2541 = vadd.f32 0.0, %v2540
    %v2542 = vpop.f32.mrb[0].mxu0
    %v2543 = vpop.f32.mrb[0].mxu0
    %v2544 = vadd.f32 0.0, %v2543
    %v2545 = vpop.f32.mrb[0].mxu0
    %2546 = vdwg.mxu0
    %2547 = vxpose.xlu0.b32.start [1/16] %v2453, 128
    %2548 = vxpose.xlu0.b32.cont [2/16] %v2456, 128
    %2549 = vxpose.xlu0.b32.cont [3/16] %v2461, 128
    %2550 = vxpose.xlu0.b32.cont [4/16] %v2464, 128
    %2551 = vxpose.xlu0.b32.cont [5/16] %v2469, 128
    %2552 = vxpose.xlu0.b32.cont [6/16] %v2472, 128
    %2553 = vxpose.xlu0.b32.cont [7/16] %v2477, 128
    %2554 = vxpose.xlu0.b32.cont [8/16] %v2480, 128
    %2555 = vxpose.xlu0.b32.cont [9/16] 0.0, 128
    %2556 = vxpose.xlu0.b32.cont [10/16] 0.0, 128
    %2557 = vxpose.xlu0.b32.cont [11/16] 0.0, 128
    %2558 = vxpose.xlu0.b32.cont [12/16] 0.0, 128
    %2559 = vxpose.xlu0.b32.cont [13/16] 0.0, 128
    %2560 = vxpose.xlu0.b32.cont [14/16] 0.0, 128
    %2561 = vxpose.xlu0.b32.cont [15/16] 0.0, 128
    %2562 = vxpose.xlu0.b32.end [16/16] 0.0, 128
    %v2563 = vpop.trf.xlu0
    %v2564 = vpop.trf.xlu0
    %v2565 = vpop.trf.xlu0
    %v2566 = vpop.trf.xlu0
    %v2567 = vpop.trf.xlu0
    %v2568 = vpop.trf.xlu0
    %v2569 = vpop.trf.xlu0
    %v2570 = vpop.trf.xlu0
    %v2571 = vpop.trf.xlu0
    %v2572 = vpop.trf.xlu0
    %v2573 = vpop.trf.xlu0
    %v2574 = vpop.trf.xlu0
    %v2575 = vpop.trf.xlu0
    %v2576 = vpop.trf.xlu0
    %v2577 = vpop.trf.xlu0
    %v2578 = vpop.trf.xlu0
    %v2579 = vpack.c.bf16 %v2564, %v2563
    %v2580 = vpack.c.bf16 %v2566, %v2565
    %v2581 = vpack.c.bf16 %v2568, %v2567
    %v2582 = vpack.c.bf16 %v2570, %v2569
    %v2583 = vpack.c.bf16 %v2572, %v2571
    %v2584 = vpack.c.bf16 %v2574, %v2573
    %v2585 = vpack.c.bf16 %v2576, %v2575
    %v2586 = vpack.c.bf16 %v2578, %v2577
    %v2587 = vpack.c.bf16 %v2488, %v2485
    %v2588 = vpack.c.bf16 %v2496, %v2493
    %v2589 = vpack.c.bf16 %v2504, %v2501
    %v2590 = vpack.c.bf16 %v2512, %v2509
    %v2591 = vpack.c.bf16 %v2520, %v2517
    %v2592 = vpack.c.bf16 %v2528, %v2525
    %v2593 = vpack.c.bf16 %v2536, %v2533
    %v2594 = vpack.c.bf16 %v2544, %v2541
    %v2596 = vsel %vm1495, %v2579, 0
    %v2599 = vsel %vm1495, %v2580, 0
    %v2602 = vsel %vm1495, %v2581, 0
    %v2605 = vsel %vm1495, %v2582, 0
    %v2608 = vsel %vm1495, %v2583, 0
    %v2611 = vsel %vm1495, %v2584, 0
    %v2614 = vsel %vm1495, %v2585, 0
    %v2617 = vsel %vm1495, %v2586, 0
    %2619 = vmatprep.subr.bf16.mxu0 0
    %2620 = vmatpush1.bf16.msra.mxu0 %v2587
    %2621 = vmatprep.subr.bf16.mxu0 0
    %2622 = vmatpush1.bf16.msra.mxu0 %v2588
    %2623 = vmatprep.subr.bf16.mxu0 0
    %2624 = vmatpush1.bf16.msra.mxu0 %v2589
    %2625 = vmatprep.subr.bf16.mxu0 0
    %2626 = vmatpush1.bf16.msra.mxu0 %v2590
    %2627 = vmatprep.subr.bf16.mxu0 0
    %2628 = vmatpush1.bf16.msra.mxu0 0
    %2629 = vmatprep.subr.bf16.mxu0 0
    %2630 = vmatpush1.bf16.msra.mxu0 0
    %2631 = vmatprep.subr.bf16.mxu0 0
    %2632 = vmatpush1.bf16.msra.mxu0 0
    %2633 = vmatprep.subr.bf16.mxu0 0
    %2634 = vmatpush1.bf16.msra.mxu0 0
    %2635 = vmatprep.subr.bf16.mxu0 0
    %2636 = vmatpush1.bf16.msra.mxu0 0
    %2637 = vmatprep.subr.bf16.mxu0 0
    %2638 = vmatpush1.bf16.msra.mxu0 0
    %2639 = vmatprep.subr.bf16.mxu0 0
    %2640 = vmatpush1.bf16.msra.mxu0 0
    %2641 = vmatprep.subr.bf16.mxu0 0
    %2642 = vmatpush1.bf16.msra.mxu0 0
    %2643 = vmatprep.subr.bf16.mxu0 0
    %2644 = vmatpush1.bf16.msra.mxu0 0
    %2645 = vmatprep.subr.bf16.mxu0 0
    %2646 = vmatpush1.bf16.msra.mxu0 0
    %2647 = vmatprep.subr.bf16.mxu0 0
    %2648 = vmatpush1.bf16.msra.mxu0 0
    %2649 = vmatprep.subr.bf16.mxu0 0
    %2650 = vmatpush1.bf16.msra.mxu0 0
    %2651 = vmatprep.mubr.bf16.mxu0 0
    %2652 = vmatmul.mubr.bf16.gmra.mrb[0].mxu0 %v2596
    %v2653 = vpop.f32.mrb[0].mxu0
    %v2654 = vadd.f32 0.0, %v2653
    %v2655 = vpop.f32.mrb[0].mxu0
    %v2656 = vpop.f32.mrb[0].mxu0
    %v2657 = vadd.f32 0.0, %v2656
    %v2658 = vpop.f32.mrb[0].mxu0
    %2659 = vmatprep.mubr.bf16.mxu0 0
    %2660 = vmatmul.mubr.bf16.gmra.mrb[0].mxu0 %v2599
    %v2661 = vpop.f32.mrb[0].mxu0
    %v2662 = vadd.f32 0.0, %v2661
    %v2663 = vpop.f32.mrb[0].mxu0
    %v2664 = vpop.f32.mrb[0].mxu0
    %v2665 = vadd.f32 0.0, %v2664
    %v2666 = vpop.f32.mrb[0].mxu0
    %2667 = vmatprep.mubr.bf16.mxu0 0
    %2668 = vmatmul.mubr.bf16.gmra.mrb[0].mxu0 %v2602
    %v2669 = vpop.f32.mrb[0].mxu0
    %v2670 = vadd.f32 0.0, %v2669
    %v2671 = vpop.f32.mrb[0].mxu0
    %v2672 = vpop.f32.mrb[0].mxu0
    %v2673 = vadd.f32 0.0, %v2672
    %v2674 = vpop.f32.mrb[0].mxu0
    %2675 = vmatprep.mubr.bf16.mxu0 0
    %2676 = vmatmul.mubr.bf16.gmra.mrb[0].mxu0 %v2605
    %v2677 = vpop.f32.mrb[0].mxu0
    %v2678 = vadd.f32 0.0, %v2677
    %v2679 = vpop.f32.mrb[0].mxu0
    %v2680 = vpop.f32.mrb[0].mxu0
    %v2681 = vadd.f32 0.0, %v2680
    %v2682 = vpop.f32.mrb[0].mxu0
    %2683 = vmatprep.mubr.bf16.mxu0 0
    %2684 = vmatmul.mubr.bf16.gmra.mrb[0].mxu0 %v2608
    %v2685 = vpop.f32.mrb[0].mxu0
    %v2686 = vadd.f32 0.0, %v2685
    %v2687 = vpop.f32.mrb[0].mxu0
    %v2688 = vpop.f32.mrb[0].mxu0
    %v2689 = vadd.f32 0.0, %v2688
    %v2690 = vpop.f32.mrb[0].mxu0
    %2691 = vmatprep.mubr.bf16.mxu0 0
    %2692 = vmatmul.mubr.bf16.gmra.mrb[0].mxu0 %v2611
    %v2693 = vpop.f32.mrb[0].mxu0
    %v2694 = vadd.f32 0.0, %v2693
    %v2695 = vpop.f32.mrb[0].mxu0
    %v2696 = vpop.f32.mrb[0].mxu0
    %v2697 = vadd.f32 0.0, %v2696
    %v2698 = vpop.f32.mrb[0].mxu0
    %2699 = vmatprep.mubr.bf16.mxu0 0
    %2700 = vmatmul.mubr.bf16.gmra.mrb[0].mxu0 %v2614
    %v2701 = vpop.f32.mrb[0].mxu0
    %v2702 = vadd.f32 0.0, %v2701
    %v2703 = vpop.f32.mrb[0].mxu0
    %v2704 = vpop.f32.mrb[0].mxu0
    %v2705 = vadd.f32 0.0, %v2704
    %v2706 = vpop.f32.mrb[0].mxu0
    %2707 = vmatprep.mubr.bf16.mxu0 0
    %2708 = vmatmul.mubr.bf16.gmra.mrb[0].mxu0 %v2617
    %v2709 = vpop.f32.mrb[0].mxu0
    %v2710 = vadd.f32 0.0, %v2709
    %v2711 = vpop.f32.mrb[0].mxu0
    %v2712 = vpop.f32.mrb[0].mxu0
    %v2713 = vadd.f32 0.0, %v2712
    %v2714 = vpop.f32.mrb[0].mxu0
    %2715 = vdwg.mxu0
    %2716 = vmax.xlane.f32.xlu0 %v2654
    %v2717 = vpop.xlane.xlu0 %2716
    %2718 = vmax.xlane.f32.xlu0 %v2657
    %v2719 = vpop.xlane.xlu0 %2718
    %2720 = vmax.xlane.f32.xlu0 %v2662
    %v2721 = vpop.xlane.xlu0 %2720
    %2722 = vmax.xlane.f32.xlu0 %v2665
    %v2723 = vpop.xlane.xlu0 %2722
    %2724 = vmax.xlane.f32.xlu0 %v2670
    %v2725 = vpop.xlane.xlu0 %2724
    %2726 = vmax.xlane.f32.xlu0 %v2673
    %v2727 = vpop.xlane.xlu0 %2726
    %2728 = vmax.xlane.f32.xlu0 %v2678
    %v2729 = vpop.xlane.xlu0 %2728
    %2730 = vmax.xlane.f32.xlu0 %v2681
    %v2731 = vpop.xlane.xlu0 %2730
    %2732 = vmax.xlane.f32.xlu0 %v2686
    %v2733 = vpop.xlane.xlu0 %2732
    %2734 = vmax.xlane.f32.xlu0 %v2689
    %v2735 = vpop.xlane.xlu0 %2734
    %2736 = vmax.xlane.f32.xlu0 %v2694
    %v2737 = vpop.xlane.xlu0 %2736
    %2738 = vmax.xlane.f32.xlu0 %v2697
    %v2739 = vpop.xlane.xlu0 %2738
    %2740 = vmax.xlane.f32.xlu0 %v2702
    %v2741 = vpop.xlane.xlu0 %2740
    %2742 = vmax.xlane.f32.xlu0 %v2705
    %v2743 = vpop.xlane.xlu0 %2742
    %2744 = vmax.xlane.f32.xlu0 %v2710
    %v2745 = vpop.xlane.xlu0 %2744
    %2746 = vmax.xlane.f32.xlu0 %v2713
    %v2747 = vpop.xlane.xlu0 %2746
    %v2748 = vsub.f32 %v2654, %v2717
    %v2749 = vsub.f32 %v2657, %v2719
    %v2750 = vsub.f32 %v2662, %v2721
    %v2751 = vsub.f32 %v2665, %v2723
    %v2752 = vsub.f32 %v2670, %v2725
    %v2753 = vsub.f32 %v2673, %v2727
    %v2754 = vsub.f32 %v2678, %v2729
    %v2755 = vsub.f32 %v2681, %v2731
    %v2756 = vsub.f32 %v2686, %v2733
    %v2757 = vsub.f32 %v2689, %v2735
    %v2758 = vsub.f32 %v2694, %v2737
    %v2759 = vsub.f32 %v2697, %v2739
    %v2760 = vsub.f32 %v2702, %v2741
    %v2761 = vsub.f32 %v2705, %v2743
    %v2762 = vsub.f32 %v2710, %v2745
    %v2763 = vsub.f32 %v2713, %v2747
    %v2764 = vmul.f32 %v2748, 1.442695
    %v2765 = vpow.pop %v2764
    %v2766 = vmul.f32 %v2749, 1.442695
    %v2767 = vpow.pop %v2766
    %v2768 = vmul.f32 %v2750, 1.442695
    %v2769 = vpow.pop %v2768
    %v2770 = vmul.f32 %v2751, 1.442695
    %v2771 = vpow.pop %v2770
    %v2772 = vmul.f32 %v2752, 1.442695
    %v2773 = vpow.pop %v2772
    %v2774 = vmul.f32 %v2753, 1.442695
    %v2775 = vpow.pop %v2774
    %v2776 = vmul.f32 %v2754, 1.442695
    %v2777 = vpow.pop %v2776
    %v2778 = vmul.f32 %v2755, 1.442695
    %v2779 = vpow.pop %v2778
    %v2780 = vmul.f32 %v2756, 1.442695
    %v2781 = vpow.pop %v2780
    %v2782 = vmul.f32 %v2757, 1.442695
    %v2783 = vpow.pop %v2782
    %v2784 = vmul.f32 %v2758, 1.442695
    %v2785 = vpow.pop %v2784
    %v2786 = vmul.f32 %v2759, 1.442695
    %v2787 = vpow.pop %v2786
    %v2788 = vmul.f32 %v2760, 1.442695
    %v2789 = vpow.pop %v2788
    %v2790 = vmul.f32 %v2761, 1.442695
    %v2791 = vpow.pop %v2790
    %v2792 = vmul.f32 %v2762, 1.442695
    %v2793 = vpow.pop %v2792
    %v2794 = vmul.f32 %v2763, 1.442695
    %v2795 = vpow.pop %v2794
    %2796 = vadd.xlane.f32.xlu0 %v2765
    %v2797 = vpop.xlane.xlu0 %2796
    %2798 = vadd.xlane.f32.xlu0 %v2767
    %v2799 = vpop.xlane.xlu0 %2798
    %2800 = vadd.xlane.f32.xlu0 %v2769
    %v2801 = vpop.xlane.xlu0 %2800
    %2802 = vadd.xlane.f32.xlu0 %v2771
    %v2803 = vpop.xlane.xlu0 %2802
    %2804 = vadd.xlane.f32.xlu0 %v2773
    %v2805 = vpop.xlane.xlu0 %2804
    %2806 = vadd.xlane.f32.xlu0 %v2775
    %v2807 = vpop.xlane.xlu0 %2806
    %2808 = vadd.xlane.f32.xlu0 %v2777
    %v2809 = vpop.xlane.xlu0 %2808
    %2810 = vadd.xlane.f32.xlu0 %v2779
    %v2811 = vpop.xlane.xlu0 %2810
    %2812 = vadd.xlane.f32.xlu0 %v2781
    %v2813 = vpop.xlane.xlu0 %2812
    %2814 = vadd.xlane.f32.xlu0 %v2783
    %v2815 = vpop.xlane.xlu0 %2814
    %2816 = vadd.xlane.f32.xlu0 %v2785
    %v2817 = vpop.xlane.xlu0 %2816
    %2818 = vadd.xlane.f32.xlu0 %v2787
    %v2819 = vpop.xlane.xlu0 %2818
    %2820 = vadd.xlane.f32.xlu0 %v2789
    %v2821 = vpop.xlane.xlu0 %2820
    %2822 = vadd.xlane.f32.xlu0 %v2791
    %v2823 = vpop.xlane.xlu0 %2822
    %2824 = vadd.xlane.f32.xlu0 %v2793
    %v2825 = vpop.xlane.xlu0 %2824
    %2826 = vadd.xlane.f32.xlu0 %v2795
    %v2827 = vpop.xlane.xlu0 %2826
    %v2828 = vrcp.pop %v2797
    %v2829 = vmul.f32 %v2765, %v2828
    %v2830 = vrcp.pop %v2799
    %v2831 = vmul.f32 %v2767, %v2830
    %v2832 = vrcp.pop %v2801
    %v2833 = vmul.f32 %v2769, %v2832
    %v2834 = vrcp.pop %v2803
    %v2835 = vmul.f32 %v2771, %v2834
    %v2836 = vrcp.pop %v2805
    %v2837 = vmul.f32 %v2773, %v2836
    %v2838 = vrcp.pop %v2807
    %v2839 = vmul.f32 %v2775, %v2838
    %v2840 = vrcp.pop %v2809
    %v2841 = vmul.f32 %v2777, %v2840
    %v2842 = vrcp.pop %v2811
    %v2843 = vmul.f32 %v2779, %v2842
    %v2844 = vrcp.pop %v2813
    %v2845 = vmul.f32 %v2781, %v2844
    %v2846 = vrcp.pop %v2815
    %v2847 = vmul.f32 %v2783, %v2846
    %v2848 = vrcp.pop %v2817
    %v2849 = vmul.f32 %v2785, %v2848
    %v2850 = vrcp.pop %v2819
    %v2851 = vmul.f32 %v2787, %v2850
    %v2852 = vrcp.pop %v2821
    %v2853 = vmul.f32 %v2789, %v2852
    %v2854 = vrcp.pop %v2823
    %v2855 = vmul.f32 %v2791, %v2854
    %v2856 = vrcp.pop %v2825
    %v2857 = vmul.f32 %v2793, %v2856
    %v2858 = vrcp.pop %v2827
    %v2859 = vmul.f32 %v2795, %v2858
    %v2860 = vpack.c.bf16 %v2831, %v2829
    %v2861 = vpack.c.bf16 %v2835, %v2833
    %v2862 = vpack.c.bf16 %v2839, %v2837
    %v2863 = vpack.c.bf16 %v2843, %v2841
    %v2864 = vpack.c.bf16 %v2847, %v2845
    %v2865 = vpack.c.bf16 %v2851, %v2849
    %v2866 = vpack.c.bf16 %v2855, %v2853
    %v2867 = vpack.c.bf16 %v2859, %v2857
    %2868 = vmatprep.subr.bf16.mxu0 0
    %2869 = vmatpush1.bf16.xpose.msra.mxu0 %v2860
    %2870 = vmatprep.subr.bf16.mxu0 0
    %2871 = vmatpush1.bf16.xpose.msra.mxu0 %v2861
    %2872 = vmatprep.subr.bf16.mxu0 0
    %2873 = vmatpush1.bf16.xpose.msra.mxu0 %v2862
    %2874 = vmatprep.subr.bf16.mxu0 0
    %2875 = vmatpush1.bf16.xpose.msra.mxu0 %v2863
    %2876 = vmatprep.subr.bf16.mxu0 0
    %2877 = vmatpush1.bf16.xpose.msra.mxu0 %v2864
    %2878 = vmatprep.subr.bf16.mxu0 0
    %2879 = vmatpush1.bf16.xpose.msra.mxu0 %v2865
    %2880 = vmatprep.subr.bf16.mxu0 0
    %2881 = vmatpush1.bf16.xpose.msra.mxu0 %v2866
    %2882 = vmatprep.subr.bf16.mxu0 0
    %2883 = vmatpush1.bf16.xpose.msra.mxu0 %v2867
    %2884 = vmatprep.subr.bf16.mxu0 0
    %2885 = vmatpush1.bf16.xpose.msra.mxu0 0
    %2886 = vmatprep.subr.bf16.mxu0 0
    %2887 = vmatpush1.bf16.xpose.msra.mxu0 0
    %2888 = vmatprep.subr.bf16.mxu0 0
    %2889 = vmatpush1.bf16.xpose.msra.mxu0 0
    %2890 = vmatprep.subr.bf16.mxu0 0
    %2891 = vmatpush1.bf16.xpose.msra.mxu0 0
    %2892 = vmatprep.subr.bf16.mxu0 0
    %2893 = vmatpush1.bf16.xpose.msra.mxu0 0
    %2894 = vmatprep.subr.bf16.mxu0 0
    %2895 = vmatpush1.bf16.xpose.msra.mxu0 0
    %2896 = vmatprep.subr.bf16.mxu0 0
    %2897 = vmatpush1.bf16.xpose.msra.mxu0 0
    %2898 = vmatprep.subr.bf16.mxu0 0
    %2899 = vmatpush1.bf16.xpose.msra.mxu0 0
    %2900 = vmatprep.mubr.bf16.mxu0 0
    %2901 = vmatmul.mubr.bf16.gmra.mrb[0].mxu0 %v2591
    %v2902 = vpop.f32.mrb[0].mxu0
    %v2903 = vadd.f32 0.0, %v2902
    %v2904 = vpop.f32.mrb[0].mxu0
    %v2905 = vpop.f32.mrb[0].mxu0
    %v2906 = vadd.f32 0.0, %v2905
    %v2907 = vpop.f32.mrb[0].mxu0
    %2908 = vmatprep.mubr.bf16.mxu0 0
    %2909 = vmatmul.mubr.bf16.gmra.mrb[0].mxu0 %v2592
    %v2910 = vpop.f32.mrb[0].mxu0
    %v2911 = vadd.f32 0.0, %v2910
    %v2912 = vpop.f32.mrb[0].mxu0
    %v2913 = vpop.f32.mrb[0].mxu0
    %v2914 = vadd.f32 0.0, %v2913
    %v2915 = vpop.f32.mrb[0].mxu0
    %2916 = vmatprep.mubr.bf16.mxu0 0
    %2917 = vmatmul.mubr.bf16.gmra.mrb[0].mxu0 %v2593
    %v2918 = vpop.f32.mrb[0].mxu0
    %v2919 = vadd.f32 0.0, %v2918
    %v2920 = vpop.f32.mrb[0].mxu0
    %v2921 = vpop.f32.mrb[0].mxu0
    %v2922 = vadd.f32 0.0, %v2921
    %v2923 = vpop.f32.mrb[0].mxu0
    %2924 = vmatprep.mubr.bf16.mxu0 0
    %2925 = vmatmul.mubr.bf16.gmra.mrb[0].mxu0 %v2594
    %v2926 = vpop.f32.mrb[0].mxu0
    %v2927 = vadd.f32 0.0, %v2926
    %v2928 = vpop.f32.mrb[0].mxu0
    %v2929 = vpop.f32.mrb[0].mxu0
    %v2930 = vadd.f32 0.0, %v2929
    %v2931 = vpop.f32.mrb[0].mxu0
    %2932 = vdwg.mxu0
    %v2933 = vpack.c.bf16 %v2906, %v2903
    %v2934 = vpack.c.bf16 %v2914, %v2911
    %v2935 = vpack.c.bf16 %v2922, %v2919
    %v2936 = vpack.c.bf16 %v2930, %v2927
    %v2937 = vld [vmem:[#allocation5 + $0x400] sm:$0xf]
    %v2938 = vld [vmem:[#allocation5 + $0x408] sm:$0xf]
    %v2939 = vld [vmem:[#allocation5 + $0x410] sm:$0xf]
    %v2940 = vld [vmem:[#allocation5 + $0x418] sm:$0xf]
    %v2941 = vld [vmem:[#allocation5 + $0x420] sm:$0xf]
    %v2942 = vld [vmem:[#allocation5 + $0x428] sm:$0xf]
    %v2943 = vld [vmem:[#allocation5 + $0x430] sm:$0xf]
    %v2944 = vld [vmem:[#allocation5 + $0x438] sm:$0xf]
    %v2953 = vunpack.c.l.b16 %v2937
    %v2954 = vunpack.c.l.b16 %v2938
    %v2955 = vunpack.c.l.b16 %v2939
    %v2956 = vunpack.c.l.b16 %v2940
    %v2957 = vunpack.c.l.b16 %v2941
    %v2958 = vunpack.c.l.b16 %v2942
    %v2959 = vunpack.c.l.b16 %v2943
    %v2960 = vunpack.c.l.b16 %v2944
    %v2961 = vpack.c.b16 %v2954, %v2953
    %v2962 = vpack.c.b16 %v2956, %v2955
    %v2963 = vpack.c.b16 %v2958, %v2957
    %v2964 = vpack.c.b16 %v2960, %v2959
    %v2966 = vsel %vm1108, %v2961, 0
    %v2969 = vsel %vm1108, %v2962, 0
    %v2972 = vsel %vm1108, %v2963, 0
    %v2975 = vsel %vm1108, %v2964, 0
    %2977 = vmatprep.subr.bf16.mxu0 0
    %2978 = vmatpush1.bf16.msra.mxu0 %v2933
    %2979 = vmatprep.subr.bf16.mxu0 0
    %2980 = vmatpush1.bf16.msra.mxu0 %v2934
    %2981 = vmatprep.subr.bf16.mxu0 0
    %2982 = vmatpush1.bf16.msra.mxu0 %v2935
    %2983 = vmatprep.subr.bf16.mxu0 0
    %2984 = vmatpush1.bf16.msra.mxu0 %v2936
    %2985 = vmatprep.subr.bf16.mxu0 0
    %2986 = vmatpush1.bf16.msra.mxu0 %v108
    %2987 = vmatprep.subr.bf16.mxu0 0
    %2988 = vmatpush1.bf16.msra.mxu0 0
    %2989 = vmatprep.subr.bf16.mxu0 0
    %2990 = vmatpush1.bf16.msra.mxu0 0
    %2991 = vmatprep.subr.bf16.mxu0 0
    %2992 = vmatpush1.bf16.msra.mxu0 0
    %2993 = vmatprep.subr.bf16.mxu0 0
    %2994 = vmatpush1.bf16.msra.mxu0 0
    %2995 = vmatprep.subr.bf16.mxu0 0
    %2996 = vmatpush1.bf16.msra.mxu0 0
    %2997 = vmatprep.subr.bf16.mxu0 0
    %2998 = vmatpush1.bf16.msra.mxu0 0
    %2999 = vmatprep.subr.bf16.mxu0 0
    %3000 = vmatpush1.bf16.msra.mxu0 0
    %3001 = vmatprep.subr.bf16.mxu0 0
    %3002 = vmatpush1.bf16.msra.mxu0 0
    %3003 = vmatprep.subr.bf16.mxu0 0
    %3004 = vmatpush1.bf16.msra.mxu0 0
    %3005 = vmatprep.subr.bf16.mxu0 0
    %3006 = vmatpush1.bf16.msra.mxu0 0
    %3007 = vmatprep.subr.bf16.mxu0 0
    %3008 = vmatpush1.bf16.msra.mxu0 0
    %3009 = vmatprep.mubr.bf16.mxu0 0
    %3010 = vmatmul.mubr.bf16.gmra.mrb[0].mxu0 %v2966
    %v3011 = vpop.f32.mrb[0].mxu0
    %v3012 = vadd.f32 %v2286, %v3011
    %v3013 = vpop.f32.mrb[0].mxu0
    %v3014 = vpop.f32.mrb[0].mxu0
    %v3015 = vadd.f32 %v2287, %v3014
    %v3016 = vpop.f32.mrb[0].mxu0
    %3017 = vmatprep.mubr.bf16.mxu0 0
    %3018 = vmatmul.mubr.bf16.gmra.mrb[0].mxu0 %v2969
    %v3019 = vpop.f32.mrb[0].mxu0
    %v3020 = vadd.f32 %v2288, %v3019
    %v3021 = vpop.f32.mrb[0].mxu0
    %v3022 = vpop.f32.mrb[0].mxu0
    %v3023 = vadd.f32 %v2289, %v3022
    %v3024 = vpop.f32.mrb[0].mxu0
    %3025 = vmatprep.mubr.bf16.mxu0 0
    %3026 = vmatmul.mubr.bf16.gmra.mrb[0].mxu0 %v2972
    %v3027 = vpop.f32.mrb[0].mxu0
    %v3028 = vadd.f32 %v2290, %v3027
    %v3029 = vpop.f32.mrb[0].mxu0
    %v3030 = vpop.f32.mrb[0].mxu0
    %v3031 = vadd.f32 %v2291, %v3030
    %v3032 = vpop.f32.mrb[0].mxu0
    %3033 = vmatprep.mubr.bf16.mxu0 0
    %3034 = vmatmul.mubr.bf16.gmra.mrb[0].mxu0 %v2975
    %v3035 = vpop.f32.mrb[0].mxu0
    %v3036 = vadd.f32 %v2292, %v3035
    %v3037 = vpop.f32.mrb[0].mxu0
    %v3038 = vpop.f32.mrb[0].mxu0
    %v3039 = vadd.f32 %v2293, %v3038
    %v3040 = vpop.f32.mrb[0].mxu0
    %3041 = vdwg.mxu0
    %v3042 = vpack.c.bf16 %v3015, %v3012
    %v3043 = vpack.c.bf16 %v3023, %v3020
    %v3044 = vpack.c.bf16 %v3031, %v3028
    %v3045 = vpack.c.bf16 %v3039, %v3036
    %v3046 = vld [vmem:[#allocation5 + $0x440] sm:$0xf]
    %v3047 = vld [vmem:[#allocation5 + $0x448] sm:$0xf]
    %v3048 = vld [vmem:[#allocation5 + $0x450] sm:$0xf]
    %v3049 = vld [vmem:[#allocation5 + $0x458] sm:$0xf]
    %v3050 = vld [vmem:[#allocation5 + $0x460] sm:$0xf]
    %v3051 = vld [vmem:[#allocation5 + $0x468] sm:$0xf]
    %v3052 = vld [vmem:[#allocation5 + $0x470] sm:$0xf]
    %v3053 = vld [vmem:[#allocation5 + $0x478] sm:$0xf]
    %v3062 = vunpack.c.l.b16 %v3046
    %v3063 = vunpack.c.l.b16 %v3047
    %v3064 = vunpack.c.l.b16 %v3048
    %v3065 = vunpack.c.l.b16 %v3049
    %v3066 = vunpack.c.l.b16 %v3050
    %v3067 = vunpack.c.l.b16 %v3051
    %v3068 = vunpack.c.l.b16 %v3052
    %v3069 = vunpack.c.l.b16 %v3053
    %v3070 = vpack.c.b16 %v3063, %v3062
    %v3071 = vpack.c.b16 %v3065, %v3064
    %v3072 = vpack.c.b16 %v3067, %v3066
    %v3073 = vpack.c.b16 %v3069, %v3068
    %v3075 = vsel %vm1108, %v3070, 0
    %v3078 = vsel %vm1108, %v3071, 0
    %v3081 = vsel %vm1108, %v3072, 0
    %v3084 = vsel %vm1108, %v3073, 0
    %3086 = vmatprep.subr.bf16.mxu0 0
    %3087 = vmatpush1.bf16.msra.mxu0 %v3042
    %3088 = vmatprep.subr.bf16.mxu0 0
    %3089 = vmatpush1.bf16.msra.mxu0 %v3043
    %3090 = vmatprep.subr.bf16.mxu0 0
    %3091 = vmatpush1.bf16.msra.mxu0 %v3044
    %3092 = vmatprep.subr.bf16.mxu0 0
    %3093 = vmatpush1.bf16.msra.mxu0 %v3045
    %3094 = vmatprep.subr.bf16.mxu0 0
    %3095 = vmatpush1.bf16.msra.mxu0 %v108
    %3096 = vmatprep.subr.bf16.mxu0 0
    %3097 = vmatpush1.bf16.msra.mxu0 0
    %3098 = vmatprep.subr.bf16.mxu0 0
    %3099 = vmatpush1.bf16.msra.mxu0 0
    %3100 = vmatprep.subr.bf16.mxu0 0
    %3101 = vmatpush1.bf16.msra.mxu0 0
    %3102 = vmatprep.subr.bf16.mxu0 0
    %3103 = vmatpush1.bf16.msra.mxu0 0
    %3104 = vmatprep.subr.bf16.mxu0 0
    %3105 = vmatpush1.bf16.msra.mxu0 0
    %3106 = vmatprep.subr.bf16.mxu0 0
    %3107 = vmatpush1.bf16.msra.mxu0 0
    %3108 = vmatprep.subr.bf16.mxu0 0
    %3109 = vmatpush1.bf16.msra.mxu0 0
    %3110 = vmatprep.subr.bf16.mxu0 0
    %3111 = vmatpush1.bf16.msra.mxu0 0
    %3112 = vmatprep.subr.bf16.mxu0 0
    %3113 = vmatpush1.bf16.msra.mxu0 0
    %3114 = vmatprep.subr.bf16.mxu0 0
    %3115 = vmatpush1.bf16.msra.mxu0 0
    %3116 = vmatprep.subr.bf16.mxu0 0
    %3117 = vmatpush1.bf16.msra.mxu0 0
    %3118 = vmatprep.mubr.bf16.mxu0 0
    %3119 = vmatmul.mubr.bf16.gmra.mrb[0].mxu0 %v3075
    %v3120 = vpop.f32.mrb[0].mxu0
    %v3121 = vadd.f32 0.0, %v3120
    %v3122 = vpop.f32.mrb[0].mxu0
    %v3123 = vpop.f32.mrb[0].mxu0
    %v3124 = vadd.f32 0.0, %v3123
    %v3125 = vpop.f32.mrb[0].mxu0
    %3126 = vmatprep.mubr.bf16.mxu0 0
    %3127 = vmatmul.mubr.bf16.gmra.mrb[0].mxu0 %v3078
    %v3128 = vpop.f32.mrb[0].mxu0
    %v3129 = vadd.f32 0.0, %v3128
    %v3130 = vpop.f32.mrb[0].mxu0
    %v3131 = vpop.f32.mrb[0].mxu0
    %v3132 = vadd.f32 0.0, %v3131
    %v3133 = vpop.f32.mrb[0].mxu0
    %3134 = vmatprep.mubr.bf16.mxu0 0
    %3135 = vmatmul.mubr.bf16.gmra.mrb[0].mxu0 %v3081
    %v3136 = vpop.f32.mrb[0].mxu0
    %v3137 = vadd.f32 0.0, %v3136
    %v3138 = vpop.f32.mrb[0].mxu0
    %v3139 = vpop.f32.mrb[0].mxu0
    %v3140 = vadd.f32 0.0, %v3139
    %v3141 = vpop.f32.mrb[0].mxu0
    %3142 = vmatprep.mubr.bf16.mxu0 0
    %3143 = vmatmul.mubr.bf16.gmra.mrb[0].mxu0 %v3084
    %v3144 = vpop.f32.mrb[0].mxu0
    %v3145 = vadd.f32 0.0, %v3144
    %v3146 = vpop.f32.mrb[0].mxu0
    %v3147 = vpop.f32.mrb[0].mxu0
    %v3148 = vadd.f32 0.0, %v3147
    %v3149 = vpop.f32.mrb[0].mxu0
    %3150 = vdwg.mxu0
    %v3151 = vpack.c.bf16 %v3124, %v3121
    %v3152 = vpack.c.bf16 %v3132, %v3129
    %v3153 = vpack.c.bf16 %v3140, %v3137
    %v3154 = vpack.c.bf16 %v3148, %v3145
    %v3155 = vld [vmem:[#allocation5 + $0x480] sm:$0xf]
    %v3156 = vld [vmem:[#allocation5 + $0x488] sm:$0xf]
    %v3157 = vld [vmem:[#allocation5 + $0x490] sm:$0xf]
    %v3158 = vld [vmem:[#allocation5 + $0x498] sm:$0xf]
    %v3159 = vld [vmem:[#allocation5 + $0x4a0] sm:$0xf]
    %v3160 = vld [vmem:[#allocation5 + $0x4a8] sm:$0xf]
    %v3161 = vld [vmem:[#allocation5 + $0x4b0] sm:$0xf]
    %v3162 = vld [vmem:[#allocation5 + $0x4b8] sm:$0xf]
    %v3171 = vunpack.c.l.b16 %v3155
    %v3172 = vunpack.c.l.b16 %v3156
    %v3173 = vunpack.c.l.b16 %v3157
    %v3174 = vunpack.c.l.b16 %v3158
    %v3175 = vunpack.c.l.b16 %v3159
    %v3176 = vunpack.c.l.b16 %v3160
    %v3177 = vunpack.c.l.b16 %v3161
    %v3178 = vunpack.c.l.b16 %v3162
    %v3179 = vpack.c.b16 %v3172, %v3171
    %v3180 = vpack.c.b16 %v3174, %v3173
    %v3181 = vpack.c.b16 %v3176, %v3175
    %v3182 = vpack.c.b16 %v3178, %v3177
    %v3184 = vsel %vm1108, %v3179, 0
    %v3187 = vsel %vm1108, %v3180, 0
    %v3190 = vsel %vm1108, %v3181, 0
    %v3193 = vsel %vm1108, %v3182, 0
    %3195 = vmatprep.subr.bf16.mxu0 0
    %3196 = vmatpush1.bf16.msra.mxu0 %v3151
    %3197 = vmatprep.subr.bf16.mxu0 0
    %3198 = vmatpush1.bf16.msra.mxu0 %v3152
    %3199 = vmatprep.subr.bf16.mxu0 0
    %3200 = vmatpush1.bf16.msra.mxu0 %v3153
    %3201 = vmatprep.subr.bf16.mxu0 0
    %3202 = vmatpush1.bf16.msra.mxu0 %v3154
    %3203 = vmatprep.subr.bf16.mxu0 0
    %3204 = vmatpush1.bf16.msra.mxu0 %v108
    %3205 = vmatprep.subr.bf16.mxu0 0
    %3206 = vmatpush1.bf16.msra.mxu0 0
    %3207 = vmatprep.subr.bf16.mxu0 0
    %3208 = vmatpush1.bf16.msra.mxu0 0
    %3209 = vmatprep.subr.bf16.mxu0 0
    %3210 = vmatpush1.bf16.msra.mxu0 0
    %3211 = vmatprep.subr.bf16.mxu0 0
    %3212 = vmatpush1.bf16.msra.mxu0 0
    %3213 = vmatprep.subr.bf16.mxu0 0
    %3214 = vmatpush1.bf16.msra.mxu0 0
    %3215 = vmatprep.subr.bf16.mxu0 0
    %3216 = vmatpush1.bf16.msra.mxu0 0
    %3217 = vmatprep.subr.bf16.mxu0 0
    %3218 = vmatpush1.bf16.msra.mxu0 0
    %3219 = vmatprep.subr.bf16.mxu0 0
    %3220 = vmatpush1.bf16.msra.mxu0 0
    %3221 = vmatprep.subr.bf16.mxu0 0
    %3222 = vmatpush1.bf16.msra.mxu0 0
    %3223 = vmatprep.subr.bf16.mxu0 0
    %3224 = vmatpush1.bf16.msra.mxu0 0
    %3225 = vmatprep.subr.bf16.mxu0 0
    %3226 = vmatpush1.bf16.msra.mxu0 0
    %3227 = vmatprep.mubr.bf16.mxu0 0
    %3228 = vmatmul.mubr.bf16.gmra.mrb[0].mxu0 %v3184
    %v3229 = vpop.f32.mrb[0].mxu0
    %v3230 = vadd.f32 0.0, %v3229
    %v3231 = vpop.f32.mrb[0].mxu0
    %v3232 = vpop.f32.mrb[0].mxu0
    %v3233 = vadd.f32 0.0, %v3232
    %v3234 = vpop.f32.mrb[0].mxu0
    %3235 = vmatprep.mubr.bf16.mxu0 0
    %3236 = vmatmul.mubr.bf16.gmra.mrb[0].mxu0 %v3187
    %v3237 = vpop.f32.mrb[0].mxu0
    %v3238 = vadd.f32 0.0, %v3237
    %v3239 = vpop.f32.mrb[0].mxu0
    %v3240 = vpop.f32.mrb[0].mxu0
    %v3241 = vadd.f32 0.0, %v3240
    %v3242 = vpop.f32.mrb[0].mxu0
    %3243 = vmatprep.mubr.bf16.mxu0 0
    %3244 = vmatmul.mubr.bf16.gmra.mrb[0].mxu0 %v3190
    %v3245 = vpop.f32.mrb[0].mxu0
    %v3246 = vadd.f32 0.0, %v3245
    %v3247 = vpop.f32.mrb[0].mxu0
    %v3248 = vpop.f32.mrb[0].mxu0
    %v3249 = vadd.f32 0.0, %v3248
    %v3250 = vpop.f32.mrb[0].mxu0
    %3251 = vmatprep.mubr.bf16.mxu0 0
    %3252 = vmatmul.mubr.bf16.gmra.mrb[0].mxu0 %v3193
    %v3253 = vpop.f32.mrb[0].mxu0
    %v3254 = vadd.f32 0.0, %v3253
    %v3255 = vpop.f32.mrb[0].mxu0
    %v3256 = vpop.f32.mrb[0].mxu0
    %v3257 = vadd.f32 0.0, %v3256
    %v3258 = vpop.f32.mrb[0].mxu0
    %3259 = vdwg.mxu0
    %v3260 = vmax.f32 %v3230, 0.0
    %v3261 = vmax.f32 %v3233, 0.0
    %v3262 = vmax.f32 %v3238, 0.0
    %v3263 = vmax.f32 %v3241, 0.0
    %v3264 = vmax.f32 %v3246, 0.0
    %v3265 = vmax.f32 %v3249, 0.0
    %v3266 = vmax.f32 %v3254, 0.0
    %v3267 = vmax.f32 %v3257, 0.0
    %v3268 = vpack.c.bf16 %v3261, %v3260
    %v3269 = vpack.c.bf16 %v3263, %v3262
    %v3270 = vpack.c.bf16 %v3265, %v3264
    %v3271 = vpack.c.bf16 %v3267, %v3266
    %v3272 = vld [vmem:[#allocation5 + $0x4c0] sm:$0xf]
    %v3273 = vld [vmem:[#allocation5 + $0x4c8] sm:$0xf]
    %v3274 = vld [vmem:[#allocation5 + $0x4d0] sm:$0xf]
    %v3275 = vld [vmem:[#allocation5 + $0x4d8] sm:$0xf]
    %v3276 = vld [vmem:[#allocation5 + $0x4e0] sm:$0xf]
    %v3277 = vld [vmem:[#allocation5 + $0x4e8] sm:$0xf]
    %v3278 = vld [vmem:[#allocation5 + $0x4f0] sm:$0xf]
    %v3279 = vld [vmem:[#allocation5 + $0x4f8] sm:$0xf]
    %v3288 = vunpack.c.l.b16 %v3272
    %v3289 = vunpack.c.l.b16 %v3273
    %v3290 = vunpack.c.l.b16 %v3274
    %v3291 = vunpack.c.l.b16 %v3275
    %v3292 = vunpack.c.l.b16 %v3276
    %v3293 = vunpack.c.l.b16 %v3277
    %v3294 = vunpack.c.l.b16 %v3278
    %v3295 = vunpack.c.l.b16 %v3279
    %v3296 = vpack.c.b16 %v3289, %v3288
    %v3297 = vpack.c.b16 %v3291, %v3290
    %v3298 = vpack.c.b16 %v3293, %v3292
    %v3299 = vpack.c.b16 %v3295, %v3294
    %v3301 = vsel %vm1108, %v3296, 0
    %v3304 = vsel %vm1108, %v3297, 0
    %v3307 = vsel %vm1108, %v3298, 0
    %v3310 = vsel %vm1108, %v3299, 0
    %3312 = vmatprep.subr.bf16.mxu0 0
    %3313 = vmatpush1.bf16.msra.mxu0 %v3268
    %3314 = vmatprep.subr.bf16.mxu0 0
    %3315 = vmatpush1.bf16.msra.mxu0 %v3269
    %3316 = vmatprep.subr.bf16.mxu0 0
    %3317 = vmatpush1.bf16.msra.mxu0 %v3270
    %3318 = vmatprep.subr.bf16.mxu0 0
    %3319 = vmatpush1.bf16.msra.mxu0 %v3271
    %3320 = vmatprep.subr.bf16.mxu0 0
    %3321 = vmatpush1.bf16.msra.mxu0 %v108
    %3322 = vmatprep.subr.bf16.mxu0 0
    %3323 = vmatpush1.bf16.msra.mxu0 0
    %3324 = vmatprep.subr.bf16.mxu0 0
    %3325 = vmatpush1.bf16.msra.mxu0 0
    %3326 = vmatprep.subr.bf16.mxu0 0
    %3327 = vmatpush1.bf16.msra.mxu0 0
    %3328 = vmatprep.subr.bf16.mxu0 0
    %3329 = vmatpush1.bf16.msra.mxu0 0
    %3330 = vmatprep.subr.bf16.mxu0 0
    %3331 = vmatpush1.bf16.msra.mxu0 0
    %3332 = vmatprep.subr.bf16.mxu0 0
    %3333 = vmatpush1.bf16.msra.mxu0 0
    %3334 = vmatprep.subr.bf16.mxu0 0
    %3335 = vmatpush1.bf16.msra.mxu0 0
    %3336 = vmatprep.subr.bf16.mxu0 0
    %3337 = vmatpush1.bf16.msra.mxu0 0
    %3338 = vmatprep.subr.bf16.mxu0 0
    %3339 = vmatpush1.bf16.msra.mxu0 0
    %3340 = vmatprep.subr.bf16.mxu0 0
    %3341 = vmatpush1.bf16.msra.mxu0 0
    %3342 = vmatprep.subr.bf16.mxu0 0
    %3343 = vmatpush1.bf16.msra.mxu0 0
    %3344 = vmatprep.mubr.bf16.mxu0 0
    %3345 = vmatmul.mubr.bf16.gmra.mrb[0].mxu0 %v3301
    %v3346 = vpop.f32.mrb[0].mxu0
    %v3347 = vadd.f32 %v3121, %v3346
    %v3348 = vpop.f32.mrb[0].mxu0
    %v3349 = vpop.f32.mrb[0].mxu0
    %v3350 = vadd.f32 %v3124, %v3349
    %v3351 = vpop.f32.mrb[0].mxu0
    %3352 = vmatprep.mubr.bf16.mxu0 0
    %3353 = vmatmul.mubr.bf16.gmra.mrb[0].mxu0 %v3304
    %v3354 = vpop.f32.mrb[0].mxu0
    %v3355 = vadd.f32 %v3129, %v3354
    %v3356 = vpop.f32.mrb[0].mxu0
    %v3357 = vpop.f32.mrb[0].mxu0
    %v3358 = vadd.f32 %v3132, %v3357
    %v3359 = vpop.f32.mrb[0].mxu0
    %3360 = vmatprep.mubr.bf16.mxu0 0
    %3361 = vmatmul.mubr.bf16.gmra.mrb[0].mxu0 %v3307
    %v3362 = vpop.f32.mrb[0].mxu0
    %v3363 = vadd.f32 %v3137, %v3362
    %v3364 = vpop.f32.mrb[0].mxu0
    %v3365 = vpop.f32.mrb[0].mxu0
    %v3366 = vadd.f32 %v3140, %v3365
    %v3367 = vpop.f32.mrb[0].mxu0
    %3368 = vmatprep.mubr.bf16.mxu0 0
    %3369 = vmatmul.mubr.bf16.gmra.mrb[0].mxu0 %v3310
    %v3370 = vpop.f32.mrb[0].mxu0
    %v3371 = vadd.f32 %v3145, %v3370
    %v3372 = vpop.f32.mrb[0].mxu0
    %v3373 = vpop.f32.mrb[0].mxu0
    %v3374 = vadd.f32 %v3148, %v3373
    %v3375 = vpop.f32.mrb[0].mxu0
    %3376 = vdwg.mxu0
    %v3377 = vmax.f32 %v3347, 0.0
    %v3378 = vmax.f32 %v3350, 0.0
    %v3379 = vmax.f32 %v3355, 0.0
    %v3380 = vmax.f32 %v3358, 0.0
    %v3381 = vmax.f32 %v3363, 0.0
    %v3382 = vmax.f32 %v3366, 0.0
    %v3383 = vmax.f32 %v3371, 0.0
    %v3384 = vmax.f32 %v3374, 0.0
    %v3385 = vpack.c.bf16 %v3378, %v3377
    %v3386 = vpack.c.bf16 %v3380, %v3379
    %v3387 = vpack.c.bf16 %v3382, %v3381
    %v3388 = vpack.c.bf16 %v3384, %v3383
    %v3389 = vld [vmem:[#allocation5 + $0x500] sm:$0xff]
    %v3390 = vld [vmem:[#allocation5 + $0x508] sm:$0xff]
    %v3391 = vld [vmem:[#allocation5 + $0x510] sm:$0xff]
    %v3392 = vld [vmem:[#allocation5 + $0x518] sm:$0xff]
    %v3393 = vld [vmem:[#allocation5 + $0x520] sm:$0xff]
    %v3394 = vld [vmem:[#allocation5 + $0x528] sm:$0xff]
    %v3395 = vld [vmem:[#allocation5 + $0x530] sm:$0xff]
    %v3396 = vld [vmem:[#allocation5 + $0x538] sm:$0xff]
    %v3405 = vunpack.c.l.b16 %v3389
    %v3406 = vunpack.c.h.b16 %v3389
    %v3407 = vunpack.c.l.b16 %v3390
    %v3408 = vunpack.c.h.b16 %v3390
    %v3409 = vunpack.c.l.b16 %v3391
    %v3410 = vunpack.c.h.b16 %v3391
    %v3411 = vunpack.c.l.b16 %v3392
    %v3412 = vunpack.c.h.b16 %v3392
    %v3413 = vunpack.c.l.b16 %v3393
    %v3414 = vunpack.c.h.b16 %v3393
    %v3415 = vunpack.c.l.b16 %v3394
    %v3416 = vunpack.c.h.b16 %v3394
    %v3417 = vunpack.c.l.b16 %v3395
    %v3418 = vunpack.c.h.b16 %v3395
    %v3419 = vunpack.c.l.b16 %v3396
    %v3420 = vunpack.c.h.b16 %v3396
    %v3421 = vpack.c.b16 %v3407, %v3405
    %v3422 = vpack.c.b16 %v3408, %v3406
    %v3423 = vpack.c.b16 %v3411, %v3409
    %v3424 = vpack.c.b16 %v3412, %v3410
    %v3425 = vpack.c.b16 %v3415, %v3413
    %v3426 = vpack.c.b16 %v3416, %v3414
    %v3427 = vpack.c.b16 %v3419, %v3417
    %v3428 = vpack.c.b16 %v3420, %v3418
    %vm3433 = vcmask 7168
    %v3435 = vsel %vm3433, %v3422, 0
    %v3438 = vsel %vm3433, %v3424, 0
    %v3441 = vsel %vm3433, %v3426, 0
    %v3444 = vsel %vm3433, %v3428, 0
    %3446 = vmatprep.subr.bf16.mxu0 0
    %3447 = vmatpush1.bf16.msra.mxu0 %v3151
    %3448 = vmatprep.subr.bf16.mxu0 0
    %3449 = vmatpush1.bf16.msra.mxu0 %v3152
    %3450 = vmatprep.subr.bf16.mxu0 0
    %3451 = vmatpush1.bf16.msra.mxu0 %v3153
    %3452 = vmatprep.subr.bf16.mxu0 0
    %3453 = vmatpush1.bf16.msra.mxu0 %v3154
    %3454 = vmatprep.subr.bf16.mxu0 0
    %3455 = vmatpush1.bf16.msra.mxu0 %v3385
    %3456 = vmatprep.subr.bf16.mxu0 0
    %3457 = vmatpush1.bf16.msra.mxu0 %v3386
    %3458 = vmatprep.subr.bf16.mxu0 0
    %3459 = vmatpush1.bf16.msra.mxu0 %v3387
    %3460 = vmatprep.subr.bf16.mxu0 0
    %3461 = vmatpush1.bf16.msra.mxu0 %v3388
    %3462 = vmatprep.subr.bf16.mxu0 0
    %3463 = vmatpush1.bf16.msra.mxu0 %v108
    %3464 = vmatprep.subr.bf16.mxu0 0
    %3465 = vmatpush1.bf16.msra.mxu0 0
    %3466 = vmatprep.subr.bf16.mxu0 0
    %3467 = vmatpush1.bf16.msra.mxu0 0
    %3468 = vmatprep.subr.bf16.mxu0 0
    %3469 = vmatpush1.bf16.msra.mxu0 0
    %3470 = vmatprep.subr.bf16.mxu0 0
    %3471 = vmatpush1.bf16.msra.mxu0 0
    %3472 = vmatprep.subr.bf16.mxu0 0
    %3473 = vmatpush1.bf16.msra.mxu0 0
    %3474 = vmatprep.subr.bf16.mxu0 0
    %3475 = vmatpush1.bf16.msra.mxu0 0
    %3476 = vmatprep.subr.bf16.mxu0 0
    %3477 = vmatpush1.bf16.msra.mxu0 0
    %3478 = vmatprep.mubr.bf16.mxu0 %v3435
    %3479 = vmatmul.mubr.bf16.gmra.mrb[0].mxu0 %v3421
    %v3480 = vpop.f32.mrb[0].mxu0
    %v3481 = vadd.f32 0.0, %v3480
    %v3482 = vpop.f32.mrb[0].mxu0
    %v3483 = vpop.f32.mrb[0].mxu0
    %v3484 = vadd.f32 0.0, %v3483
    %v3485 = vpop.f32.mrb[0].mxu0
    %3486 = vmatprep.mubr.bf16.mxu0 %v3438
    %3487 = vmatmul.mubr.bf16.gmra.mrb[0].mxu0 %v3423
    %v3488 = vpop.f32.mrb[0].mxu0
    %v3489 = vadd.f32 0.0, %v3488
    %v3490 = vpop.f32.mrb[0].mxu0
    %v3491 = vpop.f32.mrb[0].mxu0
    %v3492 = vadd.f32 0.0, %v3491
    %v3493 = vpop.f32.mrb[0].mxu0
    %3494 = vmatprep.mubr.bf16.mxu0 %v3441
    %3495 = vmatmul.mubr.bf16.gmra.mrb[0].mxu0 %v3425
    %v3496 = vpop.f32.mrb[0].mxu0
    %v3497 = vadd.f32 0.0, %v3496
    %v3498 = vpop.f32.mrb[0].mxu0
    %v3499 = vpop.f32.mrb[0].mxu0
    %v3500 = vadd.f32 0.0, %v3499
    %v3501 = vpop.f32.mrb[0].mxu0
    %3502 = vmatprep.mubr.bf16.mxu0 %v3444
    %3503 = vmatmul.mubr.bf16.gmra.mrb[0].mxu0 %v3427
    %v3504 = vpop.f32.mrb[0].mxu0
    %v3505 = vadd.f32 0.0, %v3504
    %v3506 = vpop.f32.mrb[0].mxu0
    %v3507 = vpop.f32.mrb[0].mxu0
    %v3508 = vadd.f32 0.0, %v3507
    %v3509 = vpop.f32.mrb[0].mxu0
    %3510 = vdwg.mxu0
    %v3511 = vmax.f32 %v3481, 0.0
    %v3512 = vmax.f32 %v3484, 0.0
    %v3513 = vmax.f32 %v3489, 0.0
    %v3514 = vmax.f32 %v3492, 0.0
    %v3515 = vmax.f32 %v3497, 0.0
    %v3516 = vmax.f32 %v3500, 0.0
    %v3517 = vmax.f32 %v3505, 0.0
    %v3518 = vmax.f32 %v3508, 0.0
    %v3519 = vpack.c.bf16 %v3512, %v3511
    %v3520 = vpack.c.bf16 %v3514, %v3513
    %v3521 = vpack.c.bf16 %v3516, %v3515
    %v3522 = vpack.c.bf16 %v3518, %v3517
    %v3523 = vld [vmem:[#allocation5 + $0x540] sm:$0xff]
    %v3524 = vld [vmem:[#allocation5 + $0x548] sm:$0xff]
    %v3525 = vld [vmem:[#allocation5 + $0x550] sm:$0xff]
    %v3526 = vld [vmem:[#allocation5 + $0x558] sm:$0xff]
    %v3527 = vld [vmem:[#allocation5 + $0x560] sm:$0xff]
    %v3528 = vld [vmem:[#allocation5 + $0x568] sm:$0xff]
    %v3529 = vld [vmem:[#allocation5 + $0x570] sm:$0xff]
    %v3530 = vld [vmem:[#allocation5 + $0x578] sm:$0xff]
    %v3539 = vunpack.c.l.b16 %v3523
    %v3540 = vunpack.c.h.b16 %v3523
    %v3541 = vunpack.c.l.b16 %v3524
    %v3542 = vunpack.c.h.b16 %v3524
    %v3543 = vunpack.c.l.b16 %v3525
    %v3544 = vunpack.c.h.b16 %v3525
    %v3545 = vunpack.c.l.b16 %v3526
    %v3546 = vunpack.c.h.b16 %v3526
    %v3547 = vunpack.c.l.b16 %v3527
    %v3548 = vunpack.c.h.b16 %v3527
    %v3549 = vunpack.c.l.b16 %v3528
    %v3550 = vunpack.c.h.b16 %v3528
    %v3551 = vunpack.c.l.b16 %v3529
    %v3552 = vunpack.c.h.b16 %v3529
    %v3553 = vunpack.c.l.b16 %v3530
    %v3554 = vunpack.c.h.b16 %v3530
    %v3555 = vpack.c.b16 %v3541, %v3539
    %v3556 = vpack.c.b16 %v3542, %v3540
    %v3557 = vpack.c.b16 %v3545, %v3543
    %v3558 = vpack.c.b16 %v3546, %v3544
    %v3559 = vpack.c.b16 %v3549, %v3547
    %v3560 = vpack.c.b16 %v3550, %v3548
    %v3561 = vpack.c.b16 %v3553, %v3551
    %v3562 = vpack.c.b16 %v3554, %v3552
    %v3568 = vsel %vm1108, %v3556, 0
    %v3571 = vsel %vm1108, %v3558, 0
    %v3574 = vsel %vm1108, %v3560, 0
    %v3577 = vsel %vm1108, %v3562, 0
    %3579 = vmatprep.subr.bf16.mxu0 0
    %3580 = vmatpush1.bf16.msra.mxu0 %v3519
    %3581 = vmatprep.subr.bf16.mxu0 0
    %3582 = vmatpush1.bf16.msra.mxu0 %v3520
    %3583 = vmatprep.subr.bf16.mxu0 0
    %3584 = vmatpush1.bf16.msra.mxu0 %v3521
    %3585 = vmatprep.subr.bf16.mxu0 0
    %3586 = vmatpush1.bf16.msra.mxu0 %v3522
    %3587 = vmatprep.subr.bf16.mxu0 0
    %3588 = vmatpush1.bf16.msra.mxu0 %v3151
    %3589 = vmatprep.subr.bf16.mxu0 0
    %3590 = vmatpush1.bf16.msra.mxu0 %v3152
    %3591 = vmatprep.subr.bf16.mxu0 0
    %3592 = vmatpush1.bf16.msra.mxu0 %v3153
    %3593 = vmatprep.subr.bf16.mxu0 0
    %3594 = vmatpush1.bf16.msra.mxu0 %v3154
    %3595 = vmatprep.subr.bf16.mxu0 0
    %3596 = vmatpush1.bf16.msra.mxu0 %v3385
    %3597 = vmatprep.subr.bf16.mxu0 0
    %3598 = vmatpush1.bf16.msra.mxu0 %v3386
    %3599 = vmatprep.subr.bf16.mxu0 0
    %3600 = vmatpush1.bf16.msra.mxu0 %v3387
    %3601 = vmatprep.subr.bf16.mxu0 0
    %3602 = vmatpush1.bf16.msra.mxu0 %v3388
    %3603 = vmatprep.subr.bf16.mxu0 0
    %3604 = vmatpush1.bf16.msra.mxu0 %v108
    %3605 = vmatprep.subr.bf16.mxu0 0
    %3606 = vmatpush1.bf16.msra.mxu0 0
    %3607 = vmatprep.subr.bf16.mxu0 0
    %3608 = vmatpush1.bf16.msra.mxu0 0
    %3609 = vmatprep.subr.bf16.mxu0 0
    %3610 = vmatpush1.bf16.msra.mxu0 0
    %3611 = vmatprep.mubr.bf16.mxu0 %v3568
    %3612 = vmatmul.mubr.bf16.gmra.mrb[0].mxu0 %v3555
    %v3613 = vpop.f32.mrb[0].mxu0
    %v3614 = vadd.f32 0.0, %v3613
    %v3615 = vpop.f32.mrb[0].mxu0
    %v3616 = vpop.f32.mrb[0].mxu0
    %v3617 = vadd.f32 0.0, %v3616
    %v3618 = vpop.f32.mrb[0].mxu0
    %3619 = vmatprep.mubr.bf16.mxu0 %v3571
    %3620 = vmatmul.mubr.bf16.gmra.mrb[0].mxu0 %v3557
    %v3621 = vpop.f32.mrb[0].mxu0
    %v3622 = vadd.f32 0.0, %v3621
    %v3623 = vpop.f32.mrb[0].mxu0
    %v3624 = vpop.f32.mrb[0].mxu0
    %v3625 = vadd.f32 0.0, %v3624
    %v3626 = vpop.f32.mrb[0].mxu0
    %3627 = vmatprep.mubr.bf16.mxu0 %v3574
    %3628 = vmatmul.mubr.bf16.gmra.mrb[0].mxu0 %v3559
    %v3629 = vpop.f32.mrb[0].mxu0
    %v3630 = vadd.f32 0.0, %v3629
    %v3631 = vpop.f32.mrb[0].mxu0
    %v3632 = vpop.f32.mrb[0].mxu0
    %v3633 = vadd.f32 0.0, %v3632
    %v3634 = vpop.f32.mrb[0].mxu0
    %3635 = vmatprep.mubr.bf16.mxu0 %v3577
    %3636 = vmatmul.mubr.bf16.gmra.mrb[0].mxu0 %v3561
    %v3637 = vpop.f32.mrb[0].mxu0
    %v3638 = vadd.f32 0.0, %v3637
    %v3639 = vpop.f32.mrb[0].mxu0
    %v3640 = vpop.f32.mrb[0].mxu0
    %v3641 = vadd.f32 0.0, %v3640
    %v3642 = vpop.f32.mrb[0].mxu0
    %3643 = vdwg.mxu0
    %v3644 = vmax.f32 %v3614, 0.0
    %v3645 = vmax.f32 %v3617, 0.0
    %v3646 = vmax.f32 %v3622, 0.0
    %v3647 = vmax.f32 %v3625, 0.0
    %v3648 = vmax.f32 %v3630, 0.0
    %v3649 = vmax.f32 %v3633, 0.0
    %v3650 = vmax.f32 %v3638, 0.0
    %v3651 = vmax.f32 %v3641, 0.0
    %v3652 = vld [vmem:[#allocation4] sm:$0xff]
    %v3653 = vld [vmem:[#allocation4 + $0x8] sm:$0xff]
    %v3654 = vld [vmem:[#allocation4 + $0x10] sm:$0xff]
    %v3655 = vld [vmem:[#allocation4 + $0x18] sm:$0xff]
    %v3656 = vld [vmem:[#allocation4 + $0x20] sm:$0xff]
    %v3657 = vld [vmem:[#allocation4 + $0x28] sm:$0xff]
    %v3658 = vld [vmem:[#allocation4 + $0x30] sm:$0xff]
    %v3659 = vld [vmem:[#allocation4 + $0x38] sm:$0xff]
    %v3660 = vpack.c.bf16 %v3653, %v3652
    %v3661 = vpack.c.bf16 %v3655, %v3654
    %v3662 = vpack.c.bf16 %v3657, %v3656
    %v3663 = vpack.c.bf16 %v3659, %v3658
    %v3664 = vld [vmem:[#allocation5 + $0x580] sm:$0xf]
    %v3665 = vld [vmem:[#allocation5 + $0x588] sm:$0xf]
    %v3666 = vld [vmem:[#allocation5 + $0x590] sm:$0xf]
    %v3667 = vld [vmem:[#allocation5 + $0x598] sm:$0xf]
    %v3668 = vld [vmem:[#allocation5 + $0x5a0] sm:$0xf]
    %v3669 = vld [vmem:[#allocation5 + $0x5a8] sm:$0xf]
    %v3670 = vld [vmem:[#allocation5 + $0x5b0] sm:$0xf]
    %v3671 = vld [vmem:[#allocation5 + $0x5b8] sm:$0xf]
    %v3680 = vunpack.c.l.b16 %v3664
    %v3681 = vunpack.c.l.b16 %v3665
    %v3682 = vunpack.c.l.b16 %v3666
    %v3683 = vunpack.c.l.b16 %v3667
    %v3684 = vunpack.c.l.b16 %v3668
    %v3685 = vunpack.c.l.b16 %v3669
    %v3686 = vunpack.c.l.b16 %v3670
    %v3687 = vunpack.c.l.b16 %v3671
    %v3688 = vpack.c.b16 %v3681, %v3680
    %v3689 = vpack.c.b16 %v3683, %v3682
    %v3690 = vpack.c.b16 %v3685, %v3684
    %v3691 = vpack.c.b16 %v3687, %v3686
    %v3693 = vsel %vm1108, %v3688, 0
    %v3696 = vsel %vm1108, %v3689, 0
    %v3699 = vsel %vm1108, %v3690, 0
    %v3702 = vsel %vm1108, %v3691, 0
    %3704 = vmatprep.subr.bf16.mxu0 0
    %3705 = vmatpush1.bf16.msra.mxu0 %v3660
    %3706 = vmatprep.subr.bf16.mxu0 0
    %3707 = vmatpush1.bf16.msra.mxu0 %v3661
    %3708 = vmatprep.subr.bf16.mxu0 0
    %3709 = vmatpush1.bf16.msra.mxu0 %v3662
    %3710 = vmatprep.subr.bf16.mxu0 0
    %3711 = vmatpush1.bf16.msra.mxu0 %v3663
    %3712 = vmatprep.subr.bf16.mxu0 0
    %3713 = vmatpush1.bf16.msra.mxu0 %v108
    %3714 = vmatprep.subr.bf16.mxu0 0
    %3715 = vmatpush1.bf16.msra.mxu0 0
    %3716 = vmatprep.subr.bf16.mxu0 0
    %3717 = vmatpush1.bf16.msra.mxu0 0
    %3718 = vmatprep.subr.bf16.mxu0 0
    %3719 = vmatpush1.bf16.msra.mxu0 0
    %3720 = vmatprep.subr.bf16.mxu0 0
    %3721 = vmatpush1.bf16.msra.mxu0 0
    %3722 = vmatprep.subr.bf16.mxu0 0
    %3723 = vmatpush1.bf16.msra.mxu0 0
    %3724 = vmatprep.subr.bf16.mxu0 0
    %3725 = vmatpush1.bf16.msra.mxu0 0
    %3726 = vmatprep.subr.bf16.mxu0 0
    %3727 = vmatpush1.bf16.msra.mxu0 0
    %3728 = vmatprep.subr.bf16.mxu0 0
    %3729 = vmatpush1.bf16.msra.mxu0 0
    %3730 = vmatprep.subr.bf16.mxu0 0
    %3731 = vmatpush1.bf16.msra.mxu0 0
    %3732 = vmatprep.subr.bf16.mxu0 0
    %3733 = vmatpush1.bf16.msra.mxu0 0
    %3734 = vmatprep.subr.bf16.mxu0 0
    %3735 = vmatpush1.bf16.msra.mxu0 0
    %3736 = vmatprep.mubr.bf16.mxu0 0
    %3737 = vmatmul.mubr.bf16.gmra.mrb[0].mxu0 %v3693
    %v3738 = vpop.f32.mrb[0].mxu0
    %v3739 = vadd.f32 0.0, %v3738
    %v3740 = vpop.f32.mrb[0].mxu0
    %v3741 = vpop.f32.mrb[0].mxu0
    %v3742 = vadd.f32 0.0, %v3741
    %v3743 = vpop.f32.mrb[0].mxu0
    %3744 = vmatprep.mubr.bf16.mxu0 0
    %3745 = vmatmul.mubr.bf16.gmra.mrb[0].mxu0 %v3696
    %v3746 = vpop.f32.mrb[0].mxu0
    %v3747 = vadd.f32 0.0, %v3746
    %v3748 = vpop.f32.mrb[0].mxu0
    %v3749 = vpop.f32.mrb[0].mxu0
    %v3750 = vadd.f32 0.0, %v3749
    %v3751 = vpop.f32.mrb[0].mxu0
    %3752 = vmatprep.mubr.bf16.mxu0 0
    %3753 = vmatmul.mubr.bf16.gmra.mrb[0].mxu0 %v3699
    %v3754 = vpop.f32.mrb[0].mxu0
    %v3755 = vadd.f32 0.0, %v3754
    %v3756 = vpop.f32.mrb[0].mxu0
    %v3757 = vpop.f32.mrb[0].mxu0
    %v3758 = vadd.f32 0.0, %v3757
    %v3759 = vpop.f32.mrb[0].mxu0
    %3760 = vmatprep.mubr.bf16.mxu0 0
    %3761 = vmatmul.mubr.bf16.gmra.mrb[0].mxu0 %v3702
    %v3762 = vpop.f32.mrb[0].mxu0
    %v3763 = vadd.f32 0.0, %v3762
    %v3764 = vpop.f32.mrb[0].mxu0
    %v3765 = vpop.f32.mrb[0].mxu0
    %v3766 = vadd.f32 0.0, %v3765
    %v3767 = vpop.f32.mrb[0].mxu0
    %3768 = vdwg.mxu0
    %v3769 = vmax.f32 %v3739, 0.0
    %v3770 = vmax.f32 %v3742, 0.0
    %v3771 = vmax.f32 %v3747, 0.0
    %v3772 = vmax.f32 %v3750, 0.0
    %v3773 = vmax.f32 %v3755, 0.0
    %v3774 = vmax.f32 %v3758, 0.0
    %v3775 = vmax.f32 %v3763, 0.0
    %v3776 = vmax.f32 %v3766, 0.0
    %v3777 = vpack.c.bf16 %v3770, %v3769
    %v3778 = vpack.c.bf16 %v3772, %v3771
    %v3779 = vpack.c.bf16 %v3774, %v3773
    %v3780 = vpack.c.bf16 %v3776, %v3775
    %v3781 = vld [vmem:[#allocation5 + $0x5c0] sm:$0xf]
    %v3782 = vld [vmem:[#allocation5 + $0x5c8] sm:$0xf]
    %v3783 = vld [vmem:[#allocation5 + $0x5d0] sm:$0xf]
    %v3784 = vld [vmem:[#allocation5 + $0x5d8] sm:$0xf]
    %v3785 = vld [vmem:[#allocation5 + $0x5e0] sm:$0xf]
    %v3786 = vld [vmem:[#allocation5 + $0x5e8] sm:$0xf]
    %v3787 = vld [vmem:[#allocation5 + $0x5f0] sm:$0xf]
    %v3788 = vld [vmem:[#allocation5 + $0x5f8] sm:$0xf]
    %v3797 = vunpack.c.l.b16 %v3781
    %v3798 = vunpack.c.l.b16 %v3782
    %v3799 = vunpack.c.l.b16 %v3783
    %v3800 = vunpack.c.l.b16 %v3784
    %v3801 = vunpack.c.l.b16 %v3785
    %v3802 = vunpack.c.l.b16 %v3786
    %v3803 = vunpack.c.l.b16 %v3787
    %v3804 = vunpack.c.l.b16 %v3788
    %v3805 = vpack.c.b16 %v3798, %v3797
    %v3806 = vpack.c.b16 %v3800, %v3799
    %v3807 = vpack.c.b16 %v3802, %v3801
    %v3808 = vpack.c.b16 %v3804, %v3803
    %v3810 = vsel %vm1108, %v3805, 0
    %v3813 = vsel %vm1108, %v3806, 0
    %v3816 = vsel %vm1108, %v3807, 0
    %v3819 = vsel %vm1108, %v3808, 0
    %3821 = vmatprep.subr.bf16.mxu0 0
    %3822 = vmatpush1.bf16.msra.mxu0 %v3777
    %3823 = vmatprep.subr.bf16.mxu0 0
    %3824 = vmatpush1.bf16.msra.mxu0 %v3778
    %3825 = vmatprep.subr.bf16.mxu0 0
    %3826 = vmatpush1.bf16.msra.mxu0 %v3779
    %3827 = vmatprep.subr.bf16.mxu0 0
    %3828 = vmatpush1.bf16.msra.mxu0 %v3780
    %3829 = vmatprep.subr.bf16.mxu0 0
    %3830 = vmatpush1.bf16.msra.mxu0 %v108
    %3831 = vmatprep.subr.bf16.mxu0 0
    %3832 = vmatpush1.bf16.msra.mxu0 0
    %3833 = vmatprep.subr.bf16.mxu0 0
    %3834 = vmatpush1.bf16.msra.mxu0 0
    %3835 = vmatprep.subr.bf16.mxu0 0
    %3836 = vmatpush1.bf16.msra.mxu0 0
    %3837 = vmatprep.subr.bf16.mxu0 0
    %3838 = vmatpush1.bf16.msra.mxu0 0
    %3839 = vmatprep.subr.bf16.mxu0 0
    %3840 = vmatpush1.bf16.msra.mxu0 0
    %3841 = vmatprep.subr.bf16.mxu0 0
    %3842 = vmatpush1.bf16.msra.mxu0 0
    %3843 = vmatprep.subr.bf16.mxu0 0
    %3844 = vmatpush1.bf16.msra.mxu0 0
    %3845 = vmatprep.subr.bf16.mxu0 0
    %3846 = vmatpush1.bf16.msra.mxu0 0
    %3847 = vmatprep.subr.bf16.mxu0 0
    %3848 = vmatpush1.bf16.msra.mxu0 0
    %3849 = vmatprep.subr.bf16.mxu0 0
    %3850 = vmatpush1.bf16.msra.mxu0 0
    %3851 = vmatprep.subr.bf16.mxu0 0
    %3852 = vmatpush1.bf16.msra.mxu0 0
    %3853 = vmatprep.mubr.bf16.mxu0 0
    %3854 = vmatmul.mubr.bf16.gmra.mrb[0].mxu0 %v3810
    %v3855 = vpop.f32.mrb[0].mxu0
    %v3856 = vadd.f32 %v3652, %v3855
    %v3857 = vpop.f32.mrb[0].mxu0
    %v3858 = vpop.f32.mrb[0].mxu0
    %v3859 = vadd.f32 %v3653, %v3858
    %v3860 = vpop.f32.mrb[0].mxu0
    %3861 = vmatprep.mubr.bf16.mxu0 0
    %3862 = vmatmul.mubr.bf16.gmra.mrb[0].mxu0 %v3813
    %v3863 = vpop.f32.mrb[0].mxu0
    %v3864 = vadd.f32 %v3654, %v3863
    %v3865 = vpop.f32.mrb[0].mxu0
    %v3866 = vpop.f32.mrb[0].mxu0
    %v3867 = vadd.f32 %v3655, %v3866
    %v3868 = vpop.f32.mrb[0].mxu0
    %3869 = vmatprep.mubr.bf16.mxu0 0
    %3870 = vmatmul.mubr.bf16.gmra.mrb[0].mxu0 %v3816
    %v3871 = vpop.f32.mrb[0].mxu0
    %v3872 = vadd.f32 %v3656, %v3871
    %v3873 = vpop.f32.mrb[0].mxu0
    %v3874 = vpop.f32.mrb[0].mxu0
    %v3875 = vadd.f32 %v3657, %v3874
    %v3876 = vpop.f32.mrb[0].mxu0
    %3877 = vmatprep.mubr.bf16.mxu0 0
    %3878 = vmatmul.mubr.bf16.gmra.mrb[0].mxu0 %v3819
    %v3879 = vpop.f32.mrb[0].mxu0
    %v3880 = vadd.f32 %v3658, %v3879
    %v3881 = vpop.f32.mrb[0].mxu0
    %v3882 = vpop.f32.mrb[0].mxu0
    %v3883 = vadd.f32 %v3659, %v3882
    %v3884 = vpop.f32.mrb[0].mxu0
    %3885 = vdwg.mxu0
    %v3886 = vmax.f32 %v3856, 0.0
    %v3887 = vmax.f32 %v3859, 0.0
    %v3888 = vmax.f32 %v3864, 0.0
    %v3889 = vmax.f32 %v3867, 0.0
    %v3890 = vmax.f32 %v3872, 0.0
    %v3891 = vmax.f32 %v3875, 0.0
    %v3892 = vmax.f32 %v3880, 0.0
    %v3893 = vmax.f32 %v3883, 0.0
    %v3894 = vpack.c.bf16 %v3645, %v3644
    %v3895 = vpack.c.bf16 %v3647, %v3646
    %v3896 = vpack.c.bf16 %v3649, %v3648
    %v3897 = vpack.c.bf16 %v3651, %v3650
    %v3898 = vpack.c.bf16 %v3887, %v3886
    %v3899 = vpack.c.bf16 %v3889, %v3888
    %v3900 = vpack.c.bf16 %v3891, %v3890
    %v3901 = vpack.c.bf16 %v3893, %v3892
    %v3902 = vld [vmem:[#allocation5 + $0x600] sm:$0xff]
    %v3903 = vld [vmem:[#allocation5 + $0x608] sm:$0xff]
    %v3904 = vld [vmem:[#allocation5 + $0x610] sm:$0xff]
    %v3905 = vld [vmem:[#allocation5 + $0x618] sm:$0xff]
    %v3906 = vld [vmem:[#allocation5 + $0x620] sm:$0xff]
    %v3907 = vld [vmem:[#allocation5 + $0x628] sm:$0xff]
    %v3908 = vld [vmem:[#allocation5 + $0x630] sm:$0xff]
    %v3909 = vld [vmem:[#allocation5 + $0x638] sm:$0xff]
    %v3918 = vunpack.c.l.b16 %v3902
    %v3919 = vunpack.c.h.b16 %v3902
    %v3920 = vunpack.c.l.b16 %v3903
    %v3921 = vunpack.c.h.b16 %v3903
    %v3922 = vunpack.c.l.b16 %v3904
    %v3923 = vunpack.c.h.b16 %v3904
    %v3924 = vunpack.c.l.b16 %v3905
    %v3925 = vunpack.c.h.b16 %v3905
    %v3926 = vunpack.c.l.b16 %v3906
    %v3927 = vunpack.c.h.b16 %v3906
    %v3928 = vunpack.c.l.b16 %v3907
    %v3929 = vunpack.c.h.b16 %v3907
    %v3930 = vunpack.c.l.b16 %v3908
    %v3931 = vunpack.c.h.b16 %v3908
    %v3932 = vunpack.c.l.b16 %v3909
    %v3933 = vunpack.c.h.b16 %v3909
    %v3934 = vpack.c.b16 %v3920, %v3918
    %v3935 = vpack.c.b16 %v3921, %v3919
    %v3936 = vpack.c.b16 %v3924, %v3922
    %v3937 = vpack.c.b16 %v3925, %v3923
    %v3938 = vpack.c.b16 %v3928, %v3926
    %v3939 = vpack.c.b16 %v3929, %v3927
    %v3940 = vpack.c.b16 %v3932, %v3930
    %v3941 = vpack.c.b16 %v3933, %v3931
    %v3947 = vsel %vm3433, %v3935, 0
    %v3950 = vsel %vm3433, %v3937, 0
    %v3953 = vsel %vm3433, %v3939, 0
    %v3956 = vsel %vm3433, %v3941, 0
    %3958 = vmatprep.subr.bf16.mxu0 0
    %3959 = vmatpush1.bf16.msra.mxu0 %v3894
    %3960 = vmatprep.subr.bf16.mxu0 0
    %3961 = vmatpush1.bf16.msra.mxu0 %v3895
    %3962 = vmatprep.subr.bf16.mxu0 0
    %3963 = vmatpush1.bf16.msra.mxu0 %v3896
    %3964 = vmatprep.subr.bf16.mxu0 0
    %3965 = vmatpush1.bf16.msra.mxu0 %v3897
    %3966 = vmatprep.subr.bf16.mxu0 0
    %3967 = vmatpush1.bf16.msra.mxu0 %v3898
    %3968 = vmatprep.subr.bf16.mxu0 0
    %3969 = vmatpush1.bf16.msra.mxu0 %v3899
    %3970 = vmatprep.subr.bf16.mxu0 0
    %3971 = vmatpush1.bf16.msra.mxu0 %v3900
    %3972 = vmatprep.subr.bf16.mxu0 0
    %3973 = vmatpush1.bf16.msra.mxu0 %v3901
    %3974 = vmatprep.subr.bf16.mxu0 0
    %3975 = vmatpush1.bf16.msra.mxu0 %v108
    %3976 = vmatprep.subr.bf16.mxu0 0
    %3977 = vmatpush1.bf16.msra.mxu0 0
    %3978 = vmatprep.subr.bf16.mxu0 0
    %3979 = vmatpush1.bf16.msra.mxu0 0
    %3980 = vmatprep.subr.bf16.mxu0 0
    %3981 = vmatpush1.bf16.msra.mxu0 0
    %3982 = vmatprep.subr.bf16.mxu0 0
    %3983 = vmatpush1.bf16.msra.mxu0 0
    %3984 = vmatprep.subr.bf16.mxu0 0
    %3985 = vmatpush1.bf16.msra.mxu0 0
    %3986 = vmatprep.subr.bf16.mxu0 0
    %3987 = vmatpush1.bf16.msra.mxu0 0
    %3988 = vmatprep.subr.bf16.mxu0 0
    %3989 = vmatpush1.bf16.msra.mxu0 0
    %3990 = vmatprep.mubr.bf16.mxu0 %v3947
    %3991 = vmatmul.mubr.bf16.gmra.mrb[0].mxu0 %v3934
    %v3992 = vpop.f32.mrb[0].mxu0
    %v3993 = vadd.f32 0.0, %v3992
    %v3994 = vpop.f32.mrb[0].mxu0
    %v3995 = vpop.f32.mrb[0].mxu0
    %v3996 = vadd.f32 0.0, %v3995
    %v3997 = vpop.f32.mrb[0].mxu0
    %3998 = vmatprep.mubr.bf16.mxu0 %v3950
    %3999 = vmatmul.mubr.bf16.gmra.mrb[0].mxu0 %v3936
    %v4000 = vpop.f32.mrb[0].mxu0
    %v4001 = vadd.f32 0.0, %v4000
    %v4002 = vpop.f32.mrb[0].mxu0
    %v4003 = vpop.f32.mrb[0].mxu0
    %v4004 = vadd.f32 0.0, %v4003
    %v4005 = vpop.f32.mrb[0].mxu0
    %4006 = vmatprep.mubr.bf16.mxu0 %v3953
    %4007 = vmatmul.mubr.bf16.gmra.mrb[0].mxu0 %v3938
    %v4008 = vpop.f32.mrb[0].mxu0
    %v4009 = vadd.f32 0.0, %v4008
    %v4010 = vpop.f32.mrb[0].mxu0
    %v4011 = vpop.f32.mrb[0].mxu0
    %v4012 = vadd.f32 0.0, %v4011
    %v4013 = vpop.f32.mrb[0].mxu0
    %4014 = vmatprep.mubr.bf16.mxu0 %v3956
    %4015 = vmatmul.mubr.bf16.gmra.mrb[0].mxu0 %v3940
    %v4016 = vpop.f32.mrb[0].mxu0
    %v4017 = vadd.f32 0.0, %v4016
    %v4018 = vpop.f32.mrb[0].mxu0
    %v4019 = vpop.f32.mrb[0].mxu0
    %v4020 = vadd.f32 0.0, %v4019
    %v4021 = vpop.f32.mrb[0].mxu0
    %4022 = vdwg.mxu0
    %v4023 = vmax.f32 %v3993, 0.0
    %v4024 = vmax.f32 %v3996, 0.0
    %v4025 = vmax.f32 %v4001, 0.0
    %v4026 = vmax.f32 %v4004, 0.0
    %v4027 = vmax.f32 %v4009, 0.0
    %v4028 = vmax.f32 %v4012, 0.0
    %v4029 = vmax.f32 %v4017, 0.0
    %v4030 = vmax.f32 %v4020, 0.0
    %v4031 = vpack.c.bf16 %v4024, %v4023
    %v4032 = vpack.c.bf16 %v4026, %v4025
    %v4033 = vpack.c.bf16 %v4028, %v4027
    %v4034 = vpack.c.bf16 %v4030, %v4029
    %v4035 = vld [vmem:[#allocation5 + $0x640] sm:$0xff]
    %v4036 = vld [vmem:[#allocation5 + $0x648] sm:$0xff]
    %v4037 = vld [vmem:[#allocation5 + $0x650] sm:$0xff]
    %v4038 = vld [vmem:[#allocation5 + $0x658] sm:$0xff]
    %v4043 = vunpack.c.l.b16 %v4035
    %v4044 = vunpack.c.h.b16 %v4035
    %v4045 = vunpack.c.l.b16 %v4036
    %v4046 = vunpack.c.h.b16 %v4036
    %v4047 = vunpack.c.l.b16 %v4037
    %v4048 = vunpack.c.h.b16 %v4037
    %v4049 = vunpack.c.l.b16 %v4038
    %v4050 = vunpack.c.h.b16 %v4038
    %v4051 = vpack.c.b16 %v4045, %v4043
    %v4052 = vpack.c.b16 %v4046, %v4044
    %v4053 = vpack.c.b16 %v4049, %v4047
    %v4054 = vpack.c.b16 %v4050, %v4048
    %v4058 = vsel %vm1108, %v4052, 0
    %v4061 = vsel %vm1108, %v4054, 0
    %4063 = vmatprep.subr.bf16.mxu0 0
    %4064 = vmatpush1.bf16.msra.mxu0 %v4031
    %4065 = vmatprep.subr.bf16.mxu0 0
    %4066 = vmatpush1.bf16.msra.mxu0 %v4032
    %4067 = vmatprep.subr.bf16.mxu0 0
    %4068 = vmatpush1.bf16.msra.mxu0 %v4033
    %4069 = vmatprep.subr.bf16.mxu0 0
    %4070 = vmatpush1.bf16.msra.mxu0 %v4034
    %4071 = vmatprep.subr.bf16.mxu0 0
    %4072 = vmatpush1.bf16.msra.mxu0 %v3894
    %4073 = vmatprep.subr.bf16.mxu0 0
    %4074 = vmatpush1.bf16.msra.mxu0 %v3895
    %4075 = vmatprep.subr.bf16.mxu0 0
    %4076 = vmatpush1.bf16.msra.mxu0 %v3896
    %4077 = vmatprep.subr.bf16.mxu0 0
    %4078 = vmatpush1.bf16.msra.mxu0 %v3897
    %4079 = vmatprep.subr.bf16.mxu0 0
    %4080 = vmatpush1.bf16.msra.mxu0 %v3898
    %4081 = vmatprep.subr.bf16.mxu0 0
    %4082 = vmatpush1.bf16.msra.mxu0 %v3899
    %4083 = vmatprep.subr.bf16.mxu0 0
    %4084 = vmatpush1.bf16.msra.mxu0 %v3900
    %4085 = vmatprep.subr.bf16.mxu0 0
    %4086 = vmatpush1.bf16.msra.mxu0 %v3901
    %4087 = vmatprep.subr.bf16.mxu0 0
    %4088 = vmatpush1.bf16.msra.mxu0 %v108
    %4089 = vmatprep.subr.bf16.mxu0 0
    %4090 = vmatpush1.bf16.msra.mxu0 0
    %4091 = vmatprep.subr.bf16.mxu0 0
    %4092 = vmatpush1.bf16.msra.mxu0 0
    %4093 = vmatprep.subr.bf16.mxu0 0
    %4094 = vmatpush1.bf16.msra.mxu0 0
    %4095 = vmatprep.mubr.bf16.mxu0 %v4058
    %4096 = vmatmul.mubr.bf16.gmra.mrb[0].mxu0 %v4051
    %v4097 = vpop.f32.mrb[0].mxu0
    %v4098 = vadd.f32 0.0, %v4097
    %v4099 = vpop.f32.mrb[0].mxu0
    %v4100 = vpop.f32.mrb[0].mxu0
    %v4101 = vadd.f32 0.0, %v4100
    %v4102 = vpop.f32.mrb[0].mxu0
    %4103 = vmatprep.mubr.bf16.mxu0 %v4061
    %4104 = vmatmul.mubr.bf16.gmra.mrb[0].mxu0 %v4053
    %v4105 = vpop.f32.mrb[0].mxu0
    %v4106 = vadd.f32 0.0, %v4105
    %v4107 = vpop.f32.mrb[0].mxu0
    %v4108 = vpop.f32.mrb[0].mxu0
    %v4109 = vadd.f32 0.0, %v4108
    %v4110 = vpop.f32.mrb[0].mxu0
    %4111 = vdwg.mxu0
    %v4112 = vmax.f32 %v4098, 0.0
    %v4113 = vmax.f32 %v4101, 0.0
    %v4114 = vmax.f32 %v4106, 0.0
    %v4115 = vmax.f32 %v4109, 0.0
    %v4116 = vld [vmem:[#allocation3] sm:$0xff]
    %v4117 = vld [vmem:[#allocation3 + $0x8] sm:$0xff]
    %v4118 = vld [vmem:[#allocation3 + $0x10] sm:$0xff]
    %v4119 = vld [vmem:[#allocation3 + $0x18] sm:$0xff]
    %v4120 = vpack.c.bf16 %v4117, %v4116
    %v4121 = vpack.c.bf16 %v4119, %v4118
    %v4122 = vld [vmem:[#allocation5 + $0x660] sm:$0xf]
    %v4123 = vld [vmem:[#allocation5 + $0x668] sm:$0xf]
    %v4124 = vld [vmem:[#allocation5 + $0x670] sm:$0xf]
    %v4125 = vld [vmem:[#allocation5 + $0x678] sm:$0xf]
    %v4130 = vunpack.c.l.b16 %v4122
    %v4131 = vunpack.c.l.b16 %v4123
    %v4132 = vunpack.c.l.b16 %v4124
    %v4133 = vunpack.c.l.b16 %v4125
    %v4134 = vpack.c.b16 %v4131, %v4130
    %v4135 = vpack.c.b16 %v4133, %v4132
    %v4137 = vsel %vm245, %v4134, 0
    %v4140 = vsel %vm245, %v4135, 0
    %4142 = vmatprep.subr.bf16.mxu0 0
    %4143 = vmatpush1.bf16.msra.mxu0 %v4120
    %4144 = vmatprep.subr.bf16.mxu0 0
    %4145 = vmatpush1.bf16.msra.mxu0 %v4121
    %4146 = vmatprep.subr.bf16.mxu0 0
    %4147 = vmatpush1.bf16.msra.mxu0 %v108
    %4148 = vmatprep.subr.bf16.mxu0 0
    %4149 = vmatpush1.bf16.msra.mxu0 0
    %4150 = vmatprep.subr.bf16.mxu0 0
    %4151 = vmatpush1.bf16.msra.mxu0 0
    %4152 = vmatprep.subr.bf16.mxu0 0
    %4153 = vmatpush1.bf16.msra.mxu0 0
    %4154 = vmatprep.subr.bf16.mxu0 0
    %4155 = vmatpush1.bf16.msra.mxu0 0
    %4156 = vmatprep.subr.bf16.mxu0 0
    %4157 = vmatpush1.bf16.msra.mxu0 0
    %4158 = vmatprep.subr.bf16.mxu0 0
    %4159 = vmatpush1.bf16.msra.mxu0 0
    %4160 = vmatprep.subr.bf16.mxu0 0
    %4161 = vmatpush1.bf16.msra.mxu0 0
    %4162 = vmatprep.subr.bf16.mxu0 0
    %4163 = vmatpush1.bf16.msra.mxu0 0
    %4164 = vmatprep.subr.bf16.mxu0 0
    %4165 = vmatpush1.bf16.msra.mxu0 0
    %4166 = vmatprep.subr.bf16.mxu0 0
    %4167 = vmatpush1.bf16.msra.mxu0 0
    %4168 = vmatprep.subr.bf16.mxu0 0
    %4169 = vmatpush1.bf16.msra.mxu0 0
    %4170 = vmatprep.subr.bf16.mxu0 0
    %4171 = vmatpush1.bf16.msra.mxu0 0
    %4172 = vmatprep.subr.bf16.mxu0 0
    %4173 = vmatpush1.bf16.msra.mxu0 0
    %4174 = vmatprep.mubr.bf16.mxu0 0
    %4175 = vmatmul.mubr.bf16.gmra.mrb[0].mxu0 %v4137
    %v4176 = vpop.f32.mrb[0].mxu0
    %v4177 = vadd.f32 0.0, %v4176
    %v4178 = vpop.f32.mrb[0].mxu0
    %v4179 = vpop.f32.mrb[0].mxu0
    %v4180 = vadd.f32 0.0, %v4179
    %v4181 = vpop.f32.mrb[0].mxu0
    %4182 = vmatprep.mubr.bf16.mxu0 0
    %4183 = vmatmul.mubr.bf16.gmra.mrb[0].mxu0 %v4140
    %v4184 = vpop.f32.mrb[0].mxu0
    %v4185 = vadd.f32 0.0, %v4184
    %v4186 = vpop.f32.mrb[0].mxu0
    %v4187 = vpop.f32.mrb[0].mxu0
    %v4188 = vadd.f32 0.0, %v4187
    %v4189 = vpop.f32.mrb[0].mxu0
    %4190 = vdwg.mxu0
    %v4191 = vmax.f32 %v4177, 0.0
    %v4192 = vmax.f32 %v4180, 0.0
    %v4193 = vmax.f32 %v4185, 0.0
    %v4194 = vmax.f32 %v4188, 0.0
    %v4195 = vpack.c.bf16 %v4192, %v4191
    %v4196 = vpack.c.bf16 %v4194, %v4193
    %v4197 = vld [vmem:[#allocation5 + $0x680] sm:$0xf]
    %v4198 = vld [vmem:[#allocation5 + $0x688] sm:$0xf]
    %v4199 = vld [vmem:[#allocation5 + $0x690] sm:$0xf]
    %v4200 = vld [vmem:[#allocation5 + $0x698] sm:$0xf]
    %v4205 = vunpack.c.l.b16 %v4197
    %v4206 = vunpack.c.l.b16 %v4198
    %v4207 = vunpack.c.l.b16 %v4199
    %v4208 = vunpack.c.l.b16 %v4200
    %v4209 = vpack.c.b16 %v4206, %v4205
    %v4210 = vpack.c.b16 %v4208, %v4207
    %v4212 = vsel %vm245, %v4209, 0
    %v4215 = vsel %vm245, %v4210, 0
    %4217 = vmatprep.subr.bf16.mxu0 0
    %4218 = vmatpush1.bf16.msra.mxu0 %v4195
    %4219 = vmatprep.subr.bf16.mxu0 0
    %4220 = vmatpush1.bf16.msra.mxu0 %v4196
    %4221 = vmatprep.subr.bf16.mxu0 0
    %4222 = vmatpush1.bf16.msra.mxu0 %v108
    %4223 = vmatprep.subr.bf16.mxu0 0
    %4224 = vmatpush1.bf16.msra.mxu0 0
    %4225 = vmatprep.subr.bf16.mxu0 0
    %4226 = vmatpush1.bf16.msra.mxu0 0
    %4227 = vmatprep.subr.bf16.mxu0 0
    %4228 = vmatpush1.bf16.msra.mxu0 0
    %4229 = vmatprep.subr.bf16.mxu0 0
    %4230 = vmatpush1.bf16.msra.mxu0 0
    %4231 = vmatprep.subr.bf16.mxu0 0
    %4232 = vmatpush1.bf16.msra.mxu0 0
    %4233 = vmatprep.subr.bf16.mxu0 0
    %4234 = vmatpush1.bf16.msra.mxu0 0
    %4235 = vmatprep.subr.bf16.mxu0 0
    %4236 = vmatpush1.bf16.msra.mxu0 0
    %4237 = vmatprep.subr.bf16.mxu0 0
    %4238 = vmatpush1.bf16.msra.mxu0 0
    %4239 = vmatprep.subr.bf16.mxu0 0
    %4240 = vmatpush1.bf16.msra.mxu0 0
    %4241 = vmatprep.subr.bf16.mxu0 0
    %4242 = vmatpush1.bf16.msra.mxu0 0
    %4243 = vmatprep.subr.bf16.mxu0 0
    %4244 = vmatpush1.bf16.msra.mxu0 0
    %4245 = vmatprep.subr.bf16.mxu0 0
    %4246 = vmatpush1.bf16.msra.mxu0 0
    %4247 = vmatprep.subr.bf16.mxu0 0
    %4248 = vmatpush1.bf16.msra.mxu0 0
    %4249 = vmatprep.mubr.bf16.mxu0 0
    %4250 = vmatmul.mubr.bf16.gmra.mrb[0].mxu0 %v4212
    %v4251 = vpop.f32.mrb[0].mxu0
    %v4252 = vadd.f32 %v4116, %v4251
    %v4253 = vpop.f32.mrb[0].mxu0
    %v4254 = vpop.f32.mrb[0].mxu0
    %v4255 = vadd.f32 %v4117, %v4254
    %v4256 = vpop.f32.mrb[0].mxu0
    %4257 = vmatprep.mubr.bf16.mxu0 0
    %4258 = vmatmul.mubr.bf16.gmra.mrb[0].mxu0 %v4215
    %v4259 = vpop.f32.mrb[0].mxu0
    %v4260 = vadd.f32 %v4118, %v4259
    %v4261 = vpop.f32.mrb[0].mxu0
    %v4262 = vpop.f32.mrb[0].mxu0
    %v4263 = vadd.f32 %v4119, %v4262
    %v4264 = vpop.f32.mrb[0].mxu0
    %4265 = vdwg.mxu0
    %v4266 = vmax.f32 %v4252, 0.0
    %v4267 = vmax.f32 %v4255, 0.0
    %v4268 = vmax.f32 %v4260, 0.0
    %v4269 = vmax.f32 %v4263, 0.0
    %v4270 = vpack.c.bf16 %v4113, %v4112
    %v4271 = vpack.c.bf16 %v4115, %v4114
    %v4272 = vpack.c.bf16 %v4267, %v4266
    %v4273 = vpack.c.bf16 %v4269, %v4268
    %v4274 = vld [vmem:[#allocation5 + $0x6a0] sm:$0xf]
    %v4275 = vld [vmem:[#allocation5 + $0x6a8] sm:$0xf]
    %v4276 = vld [vmem:[#allocation5 + $0x6b0] sm:$0xf]
    %v4277 = vld [vmem:[#allocation5 + $0x6b8] sm:$0xf]
    %v4282 = vunpack.c.l.b16 %v4274
    %v4283 = vunpack.c.l.b16 %v4275
    %v4284 = vunpack.c.l.b16 %v4276
    %v4285 = vunpack.c.l.b16 %v4277
    %v4286 = vpack.c.b16 %v4283, %v4282
    %v4287 = vpack.c.b16 %v4285, %v4284
    %v4289 = vsel %vm1108, %v4286, 0
    %v4292 = vsel %vm1108, %v4287, 0
    %4294 = vmatprep.subr.bf16.mxu0 0
    %4295 = vmatpush1.bf16.msra.mxu0 %v4270
    %4296 = vmatprep.subr.bf16.mxu0 0
    %4297 = vmatpush1.bf16.msra.mxu0 %v4271
    %4298 = vmatprep.subr.bf16.mxu0 0
    %4299 = vmatpush1.bf16.msra.mxu0 %v4272
    %4300 = vmatprep.subr.bf16.mxu0 0
    %4301 = vmatpush1.bf16.msra.mxu0 %v4273
    %4302 = vmatprep.subr.bf16.mxu0 0
    %4303 = vmatpush1.bf16.msra.mxu0 %v108
    %4304 = vmatprep.subr.bf16.mxu0 0
    %4305 = vmatpush1.bf16.msra.mxu0 0
    %4306 = vmatprep.subr.bf16.mxu0 0
    %4307 = vmatpush1.bf16.msra.mxu0 0
    %4308 = vmatprep.subr.bf16.mxu0 0
    %4309 = vmatpush1.bf16.msra.mxu0 0
    %4310 = vmatprep.subr.bf16.mxu0 0
    %4311 = vmatpush1.bf16.msra.mxu0 0
    %4312 = vmatprep.subr.bf16.mxu0 0
    %4313 = vmatpush1.bf16.msra.mxu0 0
    %4314 = vmatprep.subr.bf16.mxu0 0
    %4315 = vmatpush1.bf16.msra.mxu0 0
    %4316 = vmatprep.subr.bf16.mxu0 0
    %4317 = vmatpush1.bf16.msra.mxu0 0
    %4318 = vmatprep.subr.bf16.mxu0 0
    %4319 = vmatpush1.bf16.msra.mxu0 0
    %4320 = vmatprep.subr.bf16.mxu0 0
    %4321 = vmatpush1.bf16.msra.mxu0 0
    %4322 = vmatprep.subr.bf16.mxu0 0
    %4323 = vmatpush1.bf16.msra.mxu0 0
    %4324 = vmatprep.subr.bf16.mxu0 0
    %4325 = vmatpush1.bf16.msra.mxu0 0
    %4326 = vmatprep.mubr.bf16.mxu0 0
    %4327 = vmatmul.mubr.bf16.gmra.mrb[0].mxu0 %v4289
    %v4328 = vpop.f32.mrb[0].mxu0
    %v4329 = vadd.f32 0.0, %v4328
    %v4330 = vpop.f32.mrb[0].mxu0
    %v4331 = vpop.f32.mrb[0].mxu0
    %v4332 = vadd.f32 0.0, %v4331
    %v4333 = vpop.f32.mrb[0].mxu0
    %4334 = vmatprep.mubr.bf16.mxu0 0
    %4335 = vmatmul.mubr.bf16.gmra.mrb[0].mxu0 %v4292
    %v4336 = vpop.f32.mrb[0].mxu0
    %v4337 = vadd.f32 0.0, %v4336
    %v4338 = vpop.f32.mrb[0].mxu0
    %v4339 = vpop.f32.mrb[0].mxu0
    %v4340 = vadd.f32 0.0, %v4339
    %v4341 = vpop.f32.mrb[0].mxu0
    %4342 = vdwg.mxu0
    %v4343 = vmax.f32 %v4329, 0.0
    %v4344 = vmax.f32 %v4332, 0.0
    %v4345 = vmax.f32 %v4337, 0.0
    %v4346 = vmax.f32 %v4340, 0.0
    %v4347 = vpack.c.bf16 %v4344, %v4343
    %v4348 = vpack.c.bf16 %v4346, %v4345
    %v4349 = vld [vmem:[#allocation5 + $0x6c0] sm:$0xf]
    %v4350 = vld [vmem:[#allocation5 + $0x6c8] sm:$0xf]
    %v4353 = vunpack.c.l.b16 %v4349
    %v4354 = vunpack.c.l.b16 %v4350
    %v4355 = vpack.c.b16 %v4354, %v4353
    %vm4356 = vcmask 793600
    %v4358 = vsel %vm4356, %v4355, 0
    %4360 = vmatprep.subr.bf16.mxu0 0
    %4361 = vmatpush1.bf16.msra.mxu0 %v4347
    %4362 = vmatprep.subr.bf16.mxu0 0
    %4363 = vmatpush1.bf16.msra.mxu0 %v4348
    %4364 = vmatprep.subr.bf16.mxu0 0
    %4365 = vmatpush1.bf16.msra.mxu0 %v4270
    %4366 = vmatprep.subr.bf16.mxu0 0
    %4367 = vmatpush1.bf16.msra.mxu0 %v4271
    %4368 = vmatprep.subr.bf16.mxu0 0
    %4369 = vmatpush1.bf16.msra.mxu0 %v4272
    %4370 = vmatprep.subr.bf16.mxu0 0
    %4371 = vmatpush1.bf16.msra.mxu0 %v4273
    %4372 = vmatprep.subr.bf16.mxu0 0
    %4373 = vmatpush1.bf16.msra.mxu0 %v108
    %4374 = vmatprep.subr.bf16.mxu0 0
    %4375 = vmatpush1.bf16.msra.mxu0 0
    %4376 = vmatprep.subr.bf16.mxu0 0
    %4377 = vmatpush1.bf16.msra.mxu0 0
    %4378 = vmatprep.subr.bf16.mxu0 0
    %4379 = vmatpush1.bf16.msra.mxu0 0
    %4380 = vmatprep.subr.bf16.mxu0 0
    %4381 = vmatpush1.bf16.msra.mxu0 0
    %4382 = vmatprep.subr.bf16.mxu0 0
    %4383 = vmatpush1.bf16.msra.mxu0 0
    %4384 = vmatprep.subr.bf16.mxu0 0
    %4385 = vmatpush1.bf16.msra.mxu0 0
    %4386 = vmatprep.subr.bf16.mxu0 0
    %4387 = vmatpush1.bf16.msra.mxu0 0
    %4388 = vmatprep.subr.bf16.mxu0 0
    %4389 = vmatpush1.bf16.msra.mxu0 0
    %4390 = vmatprep.subr.bf16.mxu0 0
    %4391 = vmatpush1.bf16.msra.mxu0 0
    %4392 = vmatprep.mubr.bf16.mxu0 0
    %4393 = vmatmul.mubr.bf16.gmra.mrb[0].mxu0 %v4358
    %v4394 = vpop.f32.mrb[0].mxu0
    %v4395 = vadd.f32 0.0, %v4394
    %v4396 = vpop.f32.mrb[0].mxu0
    %v4397 = vpop.f32.mrb[0].mxu0
    %v4398 = vadd.f32 0.0, %v4397
    %v4399 = vpop.f32.mrb[0].mxu0
    %4400 = vdwg.mxu0
    %v4401 = vmax.f32 %v4395, 0.0
    %v4402 = vmax.f32 %v4398, 0.0
    %v4403 = vld [vmem:[#allocation2] sm:$0xff]
    %v4404 = vld [vmem:[#allocation2 + $0x8] sm:$0xff]
    %v4405 = vpack.c.bf16 %v4404, %v4403
    %v4406 = vld [vmem:[#allocation5 + $0x6d0] sm:$0xf]
    %v4407 = vld [vmem:[#allocation5 + $0x6d8] sm:$0xf]
    %v4410 = vunpack.c.l.b16 %v4406
    %v4411 = vunpack.c.l.b16 %v4407
    %v4412 = vpack.c.b16 %v4411, %v4410
    %v4414 = vsel %vm100, %v4412, 0
    %4416 = vmatprep.subr.bf16.mxu0 0
    %4417 = vmatpush1.bf16.msra.mxu0 %v4405
    %4418 = vmatprep.subr.bf16.mxu0 0
    %4419 = vmatpush1.bf16.msra.mxu0 %v108
    %4420 = vmatprep.subr.bf16.mxu0 0
    %4421 = vmatpush1.bf16.msra.mxu0 0
    %4422 = vmatprep.subr.bf16.mxu0 0
    %4423 = vmatpush1.bf16.msra.mxu0 0
    %4424 = vmatprep.subr.bf16.mxu0 0
    %4425 = vmatpush1.bf16.msra.mxu0 0
    %4426 = vmatprep.subr.bf16.mxu0 0
    %4427 = vmatpush1.bf16.msra.mxu0 0
    %4428 = vmatprep.subr.bf16.mxu0 0
    %4429 = vmatpush1.bf16.msra.mxu0 0
    %4430 = vmatprep.subr.bf16.mxu0 0
    %4431 = vmatpush1.bf16.msra.mxu0 0
    %4432 = vmatprep.subr.bf16.mxu0 0
    %4433 = vmatpush1.bf16.msra.mxu0 0
    %4434 = vmatprep.subr.bf16.mxu0 0
    %4435 = vmatpush1.bf16.msra.mxu0 0
    %4436 = vmatprep.subr.bf16.mxu0 0
    %4437 = vmatpush1.bf16.msra.mxu0 0
    %4438 = vmatprep.subr.bf16.mxu0 0
    %4439 = vmatpush1.bf16.msra.mxu0 0
    %4440 = vmatprep.subr.bf16.mxu0 0
    %4441 = vmatpush1.bf16.msra.mxu0 0
    %4442 = vmatprep.subr.bf16.mxu0 0
    %4443 = vmatpush1.bf16.msra.mxu0 0
    %4444 = vmatprep.subr.bf16.mxu0 0
    %4445 = vmatpush1.bf16.msra.mxu0 0
    %4446 = vmatprep.subr.bf16.mxu0 0
    %4447 = vmatpush1.bf16.msra.mxu0 0
    %4448 = vmatprep.mubr.bf16.mxu0 0
    %4449 = vmatmul.mubr.bf16.gmra.mrb[0].mxu0 %v4414
    %v4450 = vpop.f32.mrb[0].mxu0
    %v4451 = vadd.f32 0.0, %v4450
    %v4452 = vpop.f32.mrb[0].mxu0
    %v4453 = vpop.f32.mrb[0].mxu0
    %v4454 = vadd.f32 0.0, %v4453
    %v4455 = vpop.f32.mrb[0].mxu0
    %4456 = vdwg.mxu0
    %v4457 = vmax.f32 %v4451, 0.0
    %v4458 = vmax.f32 %v4454, 0.0
    %v4459 = vpack.c.bf16 %v4458, %v4457
    %v4460 = vld [vmem:[#allocation5 + $0x6e0] sm:$0xf]
    %v4461 = vld [vmem:[#allocation5 + $0x6e8] sm:$0xf]
    %v4464 = vunpack.c.l.b16 %v4460
    %v4465 = vunpack.c.l.b16 %v4461
    %v4466 = vpack.c.b16 %v4465, %v4464
    %v4468 = vsel %vm100, %v4466, 0
    %4470 = vmatprep.subr.bf16.mxu0 0
    %4471 = vmatpush1.bf16.msra.mxu0 %v4459
    %4472 = vmatprep.subr.bf16.mxu0 0
    %4473 = vmatpush1.bf16.msra.mxu0 %v108
    %4474 = vmatprep.subr.bf16.mxu0 0
    %4475 = vmatpush1.bf16.msra.mxu0 0
    %4476 = vmatprep.subr.bf16.mxu0 0
    %4477 = vmatpush1.bf16.msra.mxu0 0
    %4478 = vmatprep.subr.bf16.mxu0 0
    %4479 = vmatpush1.bf16.msra.mxu0 0
    %4480 = vmatprep.subr.bf16.mxu0 0
    %4481 = vmatpush1.bf16.msra.mxu0 0
    %4482 = vmatprep.subr.bf16.mxu0 0
    %4483 = vmatpush1.bf16.msra.mxu0 0
    %4484 = vmatprep.subr.bf16.mxu0 0
    %4485 = vmatpush1.bf16.msra.mxu0 0
    %4486 = vmatprep.subr.bf16.mxu0 0
    %4487 = vmatpush1.bf16.msra.mxu0 0
    %4488 = vmatprep.subr.bf16.mxu0 0
    %4489 = vmatpush1.bf16.msra.mxu0 0
    %4490 = vmatprep.subr.bf16.mxu0 0
    %4491 = vmatpush1.bf16.msra.mxu0 0
    %4492 = vmatprep.subr.bf16.mxu0 0
    %4493 = vmatpush1.bf16.msra.mxu0 0
    %4494 = vmatprep.subr.bf16.mxu0 0
    %4495 = vmatpush1.bf16.msra.mxu0 0
    %4496 = vmatprep.subr.bf16.mxu0 0
    %4497 = vmatpush1.bf16.msra.mxu0 0
    %4498 = vmatprep.subr.bf16.mxu0 0
    %4499 = vmatpush1.bf16.msra.mxu0 0
    %4500 = vmatprep.subr.bf16.mxu0 0
    %4501 = vmatpush1.bf16.msra.mxu0 0
    %4502 = vmatprep.mubr.bf16.mxu0 0
    %4503 = vmatmul.mubr.bf16.gmra.mrb[0].mxu0 %v4468
    %v4504 = vpop.f32.mrb[0].mxu0
    %v4505 = vadd.f32 %v4403, %v4504
    %v4506 = vpop.f32.mrb[0].mxu0
    %v4507 = vpop.f32.mrb[0].mxu0
    %v4508 = vadd.f32 %v4404, %v4507
    %v4509 = vpop.f32.mrb[0].mxu0
    %4510 = vdwg.mxu0
    %v4511 = vmax.f32 %v4505, 0.0
    %v4512 = vmax.f32 %v4508, 0.0
    %v4513 = vpack.c.bf16 %v4402, %v4401
    %v4514 = vpack.c.bf16 %v4512, %v4511
    %v4515 = vld [vmem:[#allocation5 + $0x6f0] sm:$0xf]
    %v4516 = vld [vmem:[#allocation5 + $0x6f8] sm:$0xf]
    %v4519 = vunpack.c.l.b16 %v4515
    %v4520 = vunpack.c.l.b16 %v4516
    %v4521 = vpack.c.b16 %v4520, %v4519
    %v4523 = vsel %vm245, %v4521, 0
    %4525 = vmatprep.subr.bf16.mxu0 0
    %4526 = vmatpush1.bf16.msra.mxu0 %v4513
    %4527 = vmatprep.subr.bf16.mxu0 0
    %4528 = vmatpush1.bf16.msra.mxu0 %v4514
    %4529 = vmatprep.subr.bf16.mxu0 0
    %4530 = vmatpush1.bf16.msra.mxu0 %v108
    %4531 = vmatprep.subr.bf16.mxu0 0
    %4532 = vmatpush1.bf16.msra.mxu0 0
    %4533 = vmatprep.subr.bf16.mxu0 0
    %4534 = vmatpush1.bf16.msra.mxu0 0
    %4535 = vmatprep.subr.bf16.mxu0 0
    %4536 = vmatpush1.bf16.msra.mxu0 0
    %4537 = vmatprep.subr.bf16.mxu0 0
    %4538 = vmatpush1.bf16.msra.mxu0 0
    %4539 = vmatprep.subr.bf16.mxu0 0
    %4540 = vmatpush1.bf16.msra.mxu0 0
    %4541 = vmatprep.subr.bf16.mxu0 0
    %4542 = vmatpush1.bf16.msra.mxu0 0
    %4543 = vmatprep.subr.bf16.mxu0 0
    %4544 = vmatpush1.bf16.msra.mxu0 0
    %4545 = vmatprep.subr.bf16.mxu0 0
    %4546 = vmatpush1.bf16.msra.mxu0 0
    %4547 = vmatprep.subr.bf16.mxu0 0
    %4548 = vmatpush1.bf16.msra.mxu0 0
    %4549 = vmatprep.subr.bf16.mxu0 0
    %4550 = vmatpush1.bf16.msra.mxu0 0
    %4551 = vmatprep.subr.bf16.mxu0 0
    %4552 = vmatpush1.bf16.msra.mxu0 0
    %4553 = vmatprep.subr.bf16.mxu0 0
    %4554 = vmatpush1.bf16.msra.mxu0 0
    %4555 = vmatprep.subr.bf16.mxu0 0
    %4556 = vmatpush1.bf16.msra.mxu0 0
    %4557 = vmatprep.mubr.bf16.mxu0 0
    %4558 = vmatmul.mubr.bf16.gmra.mrb[0].mxu0 %v4523
    %v4559 = vpop.f32.mrb[0].mxu0
    %v4560 = vadd.f32 0.0, %v4559
    %v4561 = vpop.f32.mrb[0].mxu0
    %v4562 = vpop.f32.mrb[0].mxu0
    %v4563 = vadd.f32 0.0, %v4562
    %v4564 = vpop.f32.mrb[0].mxu0
    %4565 = vdwg.mxu0
    %v4566 = vmax.f32 %v4560, 0.0
    %v4567 = vmax.f32 %v4563, 0.0
    %v4568 = vpack.c.bf16 %v4567, %v4566
    %v4569 = vld [vmem:[#allocation5 + $0x700] sm:$0xf]
    %v4570 = vld [vmem:[#allocation5 + $0x708] sm:$0xf]
    %v4573 = vunpack.c.l.b16 %v4569
    %v4574 = vunpack.c.l.b16 %v4570
    %v4575 = vpack.c.b16 %v4574, %v4573
    %vm4576 = vcmask 400384
    %v4578 = vsel %vm4576, %v4575, 0
    %4580 = vmatprep.subr.bf16.mxu0 0
    %4581 = vmatpush1.bf16.msra.mxu0 %v4568
    %4582 = vmatprep.subr.bf16.mxu0 0
    %4583 = vmatpush1.bf16.msra.mxu0 %v4513
    %4584 = vmatprep.subr.bf16.mxu0 0
    %4585 = vmatpush1.bf16.msra.mxu0 %v4514
    %4586 = vmatprep.subr.bf16.mxu0 0
    %4587 = vmatpush1.bf16.msra.mxu0 %v108
    %4588 = vmatprep.subr.bf16.mxu0 0
    %4589 = vmatpush1.bf16.msra.mxu0 0
    %4590 = vmatprep.subr.bf16.mxu0 0
    %4591 = vmatpush1.bf16.msra.mxu0 0
    %4592 = vmatprep.subr.bf16.mxu0 0
    %4593 = vmatpush1.bf16.msra.mxu0 0
    %4594 = vmatprep.subr.bf16.mxu0 0
    %4595 = vmatpush1.bf16.msra.mxu0 0
    %4596 = vmatprep.subr.bf16.mxu0 0
    %4597 = vmatpush1.bf16.msra.mxu0 0
    %4598 = vmatprep.subr.bf16.mxu0 0
    %4599 = vmatpush1.bf16.msra.mxu0 0
    %4600 = vmatprep.subr.bf16.mxu0 0
    %4601 = vmatpush1.bf16.msra.mxu0 0
    %4602 = vmatprep.subr.bf16.mxu0 0
    %4603 = vmatpush1.bf16.msra.mxu0 0
    %4604 = vmatprep.subr.bf16.mxu0 0
    %4605 = vmatpush1.bf16.msra.mxu0 0
    %4606 = vmatprep.subr.bf16.mxu0 0
    %4607 = vmatpush1.bf16.msra.mxu0 0
    %4608 = vmatprep.subr.bf16.mxu0 0
    %4609 = vmatpush1.bf16.msra.mxu0 0
    %4610 = vmatprep.subr.bf16.mxu0 0
    %4611 = vmatpush1.bf16.msra.mxu0 0
    %4612 = vmatprep.mubr.bf16.mxu0 0
    %4613 = vmatmul.mubr.bf16.gmra.mrb[0].mxu0 %v4578
    %v4614 = vpop.f32.mrb[0].mxu0
    %v4615 = vadd.f32 0.0, %v4614
    %v4616 = vpop.f32.mrb[0].mxu0
    %v4617 = vpop.f32.mrb[0].mxu0
    %v4618 = vadd.f32 0.0, %v4617
    %v4619 = vpop.f32.mrb[0].mxu0
    %4620 = vdwg.mxu0
    %v4621 = vmax.f32 %v4615, 0.0
    %v4622 = vmax.f32 %v4618, 0.0
    %v4623 = vpack.c.bf16 %v4622, %v4621
    %v4624 = vld [vmem:[#allocation5 + $0x710] sm:$0xf]
    %v4626 = vsel %vm100, %v4624, 0
    %4628 = vmatprep.subr.bf16.mxu0 0
    %4629 = vmatpush1.bf16.msra.mxu0 %v4623
    %4630 = vmatprep.subr.bf16.mxu0 0
    %4631 = vmatpush1.bf16.msra.mxu0 %v108
    %4632 = vmatprep.subr.bf16.mxu0 0
    %4633 = vmatpush1.bf16.msra.mxu0 0
    %4634 = vmatprep.subr.bf16.mxu0 0
    %4635 = vmatpush1.bf16.msra.mxu0 0
    %4636 = vmatprep.subr.bf16.mxu0 0
    %4637 = vmatpush1.bf16.msra.mxu0 0
    %4638 = vmatprep.subr.bf16.mxu0 0
    %4639 = vmatpush1.bf16.msra.mxu0 0
    %4640 = vmatprep.subr.bf16.mxu0 0
    %4641 = vmatpush1.bf16.msra.mxu0 0
    %4642 = vmatprep.subr.bf16.mxu0 0
    %4643 = vmatpush1.bf16.msra.mxu0 0
    %4644 = vmatprep.subr.bf16.mxu0 0
    %4645 = vmatpush1.bf16.msra.mxu0 0
    %4646 = vmatprep.subr.bf16.mxu0 0
    %4647 = vmatpush1.bf16.msra.mxu0 0
    %4648 = vmatprep.subr.bf16.mxu0 0
    %4649 = vmatpush1.bf16.msra.mxu0 0
    %4650 = vmatprep.subr.bf16.mxu0 0
    %4651 = vmatpush1.bf16.msra.mxu0 0
    %4652 = vmatprep.subr.bf16.mxu0 0
    %4653 = vmatpush1.bf16.msra.mxu0 0
    %4654 = vmatprep.subr.bf16.mxu0 0
    %4655 = vmatpush1.bf16.msra.mxu0 0
    %4656 = vmatprep.subr.bf16.mxu0 0
    %4657 = vmatpush1.bf16.msra.mxu0 0
    %4658 = vmatprep.subr.bf16.mxu0 0
    %4659 = vmatpush1.bf16.msra.mxu0 0
    %4660 = vmatprep.mubr.bf16.mxu0 0
    %4661 = vmatmul.mubr.bf16.gmra.mrb[0].mxu0 %v4626
    %v4662 = vpop.f32.mrb[0].mxu0
    %v4663 = vadd.f32 0.0, %v4662
    %v4664 = vpop.f32.mrb[0].mxu0
    %v4665 = vpop.f32.mrb[0].mxu0
    %v4666 = vpop.f32.mrb[0].mxu0
    %4667 = vdwg.mxu0
    %v4668 = vxor.u32 %v4663, 2147483648
    %v4669 = vmul.f32 %v4668, 1.442695
    %v4670 = vpow.pop %v4669
    %v4671 = vadd.f32 %v4670, 1.0
    %v4672 = vrcp.pop %v4671
    %v4673 = vmul.f32 1.0, %v4672
    %4674 = vst [vmem:[%s2] sm:$0x1] %v4673
    // Predicated region
    $region14: #{_run.1} parent=1 // pred_check
      _
    $region15: #{_run.1} parent=1 // pred_check_branch
      %4676 = sbr.rel (0) target = $region17
    $region16: #{_run.1} parent=1 // pred_region
      _
    $region17: #{_run.1} parent=1 // pred_fallthru
      _
    // Predicated region
    $region18: #{_run.1} parent=1 // pred_check
      _
    $region19: #{_run.1} parent=1 // pred_check_branch
      %4678 = sbr.rel (0) target = $region21
    $region20: #{_run.1} parent=1 // pred_region
      _
    $region21: #{_run.1} parent=1 // pred_fallthru
      _
    %4679 = vsyncpa [#allocation6], 1

</llo_original>
